<compile_context>
chip_gen: v6e
topology: v6e:2x2x1
jax: 0.10.0
libtpu: 0.0.40
codegen_flags: <defaults>
</compile_context>

<pallas_src>
import jax
import jax.numpy as jnp
from jax import lax
from jax.experimental import pallas as pl
from jax.experimental.pallas import tpu as pltpu

EPS = 1e-5  # PyTorch nn.LayerNorm default


def _layernorm(x, g, b):
    mu = jnp.mean(x, axis=-1, keepdims=True)
    var = jnp.mean((x - mu) ** 2, axis=-1, keepdims=True)
    return (x - mu) * lax.rsqrt(var + EPS) * g + b


def _vmem_limit_bytes():
    # Generation-aware VMEM budget: ~7/8 of physical capacity leaves headroom for
    # compiler-internal scratch / semaphores (v7x: ~56 MiB, v5e/v6e: ~112 MiB).
    try:
        return int(pltpu.get_tpu_info().vmem_capacity_bytes) * 7 // 8
    except Exception:
        return None


def _pick_tile(total, pref):
    """Largest 128-aligned divisor of `total` that is <= pref (else `total`)."""
    if total <= pref:
        return total
    t = (pref // 128) * 128
    while t >= 128:
        if total % t == 0:
            return t
        t -= 128
    return total


# ---------------------------------------------------------------------------
# Kernel 1: fused transformer layer stack (+ final LayerNorm).
# ---------------------------------------------------------------------------
def make_layers_kernel(n_head, head_size, n_embd, T, b_tile):
    C = n_embd
    hs = head_size
    BT = b_tile * T
    # PyTorch Head scales by C**-0.5 where C = n_embd (x.shape[-1]), not head_size.
    scale = float(C) ** -0.5

    def kernel(x_ref,
               ln1g, ln1b, wqkv, wproj, bproj, ln2g, ln2b, w1, b1, w2, b2,
               lnfg, lnfb,
               xf_ref, maps_ref,
               x_scr):
        l = pl.program_id(1)

        # Load this batch tile into the resident activation scratch at layer 0.
        @pl.when(l == 0)
        def _():
            x_scr[...] = x_ref[...]

        x = x_scr[...]                                         # (BT, C) f32
        xn = _layernorm(x, ln1g[0], ln1b[0])

        # Fused lane-dense QKV projection for all heads: (BT, C) @ (C, 3C), f32 acc.
        qkv = jnp.dot(xn.astype(jnp.bfloat16), wqkv[0],
                      preferred_element_type=jnp.float32)      # (BT, 3C) f32

        # Fold the attention scale into q (f32), then a single bf16 cast per tensor.
        q = (qkv[:, :C] * scale).astype(jnp.bfloat16)
        k = qkv[:, C:2 * C].astype(jnp.bfloat16)
        v = qkv[:, 2 * C:].astype(jnp.bfloat16)

        # Head-major grouping: (BT, C) -> (n_head*b_tile, T, hs), group g = h*b_tile + b.
        def to_heads(t):
            t = t.reshape(b_tile, T, n_head, hs)
            t = jnp.transpose(t, (2, 0, 1, 3))                 # (H, b, T, hs)
            return t.reshape(n_head * b_tile, T, hs)

        qg, kg, vg = to_heads(q), to_heads(k), to_heads(v)

        # Causal mask (query index >= key index).
        row = lax.broadcasted_iota(jnp.int32, (T, T), 0)
        col = lax.broadcasted_iota(jnp.int32, (T, T), 1)
        causal = (col <= row)[None]                            # (1, T, T)

        # Head-batched attention: one batched matmul over all heads & batch.
        s = jnp.einsum('gqd,gkd->gqk', qg, kg,
                       preferred_element_type=jnp.float32)     # (H*b, T, T) f32
        s = jnp.where(causal, s, -1e30)                        # masked_fill(tril==0)
        m = jnp.max(s, axis=-1, keepdims=True)
        e = jnp.exp(s - m)
        p = e / jnp.sum(e, axis=-1, keepdims=True)             # exact softmax (exported)

        # Maps emitted directly in the final PyTorch layout: (1, n_head, b, T, T).
        maps_ref[0] = p.reshape(n_head, b_tile, T, T)

        o = jnp.einsum('gqk,gkd->gqd', p.astype(jnp.bfloat16), vg,
                       preferred_element_type=jnp.float32)     # (H*b, T, hs) f32
        o = o.reshape(n_head, b_tile, T, hs)
        o = jnp.transpose(o, (1, 2, 0, 3)).reshape(BT, C)      # lane-concat heads

        sa = jnp.dot(o.astype(jnp.bfloat16), wproj[0],
                     preferred_element_type=jnp.float32) + bproj[0]
        x1 = x + sa                                            # residual 1

        xn2 = _layernorm(x1, ln2g[0], ln2b[0])
        h1 = jnp.maximum(
            jnp.dot(xn2.astype(jnp.bfloat16), w1[0],
                    preferred_element_type=jnp.float32) + b1[0], 0.0)
        ff = jnp.dot(h1.astype(jnp.bfloat16), w2[0],
                     preferred_element_type=jnp.float32) + b2[0]
        x2 = x1 + ff                                           # residual 2
        x_scr[...] = x2                                        # carry to next layer

        # Final LayerNorm only (lm_head lives in its own vocab-tiled kernel).
        @pl.when(l == pl.num_programs(1) - 1)
        def _():
            xf_ref[...] = _layernorm(x2, lnfg[...], lnfb[...])

    return kernel


def run_layers(x2d, params, *, n_head, n_layer, T, b_tile):
    BT_total, C = x2d.shape
    B = BT_total // T
    hs = C // n_head
    nb = B // b_tile
    BT = b_tile * T
    L = params["layers"]

    kernel = make_layers_kernel(n_head, hs, C, T, b_tile)

    in_specs = [
        pl.BlockSpec((BT, C), lambda bi, l: (bi, 0)),                  # x
        pl.BlockSpec((1, 1, C), lambda bi, l: (l, 0, 0)),              # ln1 gamma
        pl.BlockSpec((1, 1, C), lambda bi, l: (l, 0, 0)),              # ln1 beta
        pl.BlockSpec((1, C, 3 * C), lambda bi, l: (l, 0, 0)),          # Wqkv (fused)
        pl.BlockSpec((1, C, C), lambda bi, l: (l, 0, 0)),              # Wproj
        pl.BlockSpec((1, 1, C), lambda bi, l: (l, 0, 0)),              # bproj
        pl.BlockSpec((1, 1, C), lambda bi, l: (l, 0, 0)),              # ln2 gamma
        pl.BlockSpec((1, 1, C), lambda bi, l: (l, 0, 0)),              # ln2 beta
        pl.BlockSpec((1, C, 4 * C), lambda bi, l: (l, 0, 0)),          # FFN W1
        pl.BlockSpec((1, 1, 4 * C), lambda bi, l: (l, 0, 0)),          # FFN b1
        pl.BlockSpec((1, 4 * C, C), lambda bi, l: (l, 0, 0)),          # FFN W2
        pl.BlockSpec((1, 1, C), lambda bi, l: (l, 0, 0)),              # FFN b2
        pl.BlockSpec((1, C), lambda bi, l: (0, 0)),                    # ln_f gamma
        pl.BlockSpec((1, C), lambda bi, l: (0, 0)),                    # ln_f beta
    ]
    out_specs = (
        pl.BlockSpec((BT, C), lambda bi, l: (bi, 0)),                  # xf (resident over l)
        pl.BlockSpec((1, n_head, b_tile, T, T), lambda bi, l: (l, 0, bi, 0, 0)),  # maps
    )
    out_shape = (
        jax.ShapeDtypeStruct((B * T, C), jnp.float32),
        jax.ShapeDtypeStruct((n_layer, n_head, B, T, T), jnp.float32),
    )
    scratch_shapes = [
        pltpu.VMEM((BT, C), jnp.float32),   # resident activations across layers
    ]

    xf, maps = pl.pallas_call(
        kernel,
        out_shape=out_shape,
        grid_spec=pltpu.PrefetchScalarGridSpec(
            num_scalar_prefetch=0,
            grid=(nb, n_layer),
            in_specs=in_specs,
            out_specs=out_specs,
            scratch_shapes=scratch_shapes),
        compiler_params=pltpu.CompilerParams(
            dimension_semantics=("parallel", "arbitrary"),
            vmem_limit_bytes=_vmem_limit_bytes()),
    )(x2d,
      L["ln1_g"], L["ln1_b"], L["w_qkv"], L["w_proj"], L["b_proj"],
      L["ln2_g"], L["ln2_b"], L["w1"], L["b1"], L["w2"], L["b2"],
      params["lnf_g"], params["lnf_b"])
    return xf, maps


# ---------------------------------------------------------------------------
# Kernel 2: vocab-tiled lm_head (keeps the (C, V) weight / (BT, V) logits out of
# the fused layer loop's VMEM footprint).
# ---------------------------------------------------------------------------
def lm_head_kernel(xf_ref, w_ref, b_ref, out_ref):
    out_ref[...] = jnp.dot(xf_ref[...].astype(jnp.bfloat16), w_ref[...],
                           preferred_element_type=jnp.float32) + b_ref[...]


def run_lm_head(xf, w_lm, b_lm):
    N, C = xf.shape
    V = w_lm.shape[-1]
    tr = _pick_tile(N, 1024)    # row tile
    tv = _pick_tile(V, 2048)    # vocab tile (weight streaming)

    return pl.pallas_call(
        lm_head_kernel,
        out_shape=jax.ShapeDtypeStruct((N, V), jnp.float32),
        grid_spec=pltpu.PrefetchScalarGridSpec(
            num_scalar_prefetch=0,
            grid=(N // tr, V // tv),
            in_specs=[pl.BlockSpec((tr, C), lambda i, j: (i, 0)),
                      pl.BlockSpec((C, tv), lambda i, j: (0, j)),
                      pl.BlockSpec((1, tv), lambda i, j: (0, j))],
            out_specs=pl.BlockSpec((tr, tv), lambda i, j: (i, j))),
        compiler_params=pltpu.CompilerParams(
            dimension_semantics=("parallel", "parallel"),
            vmem_limit_bytes=_vmem_limit_bytes()),
    )(xf, w_lm, b_lm)


# ---------------------------------------------------------------------------
# Parameter init (deterministic, synthetic) and full forward pass.
# ---------------------------------------------------------------------------
def init_params(key, vocab_size, n_embd, n_head, n_layer, block_size):
    keys = jax.random.split(key, 8)

    def w(k, shape, scale=0.02, dtype=jnp.bfloat16):
        return (scale * jax.random.normal(k, shape, dtype=jnp.float32)).astype(dtype)

    layers = {
        "ln1_g": jnp.ones((n_layer, 1, n_embd), jnp.float32),
        "ln1_b": jnp.zeros((n_layer, 1, n_embd), jnp.float32),
        # fused Q|K|V (columns: [Q_h0..Q_hH | K_h0..K_hH | V_h0..V_hH], each head_size wide)
        "w_qkv": w(keys[2], (n_layer, n_embd, 3 * n_embd)),
        "w_proj": w(keys[3], (n_layer, n_embd, n_embd)),
        "b_proj": jnp.zeros((n_layer, 1, n_embd), jnp.float32),
        "ln2_g": jnp.ones((n_layer, 1, n_embd), jnp.float32),
        "ln2_b": jnp.zeros((n_layer, 1, n_embd), jnp.float32),
        "w1": w(keys[4], (n_layer, n_embd, 4 * n_embd)),
        "b1": jnp.zeros((n_layer, 1, 4 * n_embd), jnp.float32),
        "w2": w(keys[5], (n_layer, 4 * n_embd, n_embd)),
        "b2": jnp.zeros((n_layer, 1, n_embd), jnp.float32),
    }
    params = {
        "tok_emb": w(keys[0], (vocab_size, n_embd), dtype=jnp.float32),
        "pos_emb": w(keys[1], (block_size, n_embd), dtype=jnp.float32),
        "lnf_g": jnp.ones((1, n_embd), jnp.float32),
        "lnf_b": jnp.zeros((1, n_embd), jnp.float32),
        "w_lm": w(keys[6], (n_embd, vocab_size)),
        "b_lm": jnp.zeros((1, vocab_size), jnp.float32),
        "layers": layers,
    }
    return params


def decoder_forward(idx, params, *, n_head, n_layer, block_size,
                    b_tile=None, targets=None):
    B, T = idx.shape
    C = params["tok_emb"].shape[-1]
    V = params["w_lm"].shape[-1]
    if b_tile is None:
        # nb = 1 streams layer weights once (best for v5e); see TODO at top for v7x.
        b_tile = B
    assert B % b_tile == 0

    # Embedding gathers + positional add are glue (gather) in plain JAX.
    tok = jnp.take(params["tok_emb"], idx, axis=0)                # (B, T, C)
    pos = params["pos_emb"][:T]                                   # (T, C)
    x2d = (tok + pos[None]).astype(jnp.float32).reshape(B * T, C)

    xf, maps5 = run_layers(x2d, params, n_head=n_head, n_layer=n_layer,
                           T=T, b_tile=b_tile)
    logits_flat = run_lm_head(xf, params["w_lm"], params["b_lm"])

    logits = logits_flat.reshape(B, T, V)

    # maps5 is already (n_layer, n_head, B, T, T); contiguous reshape only (free).
    maps = maps5.reshape(-1, block_size, block_size)

    if targets is None:
        loss = None
    else:
        # cross-entropy glue in plain JAX (not the hot path)
        lf = logits.reshape(B * T, -1)
        logz = jax.nn.logsumexp(lf, axis=-1)
        nll = logz - jnp.take_along_axis(lf, targets.reshape(-1, 1), axis=-1)[:, 0]
        loss = jnp.mean(nll)
    return logits, loss, maps


if __name__ == "__main__":
    # small config consistent with the module
    vocab_size, n_embd, n_head, n_layer, block_size, dropout = 16, 32, 4, 2, 8, 0.0
    B, T = 2, block_size

    key = jax.random.PRNGKey(0)
    pkey, ikey = jax.random.split(key)
    params = init_params(pkey, vocab_size, n_embd, n_head, n_layer, block_size)
    idx = jax.random.randint(ikey, (B, T), 0, vocab_size, dtype=jnp.int32)

    logits, loss, maps = decoder_forward(idx, params, n_head=n_head, n_layer=n_layer,
                                         block_size=block_size, targets=None)
    jax.block_until_ready(logits)
    jax.block_until_ready(maps)

    assert logits.shape == (B, T, vocab_size)
    assert maps.shape == (n_layer * n_head * B, block_size, block_size)
    # attention rows must sum to 1 (softmax is exact in f32)
    assert jnp.allclose(jnp.sum(maps, axis=-1), 1.0, atol=1e-3)
    # causal mask: strictly-upper-triangular entries must be (numerically) zero
    triu = jnp.triu(jnp.ones((T, T), jnp.float32), k=1)[None]
    assert float(jnp.max(jnp.abs(maps) * triu)) < 1e-6
    assert loss is None

    print("KERNEL_OK")
</pallas_src>

<mosaic_0001>
module attributes {stable_mosaic.version = 11 : i64} {
  func.func @kernel(%arg0: i32, %arg1: i32, %arg2: memref<16x32xf32, #tpu.memory_space<vmem>>, %arg3: memref<1x1x32xf32, #tpu.memory_space<vmem>>, %arg4: memref<1x1x32xf32, #tpu.memory_space<vmem>>, %arg5: memref<1x32x96xbf16, #tpu.memory_space<vmem>>, %arg6: memref<1x32x32xbf16, #tpu.memory_space<vmem>>, %arg7: memref<1x1x32xf32, #tpu.memory_space<vmem>>, %arg8: memref<1x1x32xf32, #tpu.memory_space<vmem>>, %arg9: memref<1x1x32xf32, #tpu.memory_space<vmem>>, %arg10: memref<1x32x128xbf16, #tpu.memory_space<vmem>>, %arg11: memref<1x1x128xf32, #tpu.memory_space<vmem>>, %arg12: memref<1x128x32xbf16, #tpu.memory_space<vmem>>, %arg13: memref<1x1x32xf32, #tpu.memory_space<vmem>>, %arg14: memref<1x32xf32, #tpu.memory_space<vmem>>, %arg15: memref<1x32xf32, #tpu.memory_space<vmem>>, %arg16: memref<16x32xf32, #tpu.memory_space<vmem>>, %arg17: memref<1x4x2x8x8xf32, #tpu.memory_space<vmem>>, %arg18: memref<16x32xf32, #tpu.memory_space<vmem>>) attributes {dimension_semantics = [#tpu.dimension_semantics<parallel>, #tpu.dimension_semantics<arbitrary>], iteration_bounds = array<i64: 1, 2>, scalar_prefetch = 0 : i64, scratch_operands = 1 : i64, tpu.core_type = #tpu.core_type<tc>, window_params = [{transform_indices = @transform_0, window_bounds = array<i64: 16, 32>}, {transform_indices = @transform_1, window_bounds = array<i64: 1, 1, 32>}, {transform_indices = @transform_2, window_bounds = array<i64: 1, 1, 32>}, {transform_indices = @transform_3, window_bounds = array<i64: 1, 32, 96>}, {transform_indices = @transform_4, window_bounds = array<i64: 1, 32, 32>}, {transform_indices = @transform_5, window_bounds = array<i64: 1, 1, 32>}, {transform_indices = @transform_6, window_bounds = array<i64: 1, 1, 32>}, {transform_indices = @transform_7, window_bounds = array<i64: 1, 1, 32>}, {transform_indices = @transform_8, window_bounds = array<i64: 1, 32, 128>}, {transform_indices = @transform_9, window_bounds = array<i64: 1, 1, 128>}, {transform_indices = @transform_10, window_bounds = array<i64: 1, 128, 32>}, {transform_indices = @transform_11, window_bounds = array<i64: 1, 1, 32>}, {pipeline_mode = #tpu.pipeline_mode<synchronous>, transform_indices = @transform_12, window_bounds = array<i64: 1, 32>}, {pipeline_mode = #tpu.pipeline_mode<synchronous>, transform_indices = @transform_13, window_bounds = array<i64: 1, 32>}, {transform_indices = @transform_14, window_bounds = array<i64: 16, 32>}, {transform_indices = @transform_15, window_bounds = array<i64: 1, 4, 2, 8, 8>}]} {
    %c0_i32 = arith.constant 0 : i32
    %0 = arith.cmpi eq, %arg1, %c0_i32 : i32
    %1 = arith.extui %0 : i1 to i32
    %c0_i32_0 = arith.constant 0 : i32
    %2 = arith.cmpi ne, %1, %c0_i32_0 : i32
    scf.if %2 {
      %c0_63 = arith.constant 0 : index
      %c0_64 = arith.constant 0 : index
      %136 = vector.load %arg2[%c0_63, %c0_64] : memref<16x32xf32, #tpu.memory_space<vmem>>, vector<16x32xf32>
      %c0_65 = arith.constant 0 : index
      %c0_66 = arith.constant 0 : index
      %137 = vector.load %arg18[%c0_65, %c0_66] : memref<16x32xf32, #tpu.memory_space<vmem>>, vector<16x32xf32>
      tpu.vector_store %arg18[%c0_65, %c0_66], %136 {strides = array<i32>} : memref<16x32xf32, #tpu.memory_space<vmem>>, vector<16x32xf32>,
    } else {
    }
    %c0 = arith.constant 0 : index
    %c0_1 = arith.constant 0 : index
    %3 = vector.load %arg18[%c0, %c0_1] : memref<16x32xf32, #tpu.memory_space<vmem>>, vector<16x32xf32>
    %c0_2 = arith.constant 0 : index
    %c0_3 = arith.constant 0 : index
    %c0_4 = arith.constant 0 : index
    %4 = vector.load %arg3[%c0_2, %c0_3, %c0_4] : memref<1x1x32xf32, #tpu.memory_space<vmem>>, vector<1x1x32xf32>
    %5 = vector.shape_cast %4 : vector<1x1x32xf32> to vector<1x32xf32>
    %c0_5 = arith.constant 0 : index
    %c0_6 = arith.constant 0 : index
    %c0_7 = arith.constant 0 : index
    %6 = vector.load %arg4[%c0_5, %c0_6, %c0_7] : memref<1x1x32xf32, #tpu.memory_space<vmem>>, vector<1x1x32xf32>
    %7 = vector.shape_cast %6 : vector<1x1x32xf32> to vector<1x32xf32>
    %cst = arith.constant dense<0.000000e+00> : vector<16xf32>
    %8 = vector.multi_reduction <add>, %3, %cst [1] : vector<16x32xf32> to vector<16xf32>
    %9 = vector.shape_cast %8 : vector<16xf32> to vector<16x1xf32>
    %cst_8 = arith.constant 3.200000e+01 : f32
    %10 = vector.broadcast %cst_8 : f32 to vector<16x1xf32>
    %11 = arith.divf %9, %10 : vector<16x1xf32>
    %12 = vector.broadcast %11 : vector<16x1xf32> to vector<16x32xf32>
    %13 = arith.subf %3, %12 : vector<16x32xf32>
    %14 = arith.mulf %13, %13 : vector<16x32xf32>
    %cst_9 = arith.constant dense<0.000000e+00> : vector<16xf32>
    %15 = vector.multi_reduction <add>, %14, %cst_9 [1] : vector<16x32xf32> to vector<16xf32>
    %16 = vector.shape_cast %15 : vector<16xf32> to vector<16x1xf32>
    %cst_10 = arith.constant 3.200000e+01 : f32
    %17 = vector.broadcast %cst_10 : f32 to vector<16x1xf32>
    %18 = arith.divf %16, %17 : vector<16x1xf32>
    %19 = vector.broadcast %11 : vector<16x1xf32> to vector<16x32xf32>
    %20 = arith.subf %3, %19 : vector<16x32xf32>
    %cst_11 = arith.constant 9.99999974E-6 : f32
    %21 = vector.broadcast %cst_11 : f32 to vector<16x1xf32>
    %22 = arith.addf %18, %21 : vector<16x1xf32>
    %23 = math.rsqrt %22 : vector<16x1xf32>
    %24 = vector.broadcast %23 : vector<16x1xf32> to vector<16x32xf32>
    %25 = arith.mulf %20, %24 : vector<16x32xf32>
    %26 = vector.broadcast %5 : vector<1x32xf32> to vector<16x32xf32>
    %27 = arith.mulf %25, %26 : vector<16x32xf32>
    %28 = vector.broadcast %7 : vector<1x32xf32> to vector<16x32xf32>
    %29 = arith.addf %27, %28 : vector<16x32xf32>
    %30 = arith.truncf %29 : vector<16x32xf32> to vector<16x32xbf16>
    %c0_12 = arith.constant 0 : index
    %c0_13 = arith.constant 0 : index
    %c0_14 = arith.constant 0 : index
    %31 = vector.load %arg5[%c0_12, %c0_13, %c0_14] : memref<1x32x96xbf16, #tpu.memory_space<vmem>>, vector<1x32x96xbf16>
    %32 = vector.shape_cast %31 : vector<1x32x96xbf16> to vector<32x96xbf16>
    %cst_15 = arith.constant dense<0.000000e+00> : vector<16x96xf32>
    %33 = tpu.matmul %30, %32, %cst_15 {dimension_numbers = #tpu.dot_dimension_numbers<[1], [0], [0], [1], [0, 0, 1, 1], [], []>} : vector<16x32xbf16>, vector<32x96xbf16>, vector<16x96xf32> -> vector<16x96xf32>
    %34 = vector.extract_strided_slice %33 {offsets = [0, 0], sizes = [16, 32], strides = [1, 1]} : vector<16x96xf32> to vector<16x32xf32>
    %cst_16 = arith.constant 0.176776692 : f32
    %35 = vector.broadcast %cst_16 : f32 to vector<16x32xf32>
    %36 = arith.mulf %34, %35 : vector<16x32xf32>
    %37 = arith.truncf %36 : vector<16x32xf32> to vector<16x32xbf16>
    %38 = vector.extract_strided_slice %33 {offsets = [0, 32], sizes = [16, 32], strides = [1, 1]} : vector<16x96xf32> to vector<16x32xf32>
    %39 = arith.truncf %38 : vector<16x32xf32> to vector<16x32xbf16>
    %40 = vector.extract_strided_slice %33 {offsets = [0, 64], sizes = [16, 32], strides = [1, 1]} : vector<16x96xf32> to vector<16x32xf32>
    %41 = arith.truncf %40 : vector<16x32xf32> to vector<16x32xbf16>
    %42 = vector.shape_cast %37 : vector<16x32xbf16> to vector<2x8x4x8xbf16>
    %43 = tpu.transpose %42, [2, 0, 1, 3] : vector<2x8x4x8xbf16> -> vector<4x2x8x8xbf16>
    %44 = vector.shape_cast %43 : vector<4x2x8x8xbf16> to vector<8x8x8xbf16>
    %45 = vector.shape_cast %39 : vector<16x32xbf16> to vector<2x8x4x8xbf16>
    %46 = tpu.transpose %45, [2, 0, 1, 3] : vector<2x8x4x8xbf16> -> vector<4x2x8x8xbf16>
    %47 = vector.shape_cast %46 : vector<4x2x8x8xbf16> to vector<8x8x8xbf16>
    %48 = vector.shape_cast %41 : vector<16x32xbf16> to vector<2x8x4x8xbf16>
    %49 = tpu.transpose %48, [2, 0, 1, 3] : vector<2x8x4x8xbf16> -> vector<4x2x8x8xbf16>
    %50 = vector.shape_cast %49 : vector<4x2x8x8xbf16> to vector<8x8x8xbf16>
    %51 = tpu.iota {dimensions = array<i32: 0>} : vector<8x8xi32>
    %52 = tpu.iota {dimensions = array<i32: 1>} : vector<8x8xi32>
    %53 = arith.cmpi sle, %52, %51 : vector<8x8xi32>
    %54 = vector.shape_cast %53 : vector<8x8xi1> to vector<1x8x8xi1>
    "tpu.trace_start"() <{level = 10 : i32, message = "gqd,gkd->gqk"}> : () -> ()
    %cst_17 = arith.constant dense<0.000000e+00> : vector<8x8x8xf32>
    %55 = tpu.matmul %44, %47, %cst_17 {dimension_numbers = #tpu.dot_dimension_numbers<[2], [2], [1], [1], [0, 0, 0, 1, 1, 1], [0], [0]>} : vector<8x8x8xbf16>, vector<8x8x8xbf16>, vector<8x8x8xf32> -> vector<8x8x8xf32>
    %cst_18 = arith.constant -1.000000e+30 : f32
    "tpu.trace_stop"() : () -> ()
    %56 = vector.shape_cast %54 : vector<1x8x8xi1> to vector<1x8x8xi1>
    %57 = vector.broadcast %56 : vector<1x8x8xi1> to vector<8x8x8xi1>
    %58 = vector.broadcast %cst_18 : f32 to vector<8x8x8xf32>
    %59 = arith.select %57, %55, %58 : vector<8x8x8xi1>, vector<8x8x8xf32>
    %cst_19 = arith.constant dense<0xFF800000> : vector<8x8xf32>
    %60 = vector.multi_reduction <maximumf>, %59, %cst_19 [2] : vector<8x8x8xf32> to vector<8x8xf32>
    %61 = vector.shape_cast %60 : vector<8x8xf32> to vector<8x8x1xf32>
    %62 = vector.broadcast %61 : vector<8x8x1xf32> to vector<8x8x8xf32>
    %63 = arith.subf %59, %62 : vector<8x8x8xf32>
    %64 = math.exp %63 : vector<8x8x8xf32>
    %cst_20 = arith.constant dense<0.000000e+00> : vector<8x8xf32>
    %65 = vector.multi_reduction <add>, %64, %cst_20 [2] : vector<8x8x8xf32> to vector<8x8xf32>
    %66 = vector.shape_cast %65 : vector<8x8xf32> to vector<8x8x1xf32>
    %67 = vector.broadcast %66 : vector<8x8x1xf32> to vector<8x8x8xf32>
    %68 = arith.divf %64, %67 : vector<8x8x8xf32>
    %69 = vector.shape_cast %68 : vector<8x8x8xf32> to vector<4x2x8x8xf32>
    %c0_21 = arith.constant 0 : index
    %c0_22 = arith.constant 0 : index
    %c0_23 = arith.constant 0 : index
    %c0_24 = arith.constant 0 : index
    %c0_25 = arith.constant 0 : index
    %70 = vector.load %arg17[%c0_21, %c0_22, %c0_23, %c0_24, %c0_25] : memref<1x4x2x8x8xf32, #tpu.memory_space<vmem>>, vector<1x4x2x8x8xf32>
    %71 = vector.shape_cast %70 : vector<1x4x2x8x8xf32> to vector<4x2x8x8xf32>
    %72 = vector.shape_cast %69 : vector<4x2x8x8xf32> to vector<1x4x2x8x8xf32>
    tpu.vector_store %arg17[%c0_21, %c0_22, %c0_23, %c0_24, %c0_25], %72 {strides = array<i32>} : memref<1x4x2x8x8xf32, #tpu.memory_space<vmem>>, vector<1x4x2x8x8xf32>,
    %73 = arith.truncf %68 : vector<8x8x8xf32> to vector<8x8x8xbf16>
    "tpu.trace_start"() <{level = 10 : i32, message = "gqk,gkd->gqd"}> : () -> ()
    %cst_26 = arith.constant dense<0.000000e+00> : vector<8x8x8xf32>
    %74 = tpu.matmul %73, %50, %cst_26 {dimension_numbers = #tpu.dot_dimension_numbers<[2], [1], [1], [2], [0, 0, 0, 1, 1, 2], [0], [0]>} : vector<8x8x8xbf16>, vector<8x8x8xbf16>, vector<8x8x8xf32> -> vector<8x8x8xf32>
    "tpu.trace_stop"() : () -> ()
    %75 = vector.shape_cast %74 : vector<8x8x8xf32> to vector<4x2x8x8xf32>
    %76 = tpu.transpose %75, [1, 2, 0, 3] : vector<4x2x8x8xf32> -> vector<2x8x4x8xf32>
    %77 = vector.shape_cast %76 : vector<2x8x4x8xf32> to vector<16x32xf32>
    %78 = arith.truncf %77 : vector<16x32xf32> to vector<16x32xbf16>
    %c0_27 = arith.constant 0 : index
    %c0_28 = arith.constant 0 : index
    %c0_29 = arith.constant 0 : index
    %79 = vector.load %arg6[%c0_27, %c0_28, %c0_29] : memref<1x32x32xbf16, #tpu.memory_space<vmem>>, vector<1x32x32xbf16>
    %80 = vector.shape_cast %79 : vector<1x32x32xbf16> to vector<32x32xbf16>
    %cst_30 = arith.constant dense<0.000000e+00> : vector<16x32xf32>
    %81 = tpu.matmul %78, %80, %cst_30 {dimension_numbers = #tpu.dot_dimension_numbers<[1], [0], [0], [1], [0, 0, 1, 1], [], []>} : vector<16x32xbf16>, vector<32x32xbf16>, vector<16x32xf32> -> vector<16x32xf32>
    %c0_31 = arith.constant 0 : index
    %c0_32 = arith.constant 0 : index
    %c0_33 = arith.constant 0 : index
    %82 = vector.load %arg7[%c0_31, %c0_32, %c0_33] : memref<1x1x32xf32, #tpu.memory_space<vmem>>, vector<1x1x32xf32>
    %83 = vector.shape_cast %82 : vector<1x1x32xf32> to vector<1x32xf32>
    %84 = vector.broadcast %83 : vector<1x32xf32> to vector<16x32xf32>
    %85 = arith.addf %81, %84 : vector<16x32xf32>
    %86 = arith.addf %3, %85 : vector<16x32xf32>
    %c0_34 = arith.constant 0 : index
    %c0_35 = arith.constant 0 : index
    %c0_36 = arith.constant 0 : index
    %87 = vector.load %arg8[%c0_34, %c0_35, %c0_36] : memref<1x1x32xf32, #tpu.memory_space<vmem>>, vector<1x1x32xf32>
    %88 = vector.shape_cast %87 : vector<1x1x32xf32> to vector<1x32xf32>
    %c0_37 = arith.constant 0 : index
    %c0_38 = arith.constant 0 : index
    %c0_39 = arith.constant 0 : index
    %89 = vector.load %arg9[%c0_37, %c0_38, %c0_39] : memref<1x1x32xf32, #tpu.memory_space<vmem>>, vector<1x1x32xf32>
    %90 = vector.shape_cast %89 : vector<1x1x32xf32> to vector<1x32xf32>
    %cst_40 = arith.constant dense<0.000000e+00> : vector<16xf32>
    %91 = vector.multi_reduction <add>, %86, %cst_40 [1] : vector<16x32xf32> to vector<16xf32>
    %92 = vector.shape_cast %91 : vector<16xf32> to vector<16x1xf32>
    %cst_41 = arith.constant 3.200000e+01 : f32
    %93 = vector.broadcast %cst_41 : f32 to vector<16x1xf32>
    %94 = arith.divf %92, %93 : vector<16x1xf32>
    %95 = vector.broadcast %94 : vector<16x1xf32> to vector<16x32xf32>
    %96 = arith.subf %86, %95 : vector<16x32xf32>
    %97 = arith.mulf %96, %96 : vector<16x32xf32>
    %cst_42 = arith.constant dense<0.000000e+00> : vector<16xf32>
    %98 = vector.multi_reduction <add>, %97, %cst_42 [1] : vector<16x32xf32> to vector<16xf32>
    %99 = vector.shape_cast %98 : vector<16xf32> to vector<16x1xf32>
    %cst_43 = arith.constant 3.200000e+01 : f32
    %100 = vector.broadcast %cst_43 : f32 to vector<16x1xf32>
    %101 = arith.divf %99, %100 : vector<16x1xf32>
    %102 = vector.broadcast %94 : vector<16x1xf32> to vector<16x32xf32>
    %103 = arith.subf %86, %102 : vector<16x32xf32>
    %cst_44 = arith.constant 9.99999974E-6 : f32
    %104 = vector.broadcast %cst_44 : f32 to vector<16x1xf32>
    %105 = arith.addf %101, %104 : vector<16x1xf32>
    %106 = math.rsqrt %105 : vector<16x1xf32>
    %107 = vector.broadcast %106 : vector<16x1xf32> to vector<16x32xf32>
    %108 = arith.mulf %103, %107 : vector<16x32xf32>
    %109 = vector.broadcast %88 : vector<1x32xf32> to vector<16x32xf32>
    %110 = arith.mulf %108, %109 : vector<16x32xf32>
    %111 = vector.broadcast %90 : vector<1x32xf32> to vector<16x32xf32>
    %112 = arith.addf %110, %111 : vector<16x32xf32>
    %113 = arith.truncf %112 : vector<16x32xf32> to vector<16x32xbf16>
    %c0_45 = arith.constant 0 : index
    %c0_46 = arith.constant 0 : index
    %c0_47 = arith.constant 0 : index
    %114 = vector.load %arg10[%c0_45, %c0_46, %c0_47] : memref<1x32x128xbf16, #tpu.memory_space<vmem>>, vector<1x32x128xbf16>
    %115 = vector.shape_cast %114 : vector<1x32x128xbf16> to vector<32x128xbf16>
    %cst_48 = arith.constant dense<0.000000e+00> : vector<16x128xf32>
    %116 = tpu.matmul %113, %115, %cst_48 {dimension_numbers = #tpu.dot_dimension_numbers<[1], [0], [0], [1], [0, 0, 1, 1], [], []>} : vector<16x32xbf16>, vector<32x128xbf16>, vector<16x128xf32> -> vector<16x128xf32>
    %c0_49 = arith.constant 0 : index
    %c0_50 = arith.constant 0 : index
    %c0_51 = arith.constant 0 : index
    %117 = vector.load %arg11[%c0_49, %c0_50, %c0_51] : memref<1x1x128xf32, #tpu.memory_space<vmem>>, vector<1x1x128xf32>
    %118 = vector.shape_cast %117 : vector<1x1x128xf32> to vector<1x128xf32>
    %119 = vector.broadcast %118 : vector<1x128xf32> to vector<16x128xf32>
    %120 = arith.addf %116, %119 : vector<16x128xf32>
    %cst_52 = arith.constant 0.000000e+00 : f32
    %121 = vector.broadcast %cst_52 : f32 to vector<16x128xf32>
    %122 = arith.maximumf %120, %121 : vector<16x128xf32>
    %123 = arith.truncf %122 : vector<16x128xf32> to vector<16x128xbf16>
    %c0_53 = arith.constant 0 : index
    %c0_54 = arith.constant 0 : index
    %c0_55 = arith.constant 0 : index
    %124 = vector.load %arg12[%c0_53, %c0_54, %c0_55] : memref<1x128x32xbf16, #tpu.memory_space<vmem>>, vector<1x128x32xbf16>
    %125 = vector.shape_cast %124 : vector<1x128x32xbf16> to vector<128x32xbf16>
    %cst_56 = arith.constant dense<0.000000e+00> : vector<16x32xf32>
    %126 = tpu.matmul %123, %125, %cst_56 {dimension_numbers = #tpu.dot_dimension_numbers<[1], [0], [0], [1], [0, 0, 1, 1], [], []>} : vector<16x128xbf16>, vector<128x32xbf16>, vector<16x32xf32> -> vector<16x32xf32>
    %c0_57 = arith.constant 0 : index
    %c0_58 = arith.constant 0 : index
    %c0_59 = arith.constant 0 : index
    %127 = vector.load %arg13[%c0_57, %c0_58, %c0_59] : memref<1x1x32xf32, #tpu.memory_space<vmem>>, vector<1x1x32xf32>
    %128 = vector.shape_cast %127 : vector<1x1x32xf32> to vector<1x32xf32>
    %129 = vector.broadcast %128 : vector<1x32xf32> to vector<16x32xf32>
    %130 = arith.addf %126, %129 : vector<16x32xf32>
    %131 = arith.addf %86, %130 : vector<16x32xf32>
    %c0_60 = arith.constant 0 : index
    %c0_61 = arith.constant 0 : index
    %132 = vector.load %arg18[%c0_60, %c0_61] : memref<16x32xf32, #tpu.memory_space<vmem>>, vector<16x32xf32>
    tpu.vector_store %arg18[%c0_60, %c0_61], %131 {strides = array<i32>} : memref<16x32xf32, #tpu.memory_space<vmem>>, vector<16x32xf32>,
    %c1_i32 = arith.constant 1 : i32
    %133 = arith.cmpi eq, %arg1, %c1_i32 : i32
    %134 = arith.extui %133 : i1 to i32
    %c0_i32_62 = arith.constant 0 : i32
    %135 = arith.cmpi ne, %134, %c0_i32_62 : i32
    scf.if %135 {
      %c0_63 = arith.constant 0 : index
      %c0_64 = arith.constant 0 : index
      %136 = vector.load %arg14[%c0_63, %c0_64] : memref<1x32xf32, #tpu.memory_space<vmem>>, vector<1x32xf32>
      %c0_65 = arith.constant 0 : index
      %c0_66 = arith.constant 0 : index
      %137 = vector.load %arg15[%c0_65, %c0_66] : memref<1x32xf32, #tpu.memory_space<vmem>>, vector<1x32xf32>
      %cst_67 = arith.constant dense<0.000000e+00> : vector<16xf32>
      %138 = vector.multi_reduction <add>, %131, %cst_67 [1] : vector<16x32xf32> to vector<16xf32>
      %139 = vector.shape_cast %138 : vector<16xf32> to vector<16x1xf32>
      %cst_68 = arith.constant 3.200000e+01 : f32
      %140 = vector.broadcast %cst_68 : f32 to vector<16x1xf32>
      %141 = arith.divf %139, %140 : vector<16x1xf32>
      %142 = vector.broadcast %141 : vector<16x1xf32> to vector<16x32xf32>
      %143 = arith.subf %131, %142 : vector<16x32xf32>
      %144 = arith.mulf %143, %143 : vector<16x32xf32>
      %cst_69 = arith.constant dense<0.000000e+00> : vector<16xf32>
      %145 = vector.multi_reduction <add>, %144, %cst_69 [1] : vector<16x32xf32> to vector<16xf32>
      %146 = vector.shape_cast %145 : vector<16xf32> to vector<16x1xf32>
      %cst_70 = arith.constant 3.200000e+01 : f32
      %147 = vector.broadcast %cst_70 : f32 to vector<16x1xf32>
      %148 = arith.divf %146, %147 : vector<16x1xf32>
      %149 = vector.broadcast %141 : vector<16x1xf32> to vector<16x32xf32>
      %150 = arith.subf %131, %149 : vector<16x32xf32>
      %cst_71 = arith.constant 9.99999974E-6 : f32
      %151 = vector.broadcast %cst_71 : f32 to vector<16x1xf32>
      %152 = arith.addf %148, %151 : vector<16x1xf32>
      %153 = math.rsqrt %152 : vector<16x1xf32>
      %154 = vector.broadcast %153 : vector<16x1xf32> to vector<16x32xf32>
      %155 = arith.mulf %150, %154 : vector<16x32xf32>
      %156 = vector.broadcast %136 : vector<1x32xf32> to vector<16x32xf32>
      %157 = arith.mulf %155, %156 : vector<16x32xf32>
      %158 = vector.broadcast %137 : vector<1x32xf32> to vector<16x32xf32>
      %159 = arith.addf %157, %158 : vector<16x32xf32>
      %c0_72 = arith.constant 0 : index
      %c0_73 = arith.constant 0 : index
      %160 = vector.load %arg16[%c0_72, %c0_73] : memref<16x32xf32, #tpu.memory_space<vmem>>, vector<16x32xf32>
      tpu.vector_store %arg16[%c0_72, %c0_73], %159 {strides = array<i32>} : memref<16x32xf32, #tpu.memory_space<vmem>>, vector<16x32xf32>,
    } else {
    }
    return
  }
  func.func @transform_0(%arg0: i32, %arg1: i32) -> (i32, i32) {
    %c0_i32 = arith.constant 0 : i32
    %c0_i32_0 = arith.constant 0 : i32
    return %arg0, %c0_i32 : i32, i32
  }
  func.func @transform_1(%arg0: i32, %arg1: i32) -> (i32, i32, i32) {
    %c0_i32 = arith.constant 0 : i32
    %c0_i32_0 = arith.constant 0 : i32
    %c0_i32_1 = arith.constant 0 : i32
    return %arg1, %c0_i32, %c0_i32_0 : i32, i32, i32
  }
  func.func @transform_2(%arg0: i32, %arg1: i32) -> (i32, i32, i32) {
    %c0_i32 = arith.constant 0 : i32
    %c0_i32_0 = arith.constant 0 : i32
    %c0_i32_1 = arith.constant 0 : i32
    return %arg1, %c0_i32, %c0_i32_0 : i32, i32, i32
  }
  func.func @transform_3(%arg0: i32, %arg1: i32) -> (i32, i32, i32) {
    %c0_i32 = arith.constant 0 : i32
    %c0_i32_0 = arith.constant 0 : i32
    %c0_i32_1 = arith.constant 0 : i32
    return %arg1, %c0_i32, %c0_i32_0 : i32, i32, i32
  }
  func.func @transform_4(%arg0: i32, %arg1: i32) -> (i32, i32, i32) {
    %c0_i32 = arith.constant 0 : i32
    %c0_i32_0 = arith.constant 0 : i32
    %c0_i32_1 = arith.constant 0 : i32
    return %arg1, %c0_i32, %c0_i32_0 : i32, i32, i32
  }
  func.func @transform_5(%arg0: i32, %arg1: i32) -> (i32, i32, i32) {
    %c0_i32 = arith.constant 0 : i32
    %c0_i32_0 = arith.constant 0 : i32
    %c0_i32_1 = arith.constant 0 : i32
    return %arg1, %c0_i32, %c0_i32_0 : i32, i32, i32
  }
  func.func @transform_6(%arg0: i32, %arg1: i32) -> (i32, i32, i32) {
    %c0_i32 = arith.constant 0 : i32
    %c0_i32_0 = arith.constant 0 : i32
    %c0_i32_1 = arith.constant 0 : i32
    return %arg1, %c0_i32, %c0_i32_0 : i32, i32, i32
  }
  func.func @transform_7(%arg0: i32, %arg1: i32) -> (i32, i32, i32) {
    %c0_i32 = arith.constant 0 : i32
    %c0_i32_0 = arith.constant 0 : i32
    %c0_i32_1 = arith.constant 0 : i32
    return %arg1, %c0_i32, %c0_i32_0 : i32, i32, i32
  }
  func.func @transform_8(%arg0: i32, %arg1: i32) -> (i32, i32, i32) {
    %c0_i32 = arith.constant 0 : i32
    %c0_i32_0 = arith.constant 0 : i32
    %c0_i32_1 = arith.constant 0 : i32
    return %arg1, %c0_i32, %c0_i32_0 : i32, i32, i32
  }
  func.func @transform_9(%arg0: i32, %arg1: i32) -> (i32, i32, i32) {
    %c0_i32 = arith.constant 0 : i32
    %c0_i32_0 = arith.constant 0 : i32
    %c0_i32_1 = arith.constant 0 : i32
    return %arg1, %c0_i32, %c0_i32_0 : i32, i32, i32
  }
  func.func @transform_10(%arg0: i32, %arg1: i32) -> (i32, i32, i32) {
    %c0_i32 = arith.constant 0 : i32
    %c0_i32_0 = arith.constant 0 : i32
    %c0_i32_1 = arith.constant 0 : i32
    return %arg1, %c0_i32, %c0_i32_0 : i32, i32, i32
  }
  func.func @transform_11(%arg0: i32, %arg1: i32) -> (i32, i32, i32) {
    %c0_i32 = arith.constant 0 : i32
    %c0_i32_0 = arith.constant 0 : i32
    %c0_i32_1 = arith.constant 0 : i32
    return %arg1, %c0_i32, %c0_i32_0 : i32, i32, i32
  }
  func.func @transform_12(%arg0: i32, %arg1: i32) -> (i32, i32) {
    %c0_i32 = arith.constant 0 : i32
    %c0_i32_0 = arith.constant 0 : i32
    %c0_i32_1 = arith.constant 0 : i32
    return %c0_i32, %c0_i32_0 : i32, i32
  }
  func.func @transform_13(%arg0: i32, %arg1: i32) -> (i32, i32) {
    %c0_i32 = arith.constant 0 : i32
    %c0_i32_0 = arith.constant 0 : i32
    %c0_i32_1 = arith.constant 0 : i32
    return %c0_i32, %c0_i32_0 : i32, i32
  }
  func.func @transform_14(%arg0: i32, %arg1: i32) -> (i32, i32) {
    %c0_i32 = arith.constant 0 : i32
    %c0_i32_0 = arith.constant 0 : i32
    return %arg0, %c0_i32 : i32, i32
  }
  func.func @transform_15(%arg0: i32, %arg1: i32) -> (i32, i32, i32, i32, i32) {
    %c0_i32 = arith.constant 0 : i32
    %c0_i32_0 = arith.constant 0 : i32
    %c0_i32_1 = arith.constant 0 : i32
    %c0_i32_2 = arith.constant 0 : i32
    return %arg1, %c0_i32, %arg0, %c0_i32_0, %c0_i32_1 : i32, i32, i32, i32, i32
  }
}

</mosaic_0001>

<llo_original>
// kernel: tpu_custom_call.1
$region0: #{tpu_custom_call.1}
  #allocation0 [shape = 'u32[]', space=smem, size = 0x4, offset = 0x4, fixed_abs, tag = 'smem constant byte address 0x4 - core index']
  #allocation1 [shape = 'u32[144,128]{1,0:T(1,128)}', space=vmem, size = 0x12000, scoped, tag = 'internal scratch']
  #allocation2 [shape = 'f32[16,32]{1,0:T(8,128)}', space=vmem, size = 0x2000, scoped, tag = 'scratch operand']
  %s0 = inlined_call_operand.vmem [shape: f32[16,32], index: 0, kind: input, shape index: {}]
  %s1 = inlined_call_operand.vmem [shape: f32[2,1,32], index: 1, kind: input, shape index: {}]
  %s2 = inlined_call_operand.vmem [shape: f32[2,1,32], index: 2, kind: input, shape index: {}]
  %s3 = inlined_call_operand.vmem [shape: bf16[2,32,96], index: 3, kind: input, shape index: {}]
  %s4 = inlined_call_operand.vmem [shape: bf16[2,32,32], index: 4, kind: input, shape index: {}]
  %s5 = inlined_call_operand.vmem [shape: f32[2,1,32], index: 5, kind: input, shape index: {}]
  %s6 = inlined_call_operand.vmem [shape: f32[2,1,32], index: 6, kind: input, shape index: {}]
  %s7 = inlined_call_operand.vmem [shape: f32[2,1,32], index: 7, kind: input, shape index: {}]
  %s8 = inlined_call_operand.vmem [shape: bf16[2,32,128], index: 8, kind: input, shape index: {}]
  %s9 = inlined_call_operand.vmem [shape: f32[2,1,128], index: 9, kind: input, shape index: {}]
  %s10 = inlined_call_operand.vmem [shape: bf16[2,128,32], index: 10, kind: input, shape index: {}]
  %s11 = inlined_call_operand.vmem [shape: f32[2,1,32], index: 11, kind: input, shape index: {}]
  %s12 = inlined_call_operand.vmem [shape: f32[1,32], index: 12, kind: input, shape index: {}]
  %s13 = inlined_call_operand.vmem [shape: f32[1,32], index: 13, kind: input, shape index: {}]
  %s14 = inlined_call_operand.hbm [shape: f32[16,32], index: 14, kind: output, shape index: {0}]
  %s15 = inlined_call_operand.hbm [shape: f32[2,4,2,8,8], index: 15, kind: output, shape index: {1}]
  %16 = xla_tuple %s14, %s15
  %s17 = sld [smem:[#allocation0]]
  $region105: #{tpu_custom_call.1} parent=0
    _
  %s19 = ssub.s32 1, %s17
  %s20 = scalar_select 0, %s19, %s17
  $region1: #{tpu_custom_call.1} parent=0
    #allocation3 [shape = 'u8[8192]{0}', space=vmem, size = 0x2000, scoped, tag = 'output window, operand 0, single buffered']
    #allocation4 [shape = 's32[2]{0}', space=sflag, size = 0x8, scoped, tag = 'scoped memory for tpu_custom_call.1']
    #allocation5 [shape = 'u8[65536]{0}', space=vmem, size = 0x10000, scoped, tag = 'output window, operand 1']
    #allocation6 [shape = 's32[2]{0}', space=sflag, size = 0x8, scoped, tag = 'scoped memory for tpu_custom_call.1']
    %21 = vsyncpa [#allocation4], 0
    %22 = vsyncpa [#allocation6], 0
    %s23 = scalar_lea.sflag [#allocation6], 1
    %24 = vsyncpa %s23, 0
    loop: start=0, step=1, limit=4
    $region2: #{tpu_custom_call.1} parent=1 // loop_pre_header
      _
    $region3: #{tpu_custom_call.1} parent=1 // loop_header
      %s26 = sphi 0, %s30
      %p27 = scmp.ge.s32.totalorder %s26, 4
      %s33 = sphi 0, %s45
      %s34 = sphi 0, %s41
      %s35 = sphi 0, %s33
      %s36 = sphi 0, %s34
      %s37 = sphi 0, %s35
      %s38 = sphi 0, %s36
      %s48 = sphi 0, %s50
      %s51 = sphi 0, %s48
      %s52 = sphi 0, %s51
      %s68 = sphi 0, %s52
      %s74 = sphi 0, %s76
      %s77 = sphi 0, %s74
      %s78 = sphi 0, %s77
      %s94 = sphi 0, %s78
      %s100 = sphi 0, %s102
      %s103 = sphi 0, %s100
      %s104 = sphi 0, %s103
      %s120 = sphi 0, %s104
      %s126 = sphi 0, %s128
      %s129 = sphi 0, %s126
      %s130 = sphi 0, %s129
      %s146 = sphi 0, %s130
      %s152 = sphi 0, %s154
      %s155 = sphi 0, %s152
      %s156 = sphi 0, %s155
      %s172 = sphi 0, %s156
      %s178 = sphi 0, %s180
      %s181 = sphi 0, %s178
      %s182 = sphi 0, %s181
      %s198 = sphi 0, %s182
      %s204 = sphi 0, %s206
      %s207 = sphi 0, %s204
      %s208 = sphi 0, %s207
      %s224 = sphi 0, %s208
      %s230 = sphi 0, %s232
      %s233 = sphi 0, %s230
      %s234 = sphi 0, %s233
      %s250 = sphi 0, %s234
      %s256 = sphi 0, %s258
      %s259 = sphi 0, %s256
      %s260 = sphi 0, %s259
      %s276 = sphi 0, %s260
      %s282 = sphi 0, %s284
      %s285 = sphi 0, %s282
      %s286 = sphi 0, %s285
      %s302 = sphi 0, %s286
      %s308 = sphi 0, %s310
      %s311 = sphi 0, %s308
      %s312 = sphi 0, %s311
      %s328 = sphi 0, %s312
      %s334 = sphi 0, %s336
      %s337 = sphi 0, %s334
      %s338 = sphi 0, %s337
      %s354 = sphi 0, %s338
      %s358 = sphi 0, %s358
      %s360 = sphi 0, %s358
      %s361 = sphi 0, %s360
      %s375 = sphi 0, %s361
      %s379 = sphi 0, %s379
      %s381 = sphi 0, %s379
      %s382 = sphi 0, %s381
      %s396 = sphi 0, %s382
      %s402 = sphi 0, %s404
      %s405 = sphi 0, %s402
      %s406 = sphi 0, %s405
      %s422 = sphi 0, %s406
      %s430 = sphi 0, %s432
      %s433 = sphi 0, %s430
      %s434 = sphi 0, %s433
      %s450 = sphi 0, %s434
    $region4: #{tpu_custom_call.1} parent=1 // loop_header_branch
      %29 = sbr.rel (%p27) target = $region8
    $region5: #{tpu_custom_call.1} parent=1 // loop_body
      %s31 = ssub.s32 %s26, 1
      %s32 = ssub.s32 %s26, 2
      %s39 = sadd.s32 1, %s34
      %p40 = scmp.ge.s32.totalorder %s39, 2
      %s41 = scalar_select %p40, 0, %s39
      %s42 = sadd.s32 1, %s33
      %s43 = scalar_select %p40, %s42, %s33
      %p44 = scmp.ge.s32.totalorder %s43, 1
      %s45 = scalar_select %p44, 0, %s43
      %s46 = ssub.s32 %s33, %s45
      %p47 = scmp.eq.s32.totalorder %s46, 0
      %s49 = sadd.s32 %s48, 1
      %s50 = scalar_select %p47, %s48, %s49
      %p53 = pneg %p47
      %p54 = scmp.eq.s32.totalorder %s26, 1
      %p55 = por %p53, %p54
      %p56 = scmp.ne.s32.totalorder %s48, %s51
      %p57 = scmp.eq.s32.totalorder %s26, 0
      %p58 = por %p56, %p57
      %p59 = scmp.ne.s32.totalorder %s48, %s51
      %p60 = scmp.eq.s32.totalorder %s31, 1
      %p61 = por %p59, %p60
      %p62 = scmp.ne.s32.totalorder %s51, %s52
      %p63 = scmp.eq.s32.totalorder %s31, 0
      %p64 = por %p62, %p63
      %p65 = scmp.ne.s32.totalorder %s51, %s52
      %p66 = scmp.eq.s32.totalorder %s32, 1
      %p67 = por %p65, %p66
      %p69 = scmp.ne.s32.totalorder %s52, %s68
      %p70 = scmp.eq.s32.totalorder %s32, 0
      %p71 = por %p69, %p70
      %s72 = ssub.s32 %s34, %s41
      %p73 = scmp.eq.s32.totalorder %s72, 0
      %s75 = sadd.s32 %s74, 1
      %s76 = scalar_select %p73, %s74, %s75
      %p79 = pneg %p73
      %p80 = scmp.eq.s32.totalorder %s26, 1
      %p81 = por %p79, %p80
      %p82 = scmp.ne.s32.totalorder %s74, %s77
      %p83 = scmp.eq.s32.totalorder %s26, 0
      %p84 = por %p82, %p83
      %p85 = scmp.ne.s32.totalorder %s74, %s77
      %p86 = scmp.eq.s32.totalorder %s31, 1
      %p87 = por %p85, %p86
      %p88 = scmp.ne.s32.totalorder %s77, %s78
      %p89 = scmp.eq.s32.totalorder %s31, 0
      %p90 = por %p88, %p89
      %p91 = scmp.ne.s32.totalorder %s77, %s78
      %p92 = scmp.eq.s32.totalorder %s32, 1
      %p93 = por %p91, %p92
      %p95 = scmp.ne.s32.totalorder %s78, %s94
      %p96 = scmp.eq.s32.totalorder %s32, 0
      %p97 = por %p95, %p96
      %s98 = ssub.s32 %s34, %s41
      %p99 = scmp.eq.s32.totalorder %s98, 0
      %s101 = sadd.s32 %s100, 1
      %s102 = scalar_select %p99, %s100, %s101
      %p105 = pneg %p99
      %p106 = scmp.eq.s32.totalorder %s26, 1
      %p107 = por %p105, %p106
      %p108 = scmp.ne.s32.totalorder %s100, %s103
      %p109 = scmp.eq.s32.totalorder %s26, 0
      %p110 = por %p108, %p109
      %p111 = scmp.ne.s32.totalorder %s100, %s103
      %p112 = scmp.eq.s32.totalorder %s31, 1
      %p113 = por %p111, %p112
      %p114 = scmp.ne.s32.totalorder %s103, %s104
      %p115 = scmp.eq.s32.totalorder %s31, 0
      %p116 = por %p114, %p115
      %p117 = scmp.ne.s32.totalorder %s103, %s104
      %p118 = scmp.eq.s32.totalorder %s32, 1
      %p119 = por %p117, %p118
      %p121 = scmp.ne.s32.totalorder %s104, %s120
      %p122 = scmp.eq.s32.totalorder %s32, 0
      %p123 = por %p121, %p122
      %s124 = ssub.s32 %s34, %s41
      %p125 = scmp.eq.s32.totalorder %s124, 0
      %s127 = sadd.s32 %s126, 1
      %s128 = scalar_select %p125, %s126, %s127
      %p131 = pneg %p125
      %p132 = scmp.eq.s32.totalorder %s26, 1
      %p133 = por %p131, %p132
      %p134 = scmp.ne.s32.totalorder %s126, %s129
      %p135 = scmp.eq.s32.totalorder %s26, 0
      %p136 = por %p134, %p135
      %p137 = scmp.ne.s32.totalorder %s126, %s129
      %p138 = scmp.eq.s32.totalorder %s31, 1
      %p139 = por %p137, %p138
      %p140 = scmp.ne.s32.totalorder %s129, %s130
      %p141 = scmp.eq.s32.totalorder %s31, 0
      %p142 = por %p140, %p141
      %p143 = scmp.ne.s32.totalorder %s129, %s130
      %p144 = scmp.eq.s32.totalorder %s32, 1
      %p145 = por %p143, %p144
      %p147 = scmp.ne.s32.totalorder %s130, %s146
      %p148 = scmp.eq.s32.totalorder %s32, 0
      %p149 = por %p147, %p148
      %s150 = ssub.s32 %s34, %s41
      %p151 = scmp.eq.s32.totalorder %s150, 0
      %s153 = sadd.s32 %s152, 1
      %s154 = scalar_select %p151, %s152, %s153
      %p157 = pneg %p151
      %p158 = scmp.eq.s32.totalorder %s26, 1
      %p159 = por %p157, %p158
      %p160 = scmp.ne.s32.totalorder %s152, %s155
      %p161 = scmp.eq.s32.totalorder %s26, 0
      %p162 = por %p160, %p161
      %p163 = scmp.ne.s32.totalorder %s152, %s155
      %p164 = scmp.eq.s32.totalorder %s31, 1
      %p165 = por %p163, %p164
      %p166 = scmp.ne.s32.totalorder %s155, %s156
      %p167 = scmp.eq.s32.totalorder %s31, 0
      %p168 = por %p166, %p167
      %p169 = scmp.ne.s32.totalorder %s155, %s156
      %p170 = scmp.eq.s32.totalorder %s32, 1
      %p171 = por %p169, %p170
      %p173 = scmp.ne.s32.totalorder %s156, %s172
      %p174 = scmp.eq.s32.totalorder %s32, 0
      %p175 = por %p173, %p174
      %s176 = ssub.s32 %s34, %s41
      %p177 = scmp.eq.s32.totalorder %s176, 0
      %s179 = sadd.s32 %s178, 1
      %s180 = scalar_select %p177, %s178, %s179
      %p183 = pneg %p177
      %p184 = scmp.eq.s32.totalorder %s26, 1
      %p185 = por %p183, %p184
      %p186 = scmp.ne.s32.totalorder %s178, %s181
      %p187 = scmp.eq.s32.totalorder %s26, 0
      %p188 = por %p186, %p187
      %p189 = scmp.ne.s32.totalorder %s178, %s181
      %p190 = scmp.eq.s32.totalorder %s31, 1
      %p191 = por %p189, %p190
      %p192 = scmp.ne.s32.totalorder %s181, %s182
      %p193 = scmp.eq.s32.totalorder %s31, 0
      %p194 = por %p192, %p193
      %p195 = scmp.ne.s32.totalorder %s181, %s182
      %p196 = scmp.eq.s32.totalorder %s32, 1
      %p197 = por %p195, %p196
      %p199 = scmp.ne.s32.totalorder %s182, %s198
      %p200 = scmp.eq.s32.totalorder %s32, 0
      %p201 = por %p199, %p200
      %s202 = ssub.s32 %s34, %s41
      %p203 = scmp.eq.s32.totalorder %s202, 0
      %s205 = sadd.s32 %s204, 1
      %s206 = scalar_select %p203, %s204, %s205
      %p209 = pneg %p203
      %p210 = scmp.eq.s32.totalorder %s26, 1
      %p211 = por %p209, %p210
      %p212 = scmp.ne.s32.totalorder %s204, %s207
      %p213 = scmp.eq.s32.totalorder %s26, 0
      %p214 = por %p212, %p213
      %p215 = scmp.ne.s32.totalorder %s204, %s207
      %p216 = scmp.eq.s32.totalorder %s31, 1
      %p217 = por %p215, %p216
      %p218 = scmp.ne.s32.totalorder %s207, %s208
      %p219 = scmp.eq.s32.totalorder %s31, 0
      %p220 = por %p218, %p219
      %p221 = scmp.ne.s32.totalorder %s207, %s208
      %p222 = scmp.eq.s32.totalorder %s32, 1
      %p223 = por %p221, %p222
      %p225 = scmp.ne.s32.totalorder %s208, %s224
      %p226 = scmp.eq.s32.totalorder %s32, 0
      %p227 = por %p225, %p226
      %s228 = ssub.s32 %s34, %s41
      %p229 = scmp.eq.s32.totalorder %s228, 0
      %s231 = sadd.s32 %s230, 1
      %s232 = scalar_select %p229, %s230, %s231
      %p235 = pneg %p229
      %p236 = scmp.eq.s32.totalorder %s26, 1
      %p237 = por %p235, %p236
      %p238 = scmp.ne.s32.totalorder %s230, %s233
      %p239 = scmp.eq.s32.totalorder %s26, 0
      %p240 = por %p238, %p239
      %p241 = scmp.ne.s32.totalorder %s230, %s233
      %p242 = scmp.eq.s32.totalorder %s31, 1
      %p243 = por %p241, %p242
      %p244 = scmp.ne.s32.totalorder %s233, %s234
      %p245 = scmp.eq.s32.totalorder %s31, 0
      %p246 = por %p244, %p245
      %p247 = scmp.ne.s32.totalorder %s233, %s234
      %p248 = scmp.eq.s32.totalorder %s32, 1
      %p249 = por %p247, %p248
      %p251 = scmp.ne.s32.totalorder %s234, %s250
      %p252 = scmp.eq.s32.totalorder %s32, 0
      %p253 = por %p251, %p252
      %s254 = ssub.s32 %s34, %s41
      %p255 = scmp.eq.s32.totalorder %s254, 0
      %s257 = sadd.s32 %s256, 1
      %s258 = scalar_select %p255, %s256, %s257
      %p261 = pneg %p255
      %p262 = scmp.eq.s32.totalorder %s26, 1
      %p263 = por %p261, %p262
      %p264 = scmp.ne.s32.totalorder %s256, %s259
      %p265 = scmp.eq.s32.totalorder %s26, 0
      %p266 = por %p264, %p265
      %p267 = scmp.ne.s32.totalorder %s256, %s259
      %p268 = scmp.eq.s32.totalorder %s31, 1
      %p269 = por %p267, %p268
      %p270 = scmp.ne.s32.totalorder %s259, %s260
      %p271 = scmp.eq.s32.totalorder %s31, 0
      %p272 = por %p270, %p271
      %p273 = scmp.ne.s32.totalorder %s259, %s260
      %p274 = scmp.eq.s32.totalorder %s32, 1
      %p275 = por %p273, %p274
      %p277 = scmp.ne.s32.totalorder %s260, %s276
      %p278 = scmp.eq.s32.totalorder %s32, 0
      %p279 = por %p277, %p278
      %s280 = ssub.s32 %s34, %s41
      %p281 = scmp.eq.s32.totalorder %s280, 0
      %s283 = sadd.s32 %s282, 1
      %s284 = scalar_select %p281, %s282, %s283
      %p287 = pneg %p281
      %p288 = scmp.eq.s32.totalorder %s26, 1
      %p289 = por %p287, %p288
      %p290 = scmp.ne.s32.totalorder %s282, %s285
      %p291 = scmp.eq.s32.totalorder %s26, 0
      %p292 = por %p290, %p291
      %p293 = scmp.ne.s32.totalorder %s282, %s285
      %p294 = scmp.eq.s32.totalorder %s31, 1
      %p295 = por %p293, %p294
      %p296 = scmp.ne.s32.totalorder %s285, %s286
      %p297 = scmp.eq.s32.totalorder %s31, 0
      %p298 = por %p296, %p297
      %p299 = scmp.ne.s32.totalorder %s285, %s286
      %p300 = scmp.eq.s32.totalorder %s32, 1
      %p301 = por %p299, %p300
      %p303 = scmp.ne.s32.totalorder %s286, %s302
      %p304 = scmp.eq.s32.totalorder %s32, 0
      %p305 = por %p303, %p304
      %s306 = ssub.s32 %s34, %s41
      %p307 = scmp.eq.s32.totalorder %s306, 0
      %s309 = sadd.s32 %s308, 1
      %s310 = scalar_select %p307, %s308, %s309
      %p313 = pneg %p307
      %p314 = scmp.eq.s32.totalorder %s26, 1
      %p315 = por %p313, %p314
      %p316 = scmp.ne.s32.totalorder %s308, %s311
      %p317 = scmp.eq.s32.totalorder %s26, 0
      %p318 = por %p316, %p317
      %p319 = scmp.ne.s32.totalorder %s308, %s311
      %p320 = scmp.eq.s32.totalorder %s31, 1
      %p321 = por %p319, %p320
      %p322 = scmp.ne.s32.totalorder %s311, %s312
      %p323 = scmp.eq.s32.totalorder %s31, 0
      %p324 = por %p322, %p323
      %p325 = scmp.ne.s32.totalorder %s311, %s312
      %p326 = scmp.eq.s32.totalorder %s32, 1
      %p327 = por %p325, %p326
      %p329 = scmp.ne.s32.totalorder %s312, %s328
      %p330 = scmp.eq.s32.totalorder %s32, 0
      %p331 = por %p329, %p330
      %s332 = ssub.s32 %s34, %s41
      %p333 = scmp.eq.s32.totalorder %s332, 0
      %s335 = sadd.s32 %s334, 1
      %s336 = scalar_select %p333, %s334, %s335
      %p339 = pneg %p333
      %p340 = scmp.eq.s32.totalorder %s26, 1
      %p341 = por %p339, %p340
      %p342 = scmp.ne.s32.totalorder %s334, %s337
      %p343 = scmp.eq.s32.totalorder %s26, 0
      %p344 = por %p342, %p343
      %p345 = scmp.ne.s32.totalorder %s334, %s337
      %p346 = scmp.eq.s32.totalorder %s31, 1
      %p347 = por %p345, %p346
      %p348 = scmp.ne.s32.totalorder %s337, %s338
      %p349 = scmp.eq.s32.totalorder %s31, 0
      %p350 = por %p348, %p349
      %p351 = scmp.ne.s32.totalorder %s337, %s338
      %p352 = scmp.eq.s32.totalorder %s32, 1
      %p353 = por %p351, %p352
      %p355 = scmp.ne.s32.totalorder %s338, %s354
      %p356 = scmp.eq.s32.totalorder %s32, 0
      %p357 = por %p355, %p356
      %s359 = sadd.s32 %s358, 1
      %p362 = scmp.eq.s32.totalorder %s26, 1
      %p363 = scmp.ne.s32.totalorder %s358, %s360
      %p364 = scmp.eq.s32.totalorder %s26, 0
      %p365 = por %p363, %p364
      %p366 = scmp.ne.s32.totalorder %s358, %s360
      %p367 = scmp.eq.s32.totalorder %s31, 1
      %p368 = por %p366, %p367
      %p369 = scmp.ne.s32.totalorder %s360, %s361
      %p370 = scmp.eq.s32.totalorder %s31, 0
      %p371 = por %p369, %p370
      %p372 = scmp.ne.s32.totalorder %s360, %s361
      %p373 = scmp.eq.s32.totalorder %s32, 1
      %p374 = por %p372, %p373
      %p376 = scmp.ne.s32.totalorder %s361, %s375
      %p377 = scmp.eq.s32.totalorder %s32, 0
      %p378 = por %p376, %p377
      %s380 = sadd.s32 %s379, 1
      %p383 = scmp.eq.s32.totalorder %s26, 1
      %p384 = scmp.ne.s32.totalorder %s379, %s381
      %p385 = scmp.eq.s32.totalorder %s26, 0
      %p386 = por %p384, %p385
      %p387 = scmp.ne.s32.totalorder %s379, %s381
      %p388 = scmp.eq.s32.totalorder %s31, 1
      %p389 = por %p387, %p388
      %p390 = scmp.ne.s32.totalorder %s381, %s382
      %p391 = scmp.eq.s32.totalorder %s31, 0
      %p392 = por %p390, %p391
      %p393 = scmp.ne.s32.totalorder %s381, %s382
      %p394 = scmp.eq.s32.totalorder %s32, 1
      %p395 = por %p393, %p394
      %p397 = scmp.ne.s32.totalorder %s382, %s396
      %p398 = scmp.eq.s32.totalorder %s32, 0
      %p399 = por %p397, %p398
      %s400 = ssub.s32 %s33, %s45
      %p401 = scmp.eq.s32.totalorder %s400, 0
      %s403 = sadd.s32 %s402, 1
      %s404 = scalar_select %p401, %s402, %s403
      %p407 = pneg %p401
      %p408 = scmp.eq.s32.totalorder %s26, 1
      %p409 = por %p407, %p408
      %p410 = scmp.ne.s32.totalorder %s402, %s405
      %p411 = scmp.eq.s32.totalorder %s26, 0
      %p412 = por %p410, %p411
      %p413 = scmp.ne.s32.totalorder %s402, %s405
      %p414 = scmp.eq.s32.totalorder %s31, 1
      %p415 = por %p413, %p414
      %p416 = scmp.ne.s32.totalorder %s405, %s406
      %p417 = scmp.eq.s32.totalorder %s31, 0
      %p418 = por %p416, %p417
      %p419 = scmp.ne.s32.totalorder %s405, %s406
      %p420 = scmp.eq.s32.totalorder %s32, 1
      %p421 = por %p419, %p420
      %p423 = scmp.ne.s32.totalorder %s406, %s422
      %p424 = scmp.eq.s32.totalorder %s32, 0
      %p425 = por %p423, %p424
      %s426 = ssub.s32 %s34, %s41
      %s427 = ssub.s32 %s33, %s45
      %s428 = sor.u32 %s426, %s427
      %p429 = scmp.eq.s32.totalorder %s428, 0
      %s431 = sadd.s32 %s430, 1
      %s432 = scalar_select %p429, %s430, %s431
      %p435 = pneg %p429
      %p436 = scmp.eq.s32.totalorder %s26, 1
      %p437 = por %p435, %p436
      %p438 = scmp.ne.s32.totalorder %s430, %s433
      %p439 = scmp.eq.s32.totalorder %s26, 0
      %p440 = por %p438, %p439
      %p441 = scmp.ne.s32.totalorder %s430, %s433
      %p442 = scmp.eq.s32.totalorder %s31, 1
      %p443 = por %p441, %p442
      %p444 = scmp.ne.s32.totalorder %s433, %s434
      %p445 = scmp.eq.s32.totalorder %s31, 0
      %p446 = por %p444, %p445
      %p447 = scmp.ne.s32.totalorder %s433, %s434
      %p448 = scmp.eq.s32.totalorder %s32, 1
      %p449 = por %p447, %p448
      %p451 = scmp.ne.s32.totalorder %s434, %s450
      %p452 = scmp.eq.s32.totalorder %s32, 0
      %p453 = por %p451, %p452
      %p454 = scmp.le.s32.totalorder 1, %s26
      %p455 = scmp.lt.s32.totalorder %s26, 3
      %p456 = pnand %p454, %p455
      %p457 = pneg %p456
      // Predicated region
      $region9: #{tpu_custom_call.1} parent=5 // pred_check
        _
      $region10: #{tpu_custom_call.1} parent=5 // pred_check_branch
        %459 = sbr.rel (%p456) target = $region12
      $region11: #{tpu_custom_call.1} parent=5 // pred_region
        %s460 = ssub.s32 %s26, 1
        // Predicated region
        $region13: #{tpu_custom_call.1} parent=11 // pred_check
          %p461 = pneg %p64
        $region14: #{tpu_custom_call.1} parent=11 // pred_check_branch
          %463 = sbr.rel (%p461) target = $region16
        $region15: #{tpu_custom_call.1} parent=11 // pred_region
          %s464 = smul.u32 2, %s35
          %p465 = scmp.lt.s32.totalorder %s464, 1
          %s466 = scalar_select %p465, %s464, 1
          %s467 = smul.addr %s466, 8
          %s468 = scalar_lea.vmem %s0, %s467
          %s469 = smul.u32 2, %s35
        $region16: #{tpu_custom_call.1} parent=11 // pred_fallthru
          _
        // Predicated region
        $region17: #{tpu_custom_call.1} parent=11 // pred_check
          %p470 = pneg %p371
        $region18: #{tpu_custom_call.1} parent=11 // pred_check_branch
          %472 = sbr.rel (%p470) target = $region20
        $region19: #{tpu_custom_call.1} parent=11 // pred_region
          _
        $region20: #{tpu_custom_call.1} parent=11 // pred_fallthru
          _
        // Predicated region
        $region21: #{tpu_custom_call.1} parent=11 // pred_check
          %p473 = pneg %p392
        $region22: #{tpu_custom_call.1} parent=11 // pred_check_branch
          %475 = sbr.rel (%p473) target = $region24
        $region23: #{tpu_custom_call.1} parent=11 // pred_region
          _
        $region24: #{tpu_custom_call.1} parent=11 // pred_fallthru
          _
      $region12: #{tpu_custom_call.1} parent=5 // pred_fallthru
        _
      %p476 = scmp.lt.s32.totalorder %s26, 2
      // Predicated region
      $region25: #{tpu_custom_call.1} parent=5 // pred_check
        %p477 = pneg %p476
      $region26: #{tpu_custom_call.1} parent=5 // pred_check_branch
        %479 = sbr.rel (%p477) target = $region28
      $region27: #{tpu_custom_call.1} parent=5 // pred_region
        // Predicated region
        $region29: #{tpu_custom_call.1} parent=27 // pred_check
          %p480 = pneg %p84
        $region30: #{tpu_custom_call.1} parent=27 // pred_check_branch
          %482 = sbr.rel (%p480) target = $region32
        $region31: #{tpu_custom_call.1} parent=27 // pred_region
          %p483 = scmp.lt.s32.totalorder %s34, 1
          %s484 = scalar_select %p483, %s34, 1
          %s485 = scalar_lea.vmem %s1, %s484
        $region32: #{tpu_custom_call.1} parent=27 // pred_fallthru
          _
        // Predicated region
        $region33: #{tpu_custom_call.1} parent=27 // pred_check
          %p486 = pneg %p110
        $region34: #{tpu_custom_call.1} parent=27 // pred_check_branch
          %488 = sbr.rel (%p486) target = $region36
        $region35: #{tpu_custom_call.1} parent=27 // pred_region
          %p489 = scmp.lt.s32.totalorder %s34, 1
          %s490 = scalar_select %p489, %s34, 1
          %s491 = scalar_lea.vmem %s2, %s490
        $region36: #{tpu_custom_call.1} parent=27 // pred_fallthru
          _
        // Predicated region
        $region37: #{tpu_custom_call.1} parent=27 // pred_check
          %p492 = pneg %p136
        $region38: #{tpu_custom_call.1} parent=27 // pred_check_branch
          %494 = sbr.rel (%p492) target = $region40
        $region39: #{tpu_custom_call.1} parent=27 // pred_region
          %p495 = scmp.lt.s32.totalorder %s34, 1
          %s496 = scalar_select %p495, %s34, 1
          %s497 = smul.addr %s496, 4
          %s498 = smul.addr %s497, 4
          %s499 = scalar_lea.vmem %s3, %s498
        $region40: #{tpu_custom_call.1} parent=27 // pred_fallthru
          _
        // Predicated region
        $region41: #{tpu_custom_call.1} parent=27 // pred_check
          %p500 = pneg %p162
        $region42: #{tpu_custom_call.1} parent=27 // pred_check_branch
          %502 = sbr.rel (%p500) target = $region44
        $region43: #{tpu_custom_call.1} parent=27 // pred_region
          %p503 = scmp.lt.s32.totalorder %s34, 1
          %s504 = scalar_select %p503, %s34, 1
          %s505 = smul.addr %s504, 4
          %s506 = smul.addr %s505, 4
          %s507 = scalar_lea.vmem %s4, %s506
        $region44: #{tpu_custom_call.1} parent=27 // pred_fallthru
          _
        // Predicated region
        $region45: #{tpu_custom_call.1} parent=27 // pred_check
          %p508 = pneg %p188
        $region46: #{tpu_custom_call.1} parent=27 // pred_check_branch
          %510 = sbr.rel (%p508) target = $region48
        $region47: #{tpu_custom_call.1} parent=27 // pred_region
          %p511 = scmp.lt.s32.totalorder %s34, 1
          %s512 = scalar_select %p511, %s34, 1
          %s513 = scalar_lea.vmem %s5, %s512
        $region48: #{tpu_custom_call.1} parent=27 // pred_fallthru
          _
        // Predicated region
        $region49: #{tpu_custom_call.1} parent=27 // pred_check
          %p514 = pneg %p214
        $region50: #{tpu_custom_call.1} parent=27 // pred_check_branch
          %516 = sbr.rel (%p514) target = $region52
        $region51: #{tpu_custom_call.1} parent=27 // pred_region
          %p517 = scmp.lt.s32.totalorder %s34, 1
          %s518 = scalar_select %p517, %s34, 1
          %s519 = scalar_lea.vmem %s6, %s518
        $region52: #{tpu_custom_call.1} parent=27 // pred_fallthru
          _
        // Predicated region
        $region53: #{tpu_custom_call.1} parent=27 // pred_check
          %p520 = pneg %p240
        $region54: #{tpu_custom_call.1} parent=27 // pred_check_branch
          %522 = sbr.rel (%p520) target = $region56
        $region55: #{tpu_custom_call.1} parent=27 // pred_region
          %p523 = scmp.lt.s32.totalorder %s34, 1
          %s524 = scalar_select %p523, %s34, 1
          %s525 = scalar_lea.vmem %s7, %s524
        $region56: #{tpu_custom_call.1} parent=27 // pred_fallthru
          _
        // Predicated region
        $region57: #{tpu_custom_call.1} parent=27 // pred_check
          %p526 = pneg %p266
        $region58: #{tpu_custom_call.1} parent=27 // pred_check_branch
          %528 = sbr.rel (%p526) target = $region60
        $region59: #{tpu_custom_call.1} parent=27 // pred_region
          %p529 = scmp.lt.s32.totalorder %s34, 1
          %s530 = scalar_select %p529, %s34, 1
          %s531 = smul.addr %s530, 4
          %s532 = smul.addr %s531, 4
          %s533 = scalar_lea.vmem %s8, %s532
        $region60: #{tpu_custom_call.1} parent=27 // pred_fallthru
          _
        // Predicated region
        $region61: #{tpu_custom_call.1} parent=27 // pred_check
          %p534 = pneg %p292
        $region62: #{tpu_custom_call.1} parent=27 // pred_check_branch
          %536 = sbr.rel (%p534) target = $region64
        $region63: #{tpu_custom_call.1} parent=27 // pred_region
          %p537 = scmp.lt.s32.totalorder %s34, 1
          %s538 = scalar_select %p537, %s34, 1
          %s539 = scalar_lea.vmem %s9, %s538
        $region64: #{tpu_custom_call.1} parent=27 // pred_fallthru
          _
        // Predicated region
        $region65: #{tpu_custom_call.1} parent=27 // pred_check
          %p540 = pneg %p318
        $region66: #{tpu_custom_call.1} parent=27 // pred_check_branch
          %542 = sbr.rel (%p540) target = $region68
        $region67: #{tpu_custom_call.1} parent=27 // pred_region
          %p543 = scmp.lt.s32.totalorder %s34, 1
          %s544 = scalar_select %p543, %s34, 1
          %s545 = smul.addr %s544, 16
          %s546 = smul.addr %s545, 4
          %s547 = scalar_lea.vmem %s10, %s546
        $region68: #{tpu_custom_call.1} parent=27 // pred_fallthru
          _
        // Predicated region
        $region69: #{tpu_custom_call.1} parent=27 // pred_check
          %p548 = pneg %p344
        $region70: #{tpu_custom_call.1} parent=27 // pred_check_branch
          %550 = sbr.rel (%p548) target = $region72
        $region71: #{tpu_custom_call.1} parent=27 // pred_region
          %p551 = scmp.lt.s32.totalorder %s34, 1
          %s552 = scalar_select %p551, %s34, 1
          %s553 = scalar_lea.vmem %s11, %s552
        $region72: #{tpu_custom_call.1} parent=27 // pred_fallthru
          _
      $region28: #{tpu_custom_call.1} parent=5 // pred_fallthru
        _
      %p554 = scmp.le.s32.totalorder 1, %s26
      %p555 = scmp.lt.s32.totalorder %s26, 3
      %p556 = pnand %p554, %p555
      %p557 = pneg %p556
      // Predicated region
      $region73: #{tpu_custom_call.1} parent=5 // pred_check
        _
      $region74: #{tpu_custom_call.1} parent=5 // pred_check_branch
        %559 = sbr.rel (%p556) target = $region76
      $region75: #{tpu_custom_call.1} parent=5 // pred_region
        %s560 = ssub.s32 %s26, 1
        %s561 = smul.u32 2, %s35
        %p562 = scmp.lt.s32.totalorder %s561, 1
        %s563 = scalar_select %p562, %s561, 1
        %s564 = smul.addr %s563, 8
        %s565 = scalar_lea.vmem %s0, %s564
        %p566 = pneg %p64
        %p567 = pneg %p61
        %p568 = scmp.lt.s32.totalorder %s36, 1
        %s569 = scalar_select %p568, %s36, 1
        %s570 = scalar_lea.vmem %s1, %s569
        %p571 = pneg %p90
        %p572 = pneg %p87
        %p573 = scmp.lt.s32.totalorder %s36, 1
        %s574 = scalar_select %p573, %s36, 1
        %s575 = scalar_lea.vmem %s2, %s574
        %p576 = pneg %p116
        %p577 = pneg %p113
        %p578 = scmp.lt.s32.totalorder %s36, 1
        %s579 = scalar_select %p578, %s36, 1
        %s580 = smul.addr %s579, 4
        %s581 = smul.addr %s580, 4
        %s582 = scalar_lea.vmem %s3, %s581
        %p583 = pneg %p142
        %p584 = pneg %p139
        %p585 = scmp.lt.s32.totalorder %s36, 1
        %s586 = scalar_select %p585, %s36, 1
        %s587 = smul.addr %s586, 4
        %s588 = smul.addr %s587, 4
        %s589 = scalar_lea.vmem %s4, %s588
        %p590 = pneg %p168
        %p591 = pneg %p165
        %p592 = scmp.lt.s32.totalorder %s36, 1
        %s593 = scalar_select %p592, %s36, 1
        %s594 = scalar_lea.vmem %s5, %s593
        %p595 = pneg %p194
        %p596 = pneg %p191
        %p597 = scmp.lt.s32.totalorder %s36, 1
        %s598 = scalar_select %p597, %s36, 1
        %s599 = scalar_lea.vmem %s6, %s598
        %p600 = pneg %p220
        %p601 = pneg %p217
        %p602 = scmp.lt.s32.totalorder %s36, 1
        %s603 = scalar_select %p602, %s36, 1
        %s604 = scalar_lea.vmem %s7, %s603
        %p605 = pneg %p246
        %p606 = pneg %p243
        %p607 = scmp.lt.s32.totalorder %s36, 1
        %s608 = scalar_select %p607, %s36, 1
        %s609 = smul.addr %s608, 4
        %s610 = smul.addr %s609, 4
        %s611 = scalar_lea.vmem %s8, %s610
        %p612 = pneg %p272
        %p613 = pneg %p269
        %p614 = scmp.lt.s32.totalorder %s36, 1
        %s615 = scalar_select %p614, %s36, 1
        %s616 = scalar_lea.vmem %s9, %s615
        %p617 = pneg %p298
        %p618 = pneg %p295
        %p619 = scmp.lt.s32.totalorder %s36, 1
        %s620 = scalar_select %p619, %s36, 1
        %s621 = smul.addr %s620, 16
        %s622 = smul.addr %s621, 4
        %s623 = scalar_lea.vmem %s10, %s622
        %p624 = pneg %p324
        %p625 = pneg %p321
        %p626 = scmp.lt.s32.totalorder %s36, 1
        %s627 = scalar_select %p626, %s36, 1
        %s628 = scalar_lea.vmem %s11, %s627
        %p629 = pneg %p350
        %p630 = pneg %p347
        %p631 = pneg %p371
        %p632 = pneg %p368
        %p633 = pneg %p392
        %p634 = pneg %p389
        %p635 = pneg %p418
        %p636 = pneg %p415
        %p637 = pneg %p446
        %p638 = pneg %p443
        %s639 = sand.u32 %s433, 1
        %s640 = scalar_lea.sflag [#allocation6], %s639
        %s641 = sand.u32 %s433, 1
        %s642 = smul.addr %s641, 64
        %s643 = scalar_lea.vmem [#allocation5], %s642
        %s644 = smul.u32 2, %s35
        %p645 = scmp.lt.s32.totalorder %s644, 1
        %s646 = scalar_select %p645, %s644, 1
        %s647 = smul.addr %s646, 8
        %s648 = scalar_lea.vmem %s0, %s647
        %s649 = smul.u32 2, %s35
        %p650 = scmp.lt.s32.totalorder %s36, 1
        %s651 = scalar_select %p650, %s36, 1
        %s652 = scalar_lea.vmem %s1, %s651
        %p653 = scmp.lt.s32.totalorder %s36, 1
        %s654 = scalar_select %p653, %s36, 1
        %s655 = scalar_lea.vmem %s2, %s654
        %p656 = scmp.lt.s32.totalorder %s36, 1
        %s657 = scalar_select %p656, %s36, 1
        %s658 = smul.addr %s657, 4
        %s659 = smul.addr %s658, 4
        %s660 = scalar_lea.vmem %s3, %s659
        %p661 = scmp.lt.s32.totalorder %s36, 1
        %s662 = scalar_select %p661, %s36, 1
        %s663 = smul.addr %s662, 4
        %s664 = smul.addr %s663, 4
        %s665 = scalar_lea.vmem %s4, %s664
        %p666 = scmp.lt.s32.totalorder %s36, 1
        %s667 = scalar_select %p666, %s36, 1
        %s668 = scalar_lea.vmem %s5, %s667
        %p669 = scmp.lt.s32.totalorder %s36, 1
        %s670 = scalar_select %p669, %s36, 1
        %s671 = scalar_lea.vmem %s6, %s670
        %p672 = scmp.lt.s32.totalorder %s36, 1
        %s673 = scalar_select %p672, %s36, 1
        %s674 = scalar_lea.vmem %s7, %s673
        %p675 = scmp.lt.s32.totalorder %s36, 1
        %s676 = scalar_select %p675, %s36, 1
        %s677 = smul.addr %s676, 4
        %s678 = smul.addr %s677, 4
        %s679 = scalar_lea.vmem %s8, %s678
        %p680 = scmp.lt.s32.totalorder %s36, 1
        %s681 = scalar_select %p680, %s36, 1
        %s682 = scalar_lea.vmem %s9, %s681
        %p683 = scmp.lt.s32.totalorder %s36, 1
        %s684 = scalar_select %p683, %s36, 1
        %s685 = smul.addr %s684, 16
        %s686 = smul.addr %s685, 4
        %s687 = scalar_lea.vmem %s10, %s686
        %p688 = scmp.lt.s32.totalorder %s36, 1
        %s689 = scalar_select %p688, %s36, 1
        %s690 = scalar_lea.vmem %s11, %s689
        %s691 = smul.u32 2, %s35
        %s692 = smul.u32 2, %s35
        %p694 = scmp.eq.s32.totalorder %s36, 0
        // Predicated region
        $region77: #{tpu_custom_call.1} parent=75 // pred_check
          %p695 = pneg %p694
        $region78: #{tpu_custom_call.1} parent=75 // pred_check_branch
          %697 = sbr.rel (%p695) target = $region80
        $region79: #{tpu_custom_call.1} parent=75 // pred_region
          %v698 = vld [vmem:[%s648] sm:$0xff]
          %v699 = vld [vmem:[%s648 + $0x8] sm:$0xff]
          %vm700 = vcmask 261120
          %701 = vst.msk [vmem:[#allocation2] sm:$0xff] %vm700, %v698
          %702 = vst.msk [vmem:[#allocation2 + $0x8] sm:$0xff] %vm700, %v699
        $region80: #{tpu_custom_call.1} parent=75 // pred_fallthru
          _
        %v703 = vld [vmem:[#allocation2] sm:$0xff]
        %v704 = vld [vmem:[#allocation2 + $0x8] sm:$0xff]
        %v705 = vld [vmem:[%s652] sm:$0x1]
        %v706 = vld [vmem:[%s655] sm:$0x1]
        %vm707 = vcmask 261120
        %v708 = vsel %vm707, %v703, 0.0
        %709 = vadd.xlane.f32.xlu0 %v708
        %v710 = vpop.xlane.xlu0 %709
        %v711 = vsel %vm707, %v704, 0.0
        %712 = vadd.xlane.f32.xlu0 %v711
        %v713 = vpop.xlane.xlu0 %712
        %v714 = vrcp.pop 32.0
        %v715 = vmul.f32 %v710, %v714
        %v716 = vmul.f32 %v713, %v714
        %v717 = vsub.f32 %v703, %v715
        %v718 = vsub.f32 %v704, %v716
        %v719 = vmul.f32 %v717, %v717
        %v720 = vmul.f32 %v718, %v718
        %v721 = vsel %vm707, %v719, 0.0
        %722 = vadd.xlane.f32.xlu0 %v721
        %v723 = vpop.xlane.xlu0 %722
        %v724 = vsel %vm707, %v720, 0.0
        %725 = vadd.xlane.f32.xlu0 %v724
        %v726 = vpop.xlane.xlu0 %725
        %v727 = vmul.f32 %v723, %v714
        %v728 = vmul.f32 %v726, %v714
        %v729 = vadd.f32 %v727, 1e-05
        %v730 = vadd.f32 %v728, 1e-05
        %v731 = vrsqrt.pop %v729
        %v732 = vrsqrt.pop %v730
        %v733 = vmul.f32 %v717, %v731
        %v734 = vmul.f32 %v718, %v732
        %v736 = vlaneseq
        %v737 = vshrl.u32 %v736, 7
        %v738 = vsub.s32 0, %v737
        %v739 = vrot.slane %v705, %v738
        %v741 = vmul.f32 %v733, %v739
        %v742 = vmul.f32 %v734, %v739
        %v744 = vlaneseq
        %v745 = vshrl.u32 %v744, 7
        %v746 = vsub.s32 0, %v745
        %v747 = vrot.slane %v706, %v746
        %v749 = vadd.f32 %v741, %v747
        %v750 = vadd.f32 %v742, %v747
        %v751 = vpack.c.bf16 %v750, %v749
        %v752 = vld [vmem:[%s660] sm:$0xf]
        %v753 = vld [vmem:[%s660 + $0x4] sm:$0xf]
        %v754 = vld [vmem:[%s660 + $0x8] sm:$0xf]
        %v755 = vld [vmem:[%s660 + $0xc] sm:$0xf]
        %v760 = vunpack.c.l.b16 %v752
        %v761 = vunpack.c.l.b16 %v753
        %v762 = vunpack.c.l.b16 %v754
        %v763 = vunpack.c.l.b16 %v755
        %v764 = vpack.c.b16 %v761, %v760
        %v765 = vpack.c.b16 %v763, %v762
        %v769 = vsel %vm707, %v751, 0
        %771 = vmatprep.subr.bf16.mxu0 0
        %772 = vmatpush1.bf16.msra.mxu0 0
        %773 = vmatprep.subr.bf16.mxu0 0
        %774 = vmatpush1.bf16.msra.mxu0 0
        %775 = vmatprep.subr.bf16.mxu0 0
        %776 = vmatpush1.bf16.msra.mxu0 0
        %777 = vmatprep.subr.bf16.mxu0 0
        %778 = vmatpush1.bf16.msra.mxu0 0
        %779 = vmatprep.subr.bf16.mxu0 0
        %780 = vmatpush1.bf16.msra.mxu0 0
        %781 = vmatprep.subr.bf16.mxu0 0
        %782 = vmatpush1.bf16.msra.mxu0 0
        %783 = vmatprep.subr.bf16.mxu0 0
        %784 = vmatpush1.bf16.msra.mxu0 %v765
        %785 = vmatprep.subr.bf16.mxu0 0
        %786 = vmatpush1.bf16.msra.mxu0 %v764
        %787 = vmatprep.subr.bf16.mxu0 0
        %788 = vmatpush2.bf16.msra.mxu0 0
        %789 = vmatprep.subr.bf16.mxu0 0
        %790 = vmatpush2.bf16.msra.mxu0 0
        %791 = vmatprep.subr.bf16.mxu0 0
        %792 = vmatpush2.bf16.msra.mxu0 0
        %793 = vmatprep.subr.bf16.mxu0 0
        %794 = vmatpush2.bf16.msra.mxu0 0
        %795 = vmatprep.subr.bf16.mxu0 0
        %796 = vmatpush2.bf16.msra.mxu0 0
        %797 = vmatprep.subr.bf16.mxu0 0
        %798 = vmatpush2.bf16.msra.mxu0 0
        %799 = vmatprep.subr.bf16.mxu0 0
        %800 = vmatpush2.bf16.msra.mxu0 0
        %801 = vmatprep.subr.bf16.mxu0 0
        %802 = vmatpush2.bf16.msra.mxu0 0
        %803 = vmatprep.mubr.bf16.mxu0 0
        %804 = vmatmul.mubr.bf16.gmra.mxu0 %v769
        %v805 = vpop.f32.mrf.mxu0
        %v806 = vadd.f32 0.0, %v805
        %v807 = vpop.f32.mrf.mxu0
        %v808 = vpop.f32.mrf.mxu0
        %v809 = vadd.f32 0.0, %v808
        %v810 = vpop.f32.mrf.mxu0
        %811 = vdwg.mxu0
        %v812 = vmul.f32 %v806, 0.17677669
        %v813 = vmul.f32 %v809, 0.17677669
        %v814 = vpack.c.bf16 %v813, %v812
        %v815 = vpack.c.bf16 %v809, %v806
        %817 = vrot.lane.b32.xlu0 %v814, 120
        %v818 = vpop.permute.xlu0 %817
        %819 = vrot.lane.b32.xlu0 %v814, 112
        %v820 = vpop.permute.xlu0 %819
        %821 = vrot.lane.b32.xlu0 %v814, 104
        %v822 = vpop.permute.xlu0 %821
        %v825 = vpack.i.b16 %v818, %v814
        %v827 = vshrl.u32 %v814, 16
        %v828 = vshrl.u32 %v818, 16
        %v829 = vpack.i.b16 %v828, %v827
        %v833 = vpack.i.b16 %v822, %v820
        %v835 = vshrl.u32 %v820, 16
        %v836 = vshrl.u32 %v822, 16
        %v837 = vpack.i.b16 %v836, %v835
        %v840 = vpack.i.b16 0, 0
        %v842 = vshrl.u32 0, 16
        %v843 = vpack.i.b16 %v842, %v842
        %v845 = vcombine.high %v825, %v840
        %v847 = vunpack.c.l.s4 1983009808
        %v848 = vunpack.c.0.s8 %v847
        %v849 = vlaneseq
        %v850 = vshrl.u32 %v849, 7
        %v851 = vsub.s32 %v848, %v850
        %v852 = vrot.slane %v825, %v851
        %v854 = vunpack.c.l.s4 1983009808
        %v855 = vunpack.c.0.s8 %v854
        %v856 = vlaneseq
        %v857 = vshrl.u32 %v856, 7
        %v858 = vsub.s32 %v855, %v857
        %v859 = vrot.slane %v845, %v858
        %v860 = vcombine.high %v833, %v840
        %v862 = vunpack.c.l.s4 1983009808
        %v863 = vunpack.c.0.s8 %v862
        %v864 = vlaneseq
        %v865 = vshrl.u32 %v864, 7
        %v866 = vsub.s32 %v863, %v865
        %v867 = vrot.slane %v833, %v866
        %v869 = vunpack.c.l.s4 1983009808
        %v870 = vunpack.c.0.s8 %v869
        %v871 = vlaneseq
        %v872 = vshrl.u32 %v871, 7
        %v873 = vsub.s32 %v870, %v872
        %v874 = vrot.slane %v860, %v873
        %v875 = vcombine.low %v852, %v867
        %v876 = vcombine.high %v852, %v867
        %v878 = vunpack.c.l.s4 1934713408
        %v879 = vunpack.c.0.s8 %v878
        %v880 = vlaneseq
        %v881 = vshrl.u32 %v880, 7
        %v882 = vsub.s32 %v879, %v881
        %v883 = vrot.slane %v875, %v882
        %v885 = vunpack.c.l.s4 1934713408
        %v886 = vunpack.c.0.s8 %v885
        %v887 = vlaneseq
        %v888 = vshrl.u32 %v887, 7
        %v889 = vsub.s32 %v886, %v888
        %v890 = vrot.slane %v876, %v889
        %v891 = vcombine.low %v859, %v874
        %v892 = vcombine.high %v859, %v874
        %v894 = vunpack.c.l.s4 1934713408
        %v895 = vunpack.c.0.s8 %v894
        %v896 = vlaneseq
        %v897 = vshrl.u32 %v896, 7
        %v898 = vsub.s32 %v895, %v897
        %v899 = vrot.slane %v891, %v898
        %v901 = vunpack.c.l.s4 1934713408
        %v902 = vunpack.c.0.s8 %v901
        %v903 = vlaneseq
        %v904 = vshrl.u32 %v903, 7
        %v905 = vsub.s32 %v902, %v904
        %v906 = vrot.slane %v892, %v905
        %v907 = vcombine.high %v883, 0
        %v908 = vcombine.high %v890, 0
        %v909 = vcombine.high %v899, 0
        %v910 = vcombine.high %v906, 0
        %v911 = vcombine.high %v829, %v843
        %v913 = vunpack.c.l.s4 1983009808
        %v914 = vunpack.c.0.s8 %v913
        %v915 = vlaneseq
        %v916 = vshrl.u32 %v915, 7
        %v917 = vsub.s32 %v914, %v916
        %v918 = vrot.slane %v829, %v917
        %v920 = vunpack.c.l.s4 1983009808
        %v921 = vunpack.c.0.s8 %v920
        %v922 = vlaneseq
        %v923 = vshrl.u32 %v922, 7
        %v924 = vsub.s32 %v921, %v923
        %v925 = vrot.slane %v911, %v924
        %v926 = vcombine.high %v837, %v843
        %v928 = vunpack.c.l.s4 1983009808
        %v929 = vunpack.c.0.s8 %v928
        %v930 = vlaneseq
        %v931 = vshrl.u32 %v930, 7
        %v932 = vsub.s32 %v929, %v931
        %v933 = vrot.slane %v837, %v932
        %v935 = vunpack.c.l.s4 1983009808
        %v936 = vunpack.c.0.s8 %v935
        %v937 = vlaneseq
        %v938 = vshrl.u32 %v937, 7
        %v939 = vsub.s32 %v936, %v938
        %v940 = vrot.slane %v926, %v939
        %v941 = vcombine.low %v918, %v933
        %v942 = vcombine.high %v918, %v933
        %v944 = vunpack.c.l.s4 1934713408
        %v945 = vunpack.c.0.s8 %v944
        %v946 = vlaneseq
        %v947 = vshrl.u32 %v946, 7
        %v948 = vsub.s32 %v945, %v947
        %v949 = vrot.slane %v941, %v948
        %v951 = vunpack.c.l.s4 1934713408
        %v952 = vunpack.c.0.s8 %v951
        %v953 = vlaneseq
        %v954 = vshrl.u32 %v953, 7
        %v955 = vsub.s32 %v952, %v954
        %v956 = vrot.slane %v942, %v955
        %v957 = vcombine.low %v925, %v940
        %v958 = vcombine.high %v925, %v940
        %v960 = vunpack.c.l.s4 1934713408
        %v961 = vunpack.c.0.s8 %v960
        %v962 = vlaneseq
        %v963 = vshrl.u32 %v962, 7
        %v964 = vsub.s32 %v961, %v963
        %v965 = vrot.slane %v957, %v964
        %v967 = vunpack.c.l.s4 1934713408
        %v968 = vunpack.c.0.s8 %v967
        %v969 = vlaneseq
        %v970 = vshrl.u32 %v969, 7
        %v971 = vsub.s32 %v968, %v970
        %v972 = vrot.slane %v958, %v971
        %v973 = vcombine.high %v949, 0
        %v974 = vcombine.high %v956, 0
        %v975 = vcombine.high %v965, 0
        %v976 = vcombine.high %v972, 0
        %v977 = vcombine.low %v883, %v890
        %v979 = vunpack.c.l.s4 1983009808
        %v980 = vunpack.c.0.s8 %v979
        %v981 = vlaneseq
        %v982 = vshrl.u32 %v981, 7
        %v983 = vsub.s32 %v980, %v982
        %v984 = vrot.slane %v977, %v983
        %v985 = vcombine.low %v907, %v908
        %v987 = vunpack.c.l.s4 1983009808
        %v988 = vunpack.c.0.s8 %v987
        %v989 = vlaneseq
        %v990 = vshrl.u32 %v989, 7
        %v991 = vsub.s32 %v988, %v990
        %v992 = vrot.slane %v985, %v991
        %v993 = vcombine.low %v984, %v992
        %v995 = vunpack.c.l.s4 1934713408
        %v996 = vunpack.c.0.s8 %v995
        %v997 = vlaneseq
        %v998 = vshrl.u32 %v997, 7
        %v999 = vsub.s32 %v996, %v998
        %v1000 = vrot.slane %v993, %v999
        %v1001 = vcombine.high %v1000, 0
        %v1002 = vcombine.low %v949, %v956
        %v1004 = vunpack.c.l.s4 1983009808
        %v1005 = vunpack.c.0.s8 %v1004
        %v1006 = vlaneseq
        %v1007 = vshrl.u32 %v1006, 7
        %v1008 = vsub.s32 %v1005, %v1007
        %v1009 = vrot.slane %v1002, %v1008
        %v1010 = vcombine.low %v973, %v974
        %v1012 = vunpack.c.l.s4 1983009808
        %v1013 = vunpack.c.0.s8 %v1012
        %v1014 = vlaneseq
        %v1015 = vshrl.u32 %v1014, 7
        %v1016 = vsub.s32 %v1013, %v1015
        %v1017 = vrot.slane %v1010, %v1016
        %v1018 = vcombine.low %v1009, %v1017
        %v1020 = vunpack.c.l.s4 1934713408
        %v1021 = vunpack.c.0.s8 %v1020
        %v1022 = vlaneseq
        %v1023 = vshrl.u32 %v1022, 7
        %v1024 = vsub.s32 %v1021, %v1023
        %v1025 = vrot.slane %v1018, %v1024
        %v1026 = vcombine.high %v1025, 0
        %v1027 = vcombine.low %v899, %v906
        %v1029 = vunpack.c.l.s4 1983009808
        %v1030 = vunpack.c.0.s8 %v1029
        %v1031 = vlaneseq
        %v1032 = vshrl.u32 %v1031, 7
        %v1033 = vsub.s32 %v1030, %v1032
        %v1034 = vrot.slane %v1027, %v1033
        %v1035 = vcombine.low %v909, %v910
        %v1037 = vunpack.c.l.s4 1983009808
        %v1038 = vunpack.c.0.s8 %v1037
        %v1039 = vlaneseq
        %v1040 = vshrl.u32 %v1039, 7
        %v1041 = vsub.s32 %v1038, %v1040
        %v1042 = vrot.slane %v1035, %v1041
        %v1043 = vcombine.low %v1034, %v1042
        %v1045 = vunpack.c.l.s4 1934713408
        %v1046 = vunpack.c.0.s8 %v1045
        %v1047 = vlaneseq
        %v1048 = vshrl.u32 %v1047, 7
        %v1049 = vsub.s32 %v1046, %v1048
        %v1050 = vrot.slane %v1043, %v1049
        %v1051 = vcombine.high %v1050, 0
        %v1052 = vcombine.low %v965, %v972
        %v1054 = vunpack.c.l.s4 1983009808
        %v1055 = vunpack.c.0.s8 %v1054
        %v1056 = vlaneseq
        %v1057 = vshrl.u32 %v1056, 7
        %v1058 = vsub.s32 %v1055, %v1057
        %v1059 = vrot.slane %v1052, %v1058
        %v1060 = vcombine.low %v975, %v976
        %v1062 = vunpack.c.l.s4 1983009808
        %v1063 = vunpack.c.0.s8 %v1062
        %v1064 = vlaneseq
        %v1065 = vshrl.u32 %v1064, 7
        %v1066 = vsub.s32 %v1063, %v1065
        %v1067 = vrot.slane %v1060, %v1066
        %v1068 = vcombine.low %v1059, %v1067
        %v1070 = vunpack.c.l.s4 1934713408
        %v1071 = vunpack.c.0.s8 %v1070
        %v1072 = vlaneseq
        %v1073 = vshrl.u32 %v1072, 7
        %v1074 = vsub.s32 %v1071, %v1073
        %v1075 = vrot.slane %v1068, %v1074
        %v1076 = vcombine.high %v1075, 0
        %v1079 = vpack.i.b16 %v1025, %v1000
        %v1080 = vshrl.u32 %v1000, 16
        %v1081 = vshrl.u32 %v1025, 16
        %v1082 = vpack.i.b16 %v1081, %v1080
        %v1085 = vpack.i.b16 %v1026, %v1001
        %v1086 = vshrl.u32 %v1001, 16
        %v1087 = vshrl.u32 %v1026, 16
        %v1088 = vpack.i.b16 %v1087, %v1086
        %v1091 = vpack.i.b16 %v1075, %v1050
        %v1092 = vshrl.u32 %v1050, 16
        %v1093 = vshrl.u32 %v1075, 16
        %v1094 = vpack.i.b16 %v1093, %v1092
        %v1097 = vpack.i.b16 %v1076, %v1051
        %v1098 = vshrl.u32 %v1051, 16
        %v1099 = vshrl.u32 %v1076, 16
        %v1100 = vpack.i.b16 %v1099, %v1098
        %1102 = vrot.lane.b32.xlu0 %v815, 120
        %v1103 = vpop.permute.xlu0 %1102
        %1104 = vrot.lane.b32.xlu0 %v815, 112
        %v1105 = vpop.permute.xlu0 %1104
        %1106 = vrot.lane.b32.xlu0 %v815, 104
        %v1107 = vpop.permute.xlu0 %1106
        %1108 = vrot.lane.b32.xlu0 %v815, 96
        %v1109 = vpop.permute.xlu0 %1108
        %1110 = vrot.lane.b32.xlu0 %v1103, 96
        %v1111 = vpop.permute.xlu0 %1110
        %1112 = vrot.lane.b32.xlu0 %v1105, 96
        %v1113 = vpop.permute.xlu0 %1112
        %1114 = vrot.lane.b32.xlu0 %v1107, 96
        %v1115 = vpop.permute.xlu0 %1114
        %v1118 = vpack.i.b16 %v1111, %v1109
        %v1120 = vshrl.u32 %v1109, 16
        %v1121 = vshrl.u32 %v1111, 16
        %v1122 = vpack.i.b16 %v1121, %v1120
        %v1126 = vpack.i.b16 %v1115, %v1113
        %v1128 = vshrl.u32 %v1113, 16
        %v1129 = vshrl.u32 %v1115, 16
        %v1130 = vpack.i.b16 %v1129, %v1128
        %v1132 = vcombine.high %v1118, %v840
        %v1134 = vunpack.c.l.s4 1983009808
        %v1135 = vunpack.c.0.s8 %v1134
        %v1136 = vlaneseq
        %v1137 = vshrl.u32 %v1136, 7
        %v1138 = vsub.s32 %v1135, %v1137
        %v1139 = vrot.slane %v1118, %v1138
        %v1141 = vunpack.c.l.s4 1983009808
        %v1142 = vunpack.c.0.s8 %v1141
        %v1143 = vlaneseq
        %v1144 = vshrl.u32 %v1143, 7
        %v1145 = vsub.s32 %v1142, %v1144
        %v1146 = vrot.slane %v1132, %v1145
        %v1147 = vcombine.high %v1126, %v840
        %v1149 = vunpack.c.l.s4 1983009808
        %v1150 = vunpack.c.0.s8 %v1149
        %v1151 = vlaneseq
        %v1152 = vshrl.u32 %v1151, 7
        %v1153 = vsub.s32 %v1150, %v1152
        %v1154 = vrot.slane %v1126, %v1153
        %v1156 = vunpack.c.l.s4 1983009808
        %v1157 = vunpack.c.0.s8 %v1156
        %v1158 = vlaneseq
        %v1159 = vshrl.u32 %v1158, 7
        %v1160 = vsub.s32 %v1157, %v1159
        %v1161 = vrot.slane %v1147, %v1160
        %v1162 = vcombine.low %v1139, %v1154
        %v1163 = vcombine.high %v1139, %v1154
        %v1165 = vunpack.c.l.s4 1934713408
        %v1166 = vunpack.c.0.s8 %v1165
        %v1167 = vlaneseq
        %v1168 = vshrl.u32 %v1167, 7
        %v1169 = vsub.s32 %v1166, %v1168
        %v1170 = vrot.slane %v1162, %v1169
        %v1172 = vunpack.c.l.s4 1934713408
        %v1173 = vunpack.c.0.s8 %v1172
        %v1174 = vlaneseq
        %v1175 = vshrl.u32 %v1174, 7
        %v1176 = vsub.s32 %v1173, %v1175
        %v1177 = vrot.slane %v1163, %v1176
        %v1178 = vcombine.low %v1146, %v1161
        %v1179 = vcombine.high %v1146, %v1161
        %v1181 = vunpack.c.l.s4 1934713408
        %v1182 = vunpack.c.0.s8 %v1181
        %v1183 = vlaneseq
        %v1184 = vshrl.u32 %v1183, 7
        %v1185 = vsub.s32 %v1182, %v1184
        %v1186 = vrot.slane %v1178, %v1185
        %v1188 = vunpack.c.l.s4 1934713408
        %v1189 = vunpack.c.0.s8 %v1188
        %v1190 = vlaneseq
        %v1191 = vshrl.u32 %v1190, 7
        %v1192 = vsub.s32 %v1189, %v1191
        %v1193 = vrot.slane %v1179, %v1192
        %v1194 = vcombine.high %v1170, 0
        %v1195 = vcombine.high %v1177, 0
        %v1196 = vcombine.high %v1186, 0
        %v1197 = vcombine.high %v1193, 0
        %v1198 = vcombine.high %v1122, %v843
        %v1200 = vunpack.c.l.s4 1983009808
        %v1201 = vunpack.c.0.s8 %v1200
        %v1202 = vlaneseq
        %v1203 = vshrl.u32 %v1202, 7
        %v1204 = vsub.s32 %v1201, %v1203
        %v1205 = vrot.slane %v1122, %v1204
        %v1207 = vunpack.c.l.s4 1983009808
        %v1208 = vunpack.c.0.s8 %v1207
        %v1209 = vlaneseq
        %v1210 = vshrl.u32 %v1209, 7
        %v1211 = vsub.s32 %v1208, %v1210
        %v1212 = vrot.slane %v1198, %v1211
        %v1213 = vcombine.high %v1130, %v843
        %v1215 = vunpack.c.l.s4 1983009808
        %v1216 = vunpack.c.0.s8 %v1215
        %v1217 = vlaneseq
        %v1218 = vshrl.u32 %v1217, 7
        %v1219 = vsub.s32 %v1216, %v1218
        %v1220 = vrot.slane %v1130, %v1219
        %v1222 = vunpack.c.l.s4 1983009808
        %v1223 = vunpack.c.0.s8 %v1222
        %v1224 = vlaneseq
        %v1225 = vshrl.u32 %v1224, 7
        %v1226 = vsub.s32 %v1223, %v1225
        %v1227 = vrot.slane %v1213, %v1226
        %v1228 = vcombine.low %v1205, %v1220
        %v1229 = vcombine.high %v1205, %v1220
        %v1231 = vunpack.c.l.s4 1934713408
        %v1232 = vunpack.c.0.s8 %v1231
        %v1233 = vlaneseq
        %v1234 = vshrl.u32 %v1233, 7
        %v1235 = vsub.s32 %v1232, %v1234
        %v1236 = vrot.slane %v1228, %v1235
        %v1238 = vunpack.c.l.s4 1934713408
        %v1239 = vunpack.c.0.s8 %v1238
        %v1240 = vlaneseq
        %v1241 = vshrl.u32 %v1240, 7
        %v1242 = vsub.s32 %v1239, %v1241
        %v1243 = vrot.slane %v1229, %v1242
        %v1244 = vcombine.low %v1212, %v1227
        %v1245 = vcombine.high %v1212, %v1227
        %v1247 = vunpack.c.l.s4 1934713408
        %v1248 = vunpack.c.0.s8 %v1247
        %v1249 = vlaneseq
        %v1250 = vshrl.u32 %v1249, 7
        %v1251 = vsub.s32 %v1248, %v1250
        %v1252 = vrot.slane %v1244, %v1251
        %v1254 = vunpack.c.l.s4 1934713408
        %v1255 = vunpack.c.0.s8 %v1254
        %v1256 = vlaneseq
        %v1257 = vshrl.u32 %v1256, 7
        %v1258 = vsub.s32 %v1255, %v1257
        %v1259 = vrot.slane %v1245, %v1258
        %v1260 = vcombine.high %v1236, 0
        %v1261 = vcombine.high %v1243, 0
        %v1262 = vcombine.high %v1252, 0
        %v1263 = vcombine.high %v1259, 0
        %v1264 = vcombine.low %v1170, %v1177
        %v1266 = vunpack.c.l.s4 1983009808
        %v1267 = vunpack.c.0.s8 %v1266
        %v1268 = vlaneseq
        %v1269 = vshrl.u32 %v1268, 7
        %v1270 = vsub.s32 %v1267, %v1269
        %v1271 = vrot.slane %v1264, %v1270
        %v1272 = vcombine.low %v1194, %v1195
        %v1274 = vunpack.c.l.s4 1983009808
        %v1275 = vunpack.c.0.s8 %v1274
        %v1276 = vlaneseq
        %v1277 = vshrl.u32 %v1276, 7
        %v1278 = vsub.s32 %v1275, %v1277
        %v1279 = vrot.slane %v1272, %v1278
        %v1280 = vcombine.low %v1271, %v1279
        %v1282 = vunpack.c.l.s4 1934713408
        %v1283 = vunpack.c.0.s8 %v1282
        %v1284 = vlaneseq
        %v1285 = vshrl.u32 %v1284, 7
        %v1286 = vsub.s32 %v1283, %v1285
        %v1287 = vrot.slane %v1280, %v1286
        %v1288 = vcombine.high %v1287, 0
        %v1289 = vcombine.low %v1236, %v1243
        %v1291 = vunpack.c.l.s4 1983009808
        %v1292 = vunpack.c.0.s8 %v1291
        %v1293 = vlaneseq
        %v1294 = vshrl.u32 %v1293, 7
        %v1295 = vsub.s32 %v1292, %v1294
        %v1296 = vrot.slane %v1289, %v1295
        %v1297 = vcombine.low %v1260, %v1261
        %v1299 = vunpack.c.l.s4 1983009808
        %v1300 = vunpack.c.0.s8 %v1299
        %v1301 = vlaneseq
        %v1302 = vshrl.u32 %v1301, 7
        %v1303 = vsub.s32 %v1300, %v1302
        %v1304 = vrot.slane %v1297, %v1303
        %v1305 = vcombine.low %v1296, %v1304
        %v1307 = vunpack.c.l.s4 1934713408
        %v1308 = vunpack.c.0.s8 %v1307
        %v1309 = vlaneseq
        %v1310 = vshrl.u32 %v1309, 7
        %v1311 = vsub.s32 %v1308, %v1310
        %v1312 = vrot.slane %v1305, %v1311
        %v1313 = vcombine.high %v1312, 0
        %v1314 = vcombine.low %v1186, %v1193
        %v1316 = vunpack.c.l.s4 1983009808
        %v1317 = vunpack.c.0.s8 %v1316
        %v1318 = vlaneseq
        %v1319 = vshrl.u32 %v1318, 7
        %v1320 = vsub.s32 %v1317, %v1319
        %v1321 = vrot.slane %v1314, %v1320
        %v1322 = vcombine.low %v1196, %v1197
        %v1324 = vunpack.c.l.s4 1983009808
        %v1325 = vunpack.c.0.s8 %v1324
        %v1326 = vlaneseq
        %v1327 = vshrl.u32 %v1326, 7
        %v1328 = vsub.s32 %v1325, %v1327
        %v1329 = vrot.slane %v1322, %v1328
        %v1330 = vcombine.low %v1321, %v1329
        %v1332 = vunpack.c.l.s4 1934713408
        %v1333 = vunpack.c.0.s8 %v1332
        %v1334 = vlaneseq
        %v1335 = vshrl.u32 %v1334, 7
        %v1336 = vsub.s32 %v1333, %v1335
        %v1337 = vrot.slane %v1330, %v1336
        %v1338 = vcombine.high %v1337, 0
        %v1339 = vcombine.low %v1252, %v1259
        %v1341 = vunpack.c.l.s4 1983009808
        %v1342 = vunpack.c.0.s8 %v1341
        %v1343 = vlaneseq
        %v1344 = vshrl.u32 %v1343, 7
        %v1345 = vsub.s32 %v1342, %v1344
        %v1346 = vrot.slane %v1339, %v1345
        %v1347 = vcombine.low %v1262, %v1263
        %v1349 = vunpack.c.l.s4 1983009808
        %v1350 = vunpack.c.0.s8 %v1349
        %v1351 = vlaneseq
        %v1352 = vshrl.u32 %v1351, 7
        %v1353 = vsub.s32 %v1350, %v1352
        %v1354 = vrot.slane %v1347, %v1353
        %v1355 = vcombine.low %v1346, %v1354
        %v1357 = vunpack.c.l.s4 1934713408
        %v1358 = vunpack.c.0.s8 %v1357
        %v1359 = vlaneseq
        %v1360 = vshrl.u32 %v1359, 7
        %v1361 = vsub.s32 %v1358, %v1360
        %v1362 = vrot.slane %v1355, %v1361
        %v1363 = vcombine.high %v1362, 0
        %v1366 = vpack.i.b16 %v1312, %v1287
        %v1367 = vshrl.u32 %v1287, 16
        %v1368 = vshrl.u32 %v1312, 16
        %v1369 = vpack.i.b16 %v1368, %v1367
        %v1372 = vpack.i.b16 %v1313, %v1288
        %v1373 = vshrl.u32 %v1288, 16
        %v1374 = vshrl.u32 %v1313, 16
        %v1375 = vpack.i.b16 %v1374, %v1373
        %v1378 = vpack.i.b16 %v1362, %v1337
        %v1379 = vshrl.u32 %v1337, 16
        %v1380 = vshrl.u32 %v1362, 16
        %v1381 = vpack.i.b16 %v1380, %v1379
        %v1384 = vpack.i.b16 %v1363, %v1338
        %v1385 = vshrl.u32 %v1338, 16
        %v1386 = vshrl.u32 %v1363, 16
        %v1387 = vpack.i.b16 %v1386, %v1385
        %1388 = vrot.lane.b32.xlu0 %v815, 64
        %v1389 = vpop.permute.xlu0 %1388
        %1390 = vrot.lane.b32.xlu0 %v1103, 64
        %v1391 = vpop.permute.xlu0 %1390
        %1392 = vrot.lane.b32.xlu0 %v1105, 64
        %v1393 = vpop.permute.xlu0 %1392
        %1394 = vrot.lane.b32.xlu0 %v1107, 64
        %v1395 = vpop.permute.xlu0 %1394
        %v1398 = vpack.i.b16 %v1391, %v1389
        %v1400 = vshrl.u32 %v1389, 16
        %v1401 = vshrl.u32 %v1391, 16
        %v1402 = vpack.i.b16 %v1401, %v1400
        %v1406 = vpack.i.b16 %v1395, %v1393
        %v1408 = vshrl.u32 %v1393, 16
        %v1409 = vshrl.u32 %v1395, 16
        %v1410 = vpack.i.b16 %v1409, %v1408
        %v1412 = vcombine.high %v1398, %v840
        %v1414 = vunpack.c.l.s4 1983009808
        %v1415 = vunpack.c.0.s8 %v1414
        %v1416 = vlaneseq
        %v1417 = vshrl.u32 %v1416, 7
        %v1418 = vsub.s32 %v1415, %v1417
        %v1419 = vrot.slane %v1398, %v1418
        %v1421 = vunpack.c.l.s4 1983009808
        %v1422 = vunpack.c.0.s8 %v1421
        %v1423 = vlaneseq
        %v1424 = vshrl.u32 %v1423, 7
        %v1425 = vsub.s32 %v1422, %v1424
        %v1426 = vrot.slane %v1412, %v1425
        %v1427 = vcombine.high %v1406, %v840
        %v1429 = vunpack.c.l.s4 1983009808
        %v1430 = vunpack.c.0.s8 %v1429
        %v1431 = vlaneseq
        %v1432 = vshrl.u32 %v1431, 7
        %v1433 = vsub.s32 %v1430, %v1432
        %v1434 = vrot.slane %v1406, %v1433
        %v1436 = vunpack.c.l.s4 1983009808
        %v1437 = vunpack.c.0.s8 %v1436
        %v1438 = vlaneseq
        %v1439 = vshrl.u32 %v1438, 7
        %v1440 = vsub.s32 %v1437, %v1439
        %v1441 = vrot.slane %v1427, %v1440
        %v1442 = vcombine.low %v1419, %v1434
        %v1443 = vcombine.high %v1419, %v1434
        %v1445 = vunpack.c.l.s4 1934713408
        %v1446 = vunpack.c.0.s8 %v1445
        %v1447 = vlaneseq
        %v1448 = vshrl.u32 %v1447, 7
        %v1449 = vsub.s32 %v1446, %v1448
        %v1450 = vrot.slane %v1442, %v1449
        %v1452 = vunpack.c.l.s4 1934713408
        %v1453 = vunpack.c.0.s8 %v1452
        %v1454 = vlaneseq
        %v1455 = vshrl.u32 %v1454, 7
        %v1456 = vsub.s32 %v1453, %v1455
        %v1457 = vrot.slane %v1443, %v1456
        %v1458 = vcombine.low %v1426, %v1441
        %v1459 = vcombine.high %v1426, %v1441
        %v1461 = vunpack.c.l.s4 1934713408
        %v1462 = vunpack.c.0.s8 %v1461
        %v1463 = vlaneseq
        %v1464 = vshrl.u32 %v1463, 7
        %v1465 = vsub.s32 %v1462, %v1464
        %v1466 = vrot.slane %v1458, %v1465
        %v1468 = vunpack.c.l.s4 1934713408
        %v1469 = vunpack.c.0.s8 %v1468
        %v1470 = vlaneseq
        %v1471 = vshrl.u32 %v1470, 7
        %v1472 = vsub.s32 %v1469, %v1471
        %v1473 = vrot.slane %v1459, %v1472
        %v1474 = vcombine.high %v1450, 0
        %v1475 = vcombine.high %v1457, 0
        %v1476 = vcombine.high %v1466, 0
        %v1477 = vcombine.high %v1473, 0
        %v1478 = vcombine.high %v1402, %v843
        %v1480 = vunpack.c.l.s4 1983009808
        %v1481 = vunpack.c.0.s8 %v1480
        %v1482 = vlaneseq
        %v1483 = vshrl.u32 %v1482, 7
        %v1484 = vsub.s32 %v1481, %v1483
        %v1485 = vrot.slane %v1402, %v1484
        %v1487 = vunpack.c.l.s4 1983009808
        %v1488 = vunpack.c.0.s8 %v1487
        %v1489 = vlaneseq
        %v1490 = vshrl.u32 %v1489, 7
        %v1491 = vsub.s32 %v1488, %v1490
        %v1492 = vrot.slane %v1478, %v1491
        %v1493 = vcombine.high %v1410, %v843
        %v1495 = vunpack.c.l.s4 1983009808
        %v1496 = vunpack.c.0.s8 %v1495
        %v1497 = vlaneseq
        %v1498 = vshrl.u32 %v1497, 7
        %v1499 = vsub.s32 %v1496, %v1498
        %v1500 = vrot.slane %v1410, %v1499
        %v1502 = vunpack.c.l.s4 1983009808
        %v1503 = vunpack.c.0.s8 %v1502
        %v1504 = vlaneseq
        %v1505 = vshrl.u32 %v1504, 7
        %v1506 = vsub.s32 %v1503, %v1505
        %v1507 = vrot.slane %v1493, %v1506
        %v1508 = vcombine.low %v1485, %v1500
        %v1509 = vcombine.high %v1485, %v1500
        %v1511 = vunpack.c.l.s4 1934713408
        %v1512 = vunpack.c.0.s8 %v1511
        %v1513 = vlaneseq
        %v1514 = vshrl.u32 %v1513, 7
        %v1515 = vsub.s32 %v1512, %v1514
        %v1516 = vrot.slane %v1508, %v1515
        %v1518 = vunpack.c.l.s4 1934713408
        %v1519 = vunpack.c.0.s8 %v1518
        %v1520 = vlaneseq
        %v1521 = vshrl.u32 %v1520, 7
        %v1522 = vsub.s32 %v1519, %v1521
        %v1523 = vrot.slane %v1509, %v1522
        %v1524 = vcombine.low %v1492, %v1507
        %v1525 = vcombine.high %v1492, %v1507
        %v1527 = vunpack.c.l.s4 1934713408
        %v1528 = vunpack.c.0.s8 %v1527
        %v1529 = vlaneseq
        %v1530 = vshrl.u32 %v1529, 7
        %v1531 = vsub.s32 %v1528, %v1530
        %v1532 = vrot.slane %v1524, %v1531
        %v1534 = vunpack.c.l.s4 1934713408
        %v1535 = vunpack.c.0.s8 %v1534
        %v1536 = vlaneseq
        %v1537 = vshrl.u32 %v1536, 7
        %v1538 = vsub.s32 %v1535, %v1537
        %v1539 = vrot.slane %v1525, %v1538
        %v1540 = vcombine.high %v1516, 0
        %v1541 = vcombine.high %v1523, 0
        %v1542 = vcombine.high %v1532, 0
        %v1543 = vcombine.high %v1539, 0
        %v1544 = vcombine.low %v1450, %v1457
        %v1546 = vunpack.c.l.s4 1983009808
        %v1547 = vunpack.c.0.s8 %v1546
        %v1548 = vlaneseq
        %v1549 = vshrl.u32 %v1548, 7
        %v1550 = vsub.s32 %v1547, %v1549
        %v1551 = vrot.slane %v1544, %v1550
        %v1552 = vcombine.low %v1474, %v1475
        %v1554 = vunpack.c.l.s4 1983009808
        %v1555 = vunpack.c.0.s8 %v1554
        %v1556 = vlaneseq
        %v1557 = vshrl.u32 %v1556, 7
        %v1558 = vsub.s32 %v1555, %v1557
        %v1559 = vrot.slane %v1552, %v1558
        %v1560 = vcombine.low %v1551, %v1559
        %v1562 = vunpack.c.l.s4 1934713408
        %v1563 = vunpack.c.0.s8 %v1562
        %v1564 = vlaneseq
        %v1565 = vshrl.u32 %v1564, 7
        %v1566 = vsub.s32 %v1563, %v1565
        %v1567 = vrot.slane %v1560, %v1566
        %v1568 = vcombine.high %v1567, 0
        %v1569 = vcombine.low %v1516, %v1523
        %v1571 = vunpack.c.l.s4 1983009808
        %v1572 = vunpack.c.0.s8 %v1571
        %v1573 = vlaneseq
        %v1574 = vshrl.u32 %v1573, 7
        %v1575 = vsub.s32 %v1572, %v1574
        %v1576 = vrot.slane %v1569, %v1575
        %v1577 = vcombine.low %v1540, %v1541
        %v1579 = vunpack.c.l.s4 1983009808
        %v1580 = vunpack.c.0.s8 %v1579
        %v1581 = vlaneseq
        %v1582 = vshrl.u32 %v1581, 7
        %v1583 = vsub.s32 %v1580, %v1582
        %v1584 = vrot.slane %v1577, %v1583
        %v1585 = vcombine.low %v1576, %v1584
        %v1587 = vunpack.c.l.s4 1934713408
        %v1588 = vunpack.c.0.s8 %v1587
        %v1589 = vlaneseq
        %v1590 = vshrl.u32 %v1589, 7
        %v1591 = vsub.s32 %v1588, %v1590
        %v1592 = vrot.slane %v1585, %v1591
        %v1593 = vcombine.high %v1592, 0
        %v1594 = vcombine.low %v1466, %v1473
        %v1596 = vunpack.c.l.s4 1983009808
        %v1597 = vunpack.c.0.s8 %v1596
        %v1598 = vlaneseq
        %v1599 = vshrl.u32 %v1598, 7
        %v1600 = vsub.s32 %v1597, %v1599
        %v1601 = vrot.slane %v1594, %v1600
        %v1602 = vcombine.low %v1476, %v1477
        %v1604 = vunpack.c.l.s4 1983009808
        %v1605 = vunpack.c.0.s8 %v1604
        %v1606 = vlaneseq
        %v1607 = vshrl.u32 %v1606, 7
        %v1608 = vsub.s32 %v1605, %v1607
        %v1609 = vrot.slane %v1602, %v1608
        %v1610 = vcombine.low %v1601, %v1609
        %v1612 = vunpack.c.l.s4 1934713408
        %v1613 = vunpack.c.0.s8 %v1612
        %v1614 = vlaneseq
        %v1615 = vshrl.u32 %v1614, 7
        %v1616 = vsub.s32 %v1613, %v1615
        %v1617 = vrot.slane %v1610, %v1616
        %v1618 = vcombine.high %v1617, 0
        %v1619 = vcombine.low %v1532, %v1539
        %v1621 = vunpack.c.l.s4 1983009808
        %v1622 = vunpack.c.0.s8 %v1621
        %v1623 = vlaneseq
        %v1624 = vshrl.u32 %v1623, 7
        %v1625 = vsub.s32 %v1622, %v1624
        %v1626 = vrot.slane %v1619, %v1625
        %v1627 = vcombine.low %v1542, %v1543
        %v1629 = vunpack.c.l.s4 1983009808
        %v1630 = vunpack.c.0.s8 %v1629
        %v1631 = vlaneseq
        %v1632 = vshrl.u32 %v1631, 7
        %v1633 = vsub.s32 %v1630, %v1632
        %v1634 = vrot.slane %v1627, %v1633
        %v1635 = vcombine.low %v1626, %v1634
        %v1637 = vunpack.c.l.s4 1934713408
        %v1638 = vunpack.c.0.s8 %v1637
        %v1639 = vlaneseq
        %v1640 = vshrl.u32 %v1639, 7
        %v1641 = vsub.s32 %v1638, %v1640
        %v1642 = vrot.slane %v1635, %v1641
        %v1643 = vcombine.high %v1642, 0
        %v1646 = vpack.i.b16 %v1592, %v1567
        %v1647 = vshrl.u32 %v1567, 16
        %v1648 = vshrl.u32 %v1592, 16
        %v1649 = vpack.i.b16 %v1648, %v1647
        %v1652 = vpack.i.b16 %v1593, %v1568
        %v1653 = vshrl.u32 %v1568, 16
        %v1654 = vshrl.u32 %v1593, 16
        %v1655 = vpack.i.b16 %v1654, %v1653
        %v1658 = vpack.i.b16 %v1642, %v1617
        %v1659 = vshrl.u32 %v1617, 16
        %v1660 = vshrl.u32 %v1642, 16
        %v1661 = vpack.i.b16 %v1660, %v1659
        %v1664 = vpack.i.b16 %v1643, %v1618
        %v1665 = vshrl.u32 %v1618, 16
        %v1666 = vshrl.u32 %v1643, 16
        %v1667 = vpack.i.b16 %v1666, %v1665
        %v1668 = vlaneseq
        %v1669 = vshrl.u32 %v1668, 7
        %v1670 = vlaneseq
        %v1671 = vand.u32 %v1670, 127
        %vm1672 = vcmp.le.s32.totalorder %v1671, %v1669
        %vm1673 = vcmask 64512
        %v1675 = vsel %vm1673, %v1079, 0
        %v1678 = vsel %vm1673, %v1366, 0
        %1680 = vmatprep.subr.bf16.mxu0 0
        %1681 = vmatpush1.bf16.xpose.msra.mxu0 0
        %1682 = vmatprep.subr.bf16.mxu0 0
        %1683 = vmatpush1.bf16.xpose.msra.mxu0 0
        %1684 = vmatprep.subr.bf16.mxu0 0
        %1685 = vmatpush1.bf16.xpose.msra.mxu0 0
        %1686 = vmatprep.subr.bf16.mxu0 0
        %1687 = vmatpush1.bf16.xpose.msra.mxu0 0
        %1688 = vmatprep.subr.bf16.mxu0 0
        %1689 = vmatpush1.bf16.xpose.msra.mxu0 0
        %1690 = vmatprep.subr.bf16.mxu0 0
        %1691 = vmatpush1.bf16.xpose.msra.mxu0 0
        %1692 = vmatprep.subr.bf16.mxu0 0
        %1693 = vmatpush1.bf16.xpose.msra.mxu0 0
        %1694 = vmatprep.subr.bf16.mxu0 0
        %1695 = vmatpush1.bf16.xpose.msra.mxu0 %v1678
        %1696 = vmatprep.subr.bf16.mxu0 0
        %1697 = vmatpush2.bf16.xpose.msra.mxu0 0
        %1698 = vmatprep.subr.bf16.mxu0 0
        %1699 = vmatpush2.bf16.xpose.msra.mxu0 0
        %1700 = vmatprep.subr.bf16.mxu0 0
        %1701 = vmatpush2.bf16.xpose.msra.mxu0 0
        %1702 = vmatprep.subr.bf16.mxu0 0
        %1703 = vmatpush2.bf16.xpose.msra.mxu0 0
        %1704 = vmatprep.subr.bf16.mxu0 0
        %1705 = vmatpush2.bf16.xpose.msra.mxu0 0
        %1706 = vmatprep.subr.bf16.mxu0 0
        %1707 = vmatpush2.bf16.xpose.msra.mxu0 0
        %1708 = vmatprep.subr.bf16.mxu0 0
        %1709 = vmatpush2.bf16.xpose.msra.mxu0 0
        %1710 = vmatprep.subr.bf16.mxu0 0
        %1711 = vmatpush2.bf16.xpose.msra.mxu0 0
        %1712 = vmatprep.mubr.bf16.mxu0 0
        %1713 = vmatmul.mubr.bf16.gmra.mxu0 %v1675
        %v1714 = vpop.f32.mrf.mxu0
        %v1715 = vadd.f32 0.0, %v1714
        %v1716 = vpop.f32.mrf.mxu0
        %v1717 = vpop.f32.mrf.mxu0
        %v1718 = vpop.f32.mrf.mxu0
        %1719 = vdwg.mxu0
        %v1721 = vsel %vm1673, %v1091, 0
        %v1724 = vsel %vm1673, %v1378, 0
        %1726 = vmatprep.subr.bf16.mxu0 0
        %1727 = vmatpush1.bf16.xpose.msra.mxu0 0
        %1728 = vmatprep.subr.bf16.mxu0 0
        %1729 = vmatpush1.bf16.xpose.msra.mxu0 0
        %1730 = vmatprep.subr.bf16.mxu0 0
        %1731 = vmatpush1.bf16.xpose.msra.mxu0 0
        %1732 = vmatprep.subr.bf16.mxu0 0
        %1733 = vmatpush1.bf16.xpose.msra.mxu0 0
        %1734 = vmatprep.subr.bf16.mxu0 0
        %1735 = vmatpush1.bf16.xpose.msra.mxu0 0
        %1736 = vmatprep.subr.bf16.mxu0 0
        %1737 = vmatpush1.bf16.xpose.msra.mxu0 0
        %1738 = vmatprep.subr.bf16.mxu0 0
        %1739 = vmatpush1.bf16.xpose.msra.mxu0 0
        %1740 = vmatprep.subr.bf16.mxu0 0
        %1741 = vmatpush1.bf16.xpose.msra.mxu0 %v1724
        %1742 = vmatprep.subr.bf16.mxu0 0
        %1743 = vmatpush2.bf16.xpose.msra.mxu0 0
        %1744 = vmatprep.subr.bf16.mxu0 0
        %1745 = vmatpush2.bf16.xpose.msra.mxu0 0
        %1746 = vmatprep.subr.bf16.mxu0 0
        %1747 = vmatpush2.bf16.xpose.msra.mxu0 0
        %1748 = vmatprep.subr.bf16.mxu0 0
        %1749 = vmatpush2.bf16.xpose.msra.mxu0 0
        %1750 = vmatprep.subr.bf16.mxu0 0
        %1751 = vmatpush2.bf16.xpose.msra.mxu0 0
        %1752 = vmatprep.subr.bf16.mxu0 0
        %1753 = vmatpush2.bf16.xpose.msra.mxu0 0
        %1754 = vmatprep.subr.bf16.mxu0 0
        %1755 = vmatpush2.bf16.xpose.msra.mxu0 0
        %1756 = vmatprep.subr.bf16.mxu0 0
        %1757 = vmatpush2.bf16.xpose.msra.mxu0 0
        %1758 = vmatprep.mubr.bf16.mxu0 0
        %1759 = vmatmul.mubr.bf16.gmra.mxu0 %v1721
        %v1760 = vpop.f32.mrf.mxu0
        %v1761 = vadd.f32 0.0, %v1760
        %v1762 = vpop.f32.mrf.mxu0
        %v1763 = vpop.f32.mrf.mxu0
        %v1764 = vpop.f32.mrf.mxu0
        %1765 = vdwg.mxu0
        %v1767 = vsel %vm1673, %v1082, 0
        %v1770 = vsel %vm1673, %v1369, 0
        %1772 = vmatprep.subr.bf16.mxu0 0
        %1773 = vmatpush1.bf16.xpose.msra.mxu0 0
        %1774 = vmatprep.subr.bf16.mxu0 0
        %1775 = vmatpush1.bf16.xpose.msra.mxu0 0
        %1776 = vmatprep.subr.bf16.mxu0 0
        %1777 = vmatpush1.bf16.xpose.msra.mxu0 0
        %1778 = vmatprep.subr.bf16.mxu0 0
        %1779 = vmatpush1.bf16.xpose.msra.mxu0 0
        %1780 = vmatprep.subr.bf16.mxu0 0
        %1781 = vmatpush1.bf16.xpose.msra.mxu0 0
        %1782 = vmatprep.subr.bf16.mxu0 0
        %1783 = vmatpush1.bf16.xpose.msra.mxu0 0
        %1784 = vmatprep.subr.bf16.mxu0 0
        %1785 = vmatpush1.bf16.xpose.msra.mxu0 0
        %1786 = vmatprep.subr.bf16.mxu0 0
        %1787 = vmatpush1.bf16.xpose.msra.mxu0 %v1770
        %1788 = vmatprep.subr.bf16.mxu0 0
        %1789 = vmatpush2.bf16.xpose.msra.mxu0 0
        %1790 = vmatprep.subr.bf16.mxu0 0
        %1791 = vmatpush2.bf16.xpose.msra.mxu0 0
        %1792 = vmatprep.subr.bf16.mxu0 0
        %1793 = vmatpush2.bf16.xpose.msra.mxu0 0
        %1794 = vmatprep.subr.bf16.mxu0 0
        %1795 = vmatpush2.bf16.xpose.msra.mxu0 0
        %1796 = vmatprep.subr.bf16.mxu0 0
        %1797 = vmatpush2.bf16.xpose.msra.mxu0 0
        %1798 = vmatprep.subr.bf16.mxu0 0
        %1799 = vmatpush2.bf16.xpose.msra.mxu0 0
        %1800 = vmatprep.subr.bf16.mxu0 0
        %1801 = vmatpush2.bf16.xpose.msra.mxu0 0
        %1802 = vmatprep.subr.bf16.mxu0 0
        %1803 = vmatpush2.bf16.xpose.msra.mxu0 0
        %1804 = vmatprep.mubr.bf16.mxu0 0
        %1805 = vmatmul.mubr.bf16.gmra.mxu0 %v1767
        %v1806 = vpop.f32.mrf.mxu0
        %v1807 = vadd.f32 0.0, %v1806
        %v1808 = vpop.f32.mrf.mxu0
        %v1809 = vpop.f32.mrf.mxu0
        %v1810 = vpop.f32.mrf.mxu0
        %1811 = vdwg.mxu0
        %v1813 = vsel %vm1673, %v1094, 0
        %v1816 = vsel %vm1673, %v1381, 0
        %1818 = vmatprep.subr.bf16.mxu0 0
        %1819 = vmatpush1.bf16.xpose.msra.mxu0 0
        %1820 = vmatprep.subr.bf16.mxu0 0
        %1821 = vmatpush1.bf16.xpose.msra.mxu0 0
        %1822 = vmatprep.subr.bf16.mxu0 0
        %1823 = vmatpush1.bf16.xpose.msra.mxu0 0
        %1824 = vmatprep.subr.bf16.mxu0 0
        %1825 = vmatpush1.bf16.xpose.msra.mxu0 0
        %1826 = vmatprep.subr.bf16.mxu0 0
        %1827 = vmatpush1.bf16.xpose.msra.mxu0 0
        %1828 = vmatprep.subr.bf16.mxu0 0
        %1829 = vmatpush1.bf16.xpose.msra.mxu0 0
        %1830 = vmatprep.subr.bf16.mxu0 0
        %1831 = vmatpush1.bf16.xpose.msra.mxu0 0
        %1832 = vmatprep.subr.bf16.mxu0 0
        %1833 = vmatpush1.bf16.xpose.msra.mxu0 %v1816
        %1834 = vmatprep.subr.bf16.mxu0 0
        %1835 = vmatpush2.bf16.xpose.msra.mxu0 0
        %1836 = vmatprep.subr.bf16.mxu0 0
        %1837 = vmatpush2.bf16.xpose.msra.mxu0 0
        %1838 = vmatprep.subr.bf16.mxu0 0
        %1839 = vmatpush2.bf16.xpose.msra.mxu0 0
        %1840 = vmatprep.subr.bf16.mxu0 0
        %1841 = vmatpush2.bf16.xpose.msra.mxu0 0
        %1842 = vmatprep.subr.bf16.mxu0 0
        %1843 = vmatpush2.bf16.xpose.msra.mxu0 0
        %1844 = vmatprep.subr.bf16.mxu0 0
        %1845 = vmatpush2.bf16.xpose.msra.mxu0 0
        %1846 = vmatprep.subr.bf16.mxu0 0
        %1847 = vmatpush2.bf16.xpose.msra.mxu0 0
        %1848 = vmatprep.subr.bf16.mxu0 0
        %1849 = vmatpush2.bf16.xpose.msra.mxu0 0
        %1850 = vmatprep.mubr.bf16.mxu0 0
        %1851 = vmatmul.mubr.bf16.gmra.mxu0 %v1813
        %v1852 = vpop.f32.mrf.mxu0
        %v1853 = vadd.f32 0.0, %v1852
        %v1854 = vpop.f32.mrf.mxu0
        %v1855 = vpop.f32.mrf.mxu0
        %v1856 = vpop.f32.mrf.mxu0
        %1857 = vdwg.mxu0
        %v1859 = vsel %vm1673, %v1085, 0
        %v1862 = vsel %vm1673, %v1372, 0
        %1864 = vmatprep.subr.bf16.mxu0 0
        %1865 = vmatpush1.bf16.xpose.msra.mxu0 0
        %1866 = vmatprep.subr.bf16.mxu0 0
        %1867 = vmatpush1.bf16.xpose.msra.mxu0 0
        %1868 = vmatprep.subr.bf16.mxu0 0
        %1869 = vmatpush1.bf16.xpose.msra.mxu0 0
        %1870 = vmatprep.subr.bf16.mxu0 0
        %1871 = vmatpush1.bf16.xpose.msra.mxu0 0
        %1872 = vmatprep.subr.bf16.mxu0 0
        %1873 = vmatpush1.bf16.xpose.msra.mxu0 0
        %1874 = vmatprep.subr.bf16.mxu0 0
        %1875 = vmatpush1.bf16.xpose.msra.mxu0 0
        %1876 = vmatprep.subr.bf16.mxu0 0
        %1877 = vmatpush1.bf16.xpose.msra.mxu0 0
        %1878 = vmatprep.subr.bf16.mxu0 0
        %1879 = vmatpush1.bf16.xpose.msra.mxu0 %v1862
        %1880 = vmatprep.subr.bf16.mxu0 0
        %1881 = vmatpush2.bf16.xpose.msra.mxu0 0
        %1882 = vmatprep.subr.bf16.mxu0 0
        %1883 = vmatpush2.bf16.xpose.msra.mxu0 0
        %1884 = vmatprep.subr.bf16.mxu0 0
        %1885 = vmatpush2.bf16.xpose.msra.mxu0 0
        %1886 = vmatprep.subr.bf16.mxu0 0
        %1887 = vmatpush2.bf16.xpose.msra.mxu0 0
        %1888 = vmatprep.subr.bf16.mxu0 0
        %1889 = vmatpush2.bf16.xpose.msra.mxu0 0
        %1890 = vmatprep.subr.bf16.mxu0 0
        %1891 = vmatpush2.bf16.xpose.msra.mxu0 0
        %1892 = vmatprep.subr.bf16.mxu0 0
        %1893 = vmatpush2.bf16.xpose.msra.mxu0 0
        %1894 = vmatprep.subr.bf16.mxu0 0
        %1895 = vmatpush2.bf16.xpose.msra.mxu0 0
        %1896 = vmatprep.mubr.bf16.mxu0 0
        %1897 = vmatmul.mubr.bf16.gmra.mxu0 %v1859
        %v1898 = vpop.f32.mrf.mxu0
        %v1899 = vadd.f32 0.0, %v1898
        %v1900 = vpop.f32.mrf.mxu0
        %v1901 = vpop.f32.mrf.mxu0
        %v1902 = vpop.f32.mrf.mxu0
        %1903 = vdwg.mxu0
        %v1905 = vsel %vm1673, %v1097, 0
        %v1908 = vsel %vm1673, %v1384, 0
        %1910 = vmatprep.subr.bf16.mxu0 0
        %1911 = vmatpush1.bf16.xpose.msra.mxu0 0
        %1912 = vmatprep.subr.bf16.mxu0 0
        %1913 = vmatpush1.bf16.xpose.msra.mxu0 0
        %1914 = vmatprep.subr.bf16.mxu0 0
        %1915 = vmatpush1.bf16.xpose.msra.mxu0 0
        %1916 = vmatprep.subr.bf16.mxu0 0
        %1917 = vmatpush1.bf16.xpose.msra.mxu0 0
        %1918 = vmatprep.subr.bf16.mxu0 0
        %1919 = vmatpush1.bf16.xpose.msra.mxu0 0
        %1920 = vmatprep.subr.bf16.mxu0 0
        %1921 = vmatpush1.bf16.xpose.msra.mxu0 0
        %1922 = vmatprep.subr.bf16.mxu0 0
        %1923 = vmatpush1.bf16.xpose.msra.mxu0 0
        %1924 = vmatprep.subr.bf16.mxu0 0
        %1925 = vmatpush1.bf16.xpose.msra.mxu0 %v1908
        %1926 = vmatprep.subr.bf16.mxu0 0
        %1927 = vmatpush2.bf16.xpose.msra.mxu0 0
        %1928 = vmatprep.subr.bf16.mxu0 0
        %1929 = vmatpush2.bf16.xpose.msra.mxu0 0
        %1930 = vmatprep.subr.bf16.mxu0 0
        %1931 = vmatpush2.bf16.xpose.msra.mxu0 0
        %1932 = vmatprep.subr.bf16.mxu0 0
        %1933 = vmatpush2.bf16.xpose.msra.mxu0 0
        %1934 = vmatprep.subr.bf16.mxu0 0
        %1935 = vmatpush2.bf16.xpose.msra.mxu0 0
        %1936 = vmatprep.subr.bf16.mxu0 0
        %1937 = vmatpush2.bf16.xpose.msra.mxu0 0
        %1938 = vmatprep.subr.bf16.mxu0 0
        %1939 = vmatpush2.bf16.xpose.msra.mxu0 0
        %1940 = vmatprep.subr.bf16.mxu0 0
        %1941 = vmatpush2.bf16.xpose.msra.mxu0 0
        %1942 = vmatprep.mubr.bf16.mxu0 0
        %1943 = vmatmul.mubr.bf16.gmra.mxu0 %v1905
        %v1944 = vpop.f32.mrf.mxu0
        %v1945 = vadd.f32 0.0, %v1944
        %v1946 = vpop.f32.mrf.mxu0
        %v1947 = vpop.f32.mrf.mxu0
        %v1948 = vpop.f32.mrf.mxu0
        %1949 = vdwg.mxu0
        %v1951 = vsel %vm1673, %v1088, 0
        %v1954 = vsel %vm1673, %v1375, 0
        %1956 = vmatprep.subr.bf16.mxu0 0
        %1957 = vmatpush1.bf16.xpose.msra.mxu0 0
        %1958 = vmatprep.subr.bf16.mxu0 0
        %1959 = vmatpush1.bf16.xpose.msra.mxu0 0
        %1960 = vmatprep.subr.bf16.mxu0 0
        %1961 = vmatpush1.bf16.xpose.msra.mxu0 0
        %1962 = vmatprep.subr.bf16.mxu0 0
        %1963 = vmatpush1.bf16.xpose.msra.mxu0 0
        %1964 = vmatprep.subr.bf16.mxu0 0
        %1965 = vmatpush1.bf16.xpose.msra.mxu0 0
        %1966 = vmatprep.subr.bf16.mxu0 0
        %1967 = vmatpush1.bf16.xpose.msra.mxu0 0
        %1968 = vmatprep.subr.bf16.mxu0 0
        %1969 = vmatpush1.bf16.xpose.msra.mxu0 0
        %1970 = vmatprep.subr.bf16.mxu0 0
        %1971 = vmatpush1.bf16.xpose.msra.mxu0 %v1954
        %1972 = vmatprep.subr.bf16.mxu0 0
        %1973 = vmatpush2.bf16.xpose.msra.mxu0 0
        %1974 = vmatprep.subr.bf16.mxu0 0
        %1975 = vmatpush2.bf16.xpose.msra.mxu0 0
        %1976 = vmatprep.subr.bf16.mxu0 0
        %1977 = vmatpush2.bf16.xpose.msra.mxu0 0
        %1978 = vmatprep.subr.bf16.mxu0 0
        %1979 = vmatpush2.bf16.xpose.msra.mxu0 0
        %1980 = vmatprep.subr.bf16.mxu0 0
        %1981 = vmatpush2.bf16.xpose.msra.mxu0 0
        %1982 = vmatprep.subr.bf16.mxu0 0
        %1983 = vmatpush2.bf16.xpose.msra.mxu0 0
        %1984 = vmatprep.subr.bf16.mxu0 0
        %1985 = vmatpush2.bf16.xpose.msra.mxu0 0
        %1986 = vmatprep.subr.bf16.mxu0 0
        %1987 = vmatpush2.bf16.xpose.msra.mxu0 0
        %1988 = vmatprep.mubr.bf16.mxu0 0
        %1989 = vmatmul.mubr.bf16.gmra.mxu0 %v1951
        %v1990 = vpop.f32.mrf.mxu0
        %v1991 = vadd.f32 0.0, %v1990
        %v1992 = vpop.f32.mrf.mxu0
        %v1993 = vpop.f32.mrf.mxu0
        %v1994 = vpop.f32.mrf.mxu0
        %1995 = vdwg.mxu0
        %v1997 = vsel %vm1673, %v1100, 0
        %v2000 = vsel %vm1673, %v1387, 0
        %2002 = vmatprep.subr.bf16.mxu0 0
        %2003 = vmatpush1.bf16.xpose.msra.mxu0 0
        %2004 = vmatprep.subr.bf16.mxu0 0
        %2005 = vmatpush1.bf16.xpose.msra.mxu0 0
        %2006 = vmatprep.subr.bf16.mxu0 0
        %2007 = vmatpush1.bf16.xpose.msra.mxu0 0
        %2008 = vmatprep.subr.bf16.mxu0 0
        %2009 = vmatpush1.bf16.xpose.msra.mxu0 0
        %2010 = vmatprep.subr.bf16.mxu0 0
        %2011 = vmatpush1.bf16.xpose.msra.mxu0 0
        %2012 = vmatprep.subr.bf16.mxu0 0
        %2013 = vmatpush1.bf16.xpose.msra.mxu0 0
        %2014 = vmatprep.subr.bf16.mxu0 0
        %2015 = vmatpush1.bf16.xpose.msra.mxu0 0
        %2016 = vmatprep.subr.bf16.mxu0 0
        %2017 = vmatpush1.bf16.xpose.msra.mxu0 %v2000
        %2018 = vmatprep.subr.bf16.mxu0 0
        %2019 = vmatpush2.bf16.xpose.msra.mxu0 0
        %2020 = vmatprep.subr.bf16.mxu0 0
        %2021 = vmatpush2.bf16.xpose.msra.mxu0 0
        %2022 = vmatprep.subr.bf16.mxu0 0
        %2023 = vmatpush2.bf16.xpose.msra.mxu0 0
        %2024 = vmatprep.subr.bf16.mxu0 0
        %2025 = vmatpush2.bf16.xpose.msra.mxu0 0
        %2026 = vmatprep.subr.bf16.mxu0 0
        %2027 = vmatpush2.bf16.xpose.msra.mxu0 0
        %2028 = vmatprep.subr.bf16.mxu0 0
        %2029 = vmatpush2.bf16.xpose.msra.mxu0 0
        %2030 = vmatprep.subr.bf16.mxu0 0
        %2031 = vmatpush2.bf16.xpose.msra.mxu0 0
        %2032 = vmatprep.subr.bf16.mxu0 0
        %2033 = vmatpush2.bf16.xpose.msra.mxu0 0
        %2034 = vmatprep.mubr.bf16.mxu0 0
        %2035 = vmatmul.mubr.bf16.gmra.mxu0 %v1997
        %v2036 = vpop.f32.mrf.mxu0
        %v2037 = vadd.f32 0.0, %v2036
        %v2038 = vpop.f32.mrf.mxu0
        %v2039 = vpop.f32.mrf.mxu0
        %v2040 = vpop.f32.mrf.mxu0
        %2041 = vdwg.mxu0
        %v2042 = vsel %vm1672, 1, 0
        %vm2043 = vcmp.eq.s32.totalorder %v2042, 1
        %v2044 = vsel %vm2043, %v1715, -1e+30
        %v2045 = vsel %vm2043, %v1761, -1e+30
        %v2046 = vsel %vm2043, %v1807, -1e+30
        %v2047 = vsel %vm2043, %v1853, -1e+30
        %v2048 = vsel %vm2043, %v1899, -1e+30
        %v2049 = vsel %vm2043, %v1945, -1e+30
        %v2050 = vsel %vm2043, %v1991, -1e+30
        %v2051 = vsel %vm2043, %v2037, -1e+30
        %v2052 = vsel %vm1673, %v2044, -inf
        %2053 = vmax.xlane.f32.xlu0 %v2052
        %v2054 = vpop.xlane.xlu0 %2053
        %v2055 = vsel %vm1673, %v2045, -inf
        %2056 = vmax.xlane.f32.xlu0 %v2055
        %v2057 = vpop.xlane.xlu0 %2056
        %v2058 = vsel %vm1673, %v2046, -inf
        %2059 = vmax.xlane.f32.xlu0 %v2058
        %v2060 = vpop.xlane.xlu0 %2059
        %v2061 = vsel %vm1673, %v2047, -inf
        %2062 = vmax.xlane.f32.xlu0 %v2061
        %v2063 = vpop.xlane.xlu0 %2062
        %v2064 = vsel %vm1673, %v2048, -inf
        %2065 = vmax.xlane.f32.xlu0 %v2064
        %v2066 = vpop.xlane.xlu0 %2065
        %v2067 = vsel %vm1673, %v2049, -inf
        %2068 = vmax.xlane.f32.xlu0 %v2067
        %v2069 = vpop.xlane.xlu0 %2068
        %v2070 = vsel %vm1673, %v2050, -inf
        %2071 = vmax.xlane.f32.xlu0 %v2070
        %v2072 = vpop.xlane.xlu0 %2071
        %v2073 = vsel %vm1673, %v2051, -inf
        %2074 = vmax.xlane.f32.xlu0 %v2073
        %v2075 = vpop.xlane.xlu0 %2074
        %v2076 = vsub.f32 %v2044, %v2054
        %v2077 = vsub.f32 %v2045, %v2057
        %v2078 = vsub.f32 %v2046, %v2060
        %v2079 = vsub.f32 %v2047, %v2063
        %v2080 = vsub.f32 %v2048, %v2066
        %v2081 = vsub.f32 %v2049, %v2069
        %v2082 = vsub.f32 %v2050, %v2072
        %v2083 = vsub.f32 %v2051, %v2075
        %v2084 = vmul.f32 %v2076, 1.442695
        %v2085 = vpow.pop %v2084
        %v2086 = vmul.f32 %v2077, 1.442695
        %v2087 = vpow.pop %v2086
        %v2088 = vmul.f32 %v2078, 1.442695
        %v2089 = vpow.pop %v2088
        %v2090 = vmul.f32 %v2079, 1.442695
        %v2091 = vpow.pop %v2090
        %v2092 = vmul.f32 %v2080, 1.442695
        %v2093 = vpow.pop %v2092
        %v2094 = vmul.f32 %v2081, 1.442695
        %v2095 = vpow.pop %v2094
        %v2096 = vmul.f32 %v2082, 1.442695
        %v2097 = vpow.pop %v2096
        %v2098 = vmul.f32 %v2083, 1.442695
        %v2099 = vpow.pop %v2098
        %v2100 = vsel %vm1673, %v2085, 0.0
        %2101 = vadd.xlane.f32.xlu0 %v2100
        %v2102 = vpop.xlane.xlu0 %2101
        %v2103 = vsel %vm1673, %v2087, 0.0
        %2104 = vadd.xlane.f32.xlu0 %v2103
        %v2105 = vpop.xlane.xlu0 %2104
        %v2106 = vsel %vm1673, %v2089, 0.0
        %2107 = vadd.xlane.f32.xlu0 %v2106
        %v2108 = vpop.xlane.xlu0 %2107
        %v2109 = vsel %vm1673, %v2091, 0.0
        %2110 = vadd.xlane.f32.xlu0 %v2109
        %v2111 = vpop.xlane.xlu0 %2110
        %v2112 = vsel %vm1673, %v2093, 0.0
        %2113 = vadd.xlane.f32.xlu0 %v2112
        %v2114 = vpop.xlane.xlu0 %2113
        %v2115 = vsel %vm1673, %v2095, 0.0
        %2116 = vadd.xlane.f32.xlu0 %v2115
        %v2117 = vpop.xlane.xlu0 %2116
        %v2118 = vsel %vm1673, %v2097, 0.0
        %2119 = vadd.xlane.f32.xlu0 %v2118
        %v2120 = vpop.xlane.xlu0 %2119
        %v2121 = vsel %vm1673, %v2099, 0.0
        %2122 = vadd.xlane.f32.xlu0 %v2121
        %v2123 = vpop.xlane.xlu0 %2122
        %v2124 = vrcp.pop %v2102
        %v2125 = vmul.f32 %v2085, %v2124
        %v2126 = vrcp.pop %v2105
        %v2127 = vmul.f32 %v2087, %v2126
        %v2128 = vrcp.pop %v2108
        %v2129 = vmul.f32 %v2089, %v2128
        %v2130 = vrcp.pop %v2111
        %v2131 = vmul.f32 %v2091, %v2130
        %v2132 = vrcp.pop %v2114
        %v2133 = vmul.f32 %v2093, %v2132
        %v2134 = vrcp.pop %v2117
        %v2135 = vmul.f32 %v2095, %v2134
        %v2136 = vrcp.pop %v2120
        %v2137 = vmul.f32 %v2097, %v2136
        %v2138 = vrcp.pop %v2123
        %v2139 = vmul.f32 %v2099, %v2138
        %2140 = vst.msk [vmem:[%s643] sm:$0xff] %vm1673, %v2125
        %2141 = vst.msk [vmem:[%s643 + $0x8] sm:$0xff] %vm1673, %v2127
        %2142 = vst.msk [vmem:[%s643 + $0x10] sm:$0xff] %vm1673, %v2129
        %2143 = vst.msk [vmem:[%s643 + $0x18] sm:$0xff] %vm1673, %v2131
        %2144 = vst.msk [vmem:[%s643 + $0x20] sm:$0xff] %vm1673, %v2133
        %2145 = vst.msk [vmem:[%s643 + $0x28] sm:$0xff] %vm1673, %v2135
        %2146 = vst.msk [vmem:[%s643 + $0x30] sm:$0xff] %vm1673, %v2137
        %2147 = vst.msk [vmem:[%s643 + $0x38] sm:$0xff] %vm1673, %v2139
        %v2148 = vpack.c.bf16 %v2125, %v2125
        %v2149 = vpack.c.bf16 %v2127, %v2127
        %v2150 = vpack.c.bf16 %v2129, %v2129
        %v2151 = vpack.c.bf16 %v2131, %v2131
        %v2152 = vpack.c.bf16 %v2133, %v2133
        %v2153 = vpack.c.bf16 %v2135, %v2135
        %v2154 = vpack.c.bf16 %v2137, %v2137
        %v2155 = vpack.c.bf16 %v2139, %v2139
        %v2157 = vsel %vm1673, %v2148, 0
        %vm2159 = vcmask 1043456
        %v2161 = vsel %vm2159, %v1646, 0
        %2163 = vmatprep.subr.bf16.mxu0 0
        %2164 = vmatpush1.bf16.msra.mxu0 0
        %2165 = vmatprep.subr.bf16.mxu0 0
        %2166 = vmatpush1.bf16.msra.mxu0 0
        %2167 = vmatprep.subr.bf16.mxu0 0
        %2168 = vmatpush1.bf16.msra.mxu0 0
        %2169 = vmatprep.subr.bf16.mxu0 0
        %2170 = vmatpush1.bf16.msra.mxu0 0
        %2171 = vmatprep.subr.bf16.mxu0 0
        %2172 = vmatpush1.bf16.msra.mxu0 0
        %2173 = vmatprep.subr.bf16.mxu0 0
        %2174 = vmatpush1.bf16.msra.mxu0 0
        %2175 = vmatprep.subr.bf16.mxu0 0
        %2176 = vmatpush1.bf16.msra.mxu0 0
        %2177 = vmatprep.subr.bf16.mxu0 0
        %2178 = vmatpush1.bf16.msra.mxu0 %v2161
        %2179 = vmatprep.subr.bf16.mxu0 0
        %2180 = vmatpush2.bf16.msra.mxu0 0
        %2181 = vmatprep.subr.bf16.mxu0 0
        %2182 = vmatpush2.bf16.msra.mxu0 0
        %2183 = vmatprep.subr.bf16.mxu0 0
        %2184 = vmatpush2.bf16.msra.mxu0 0
        %2185 = vmatprep.subr.bf16.mxu0 0
        %2186 = vmatpush2.bf16.msra.mxu0 0
        %2187 = vmatprep.subr.bf16.mxu0 0
        %2188 = vmatpush2.bf16.msra.mxu0 0
        %2189 = vmatprep.subr.bf16.mxu0 0
        %2190 = vmatpush2.bf16.msra.mxu0 0
        %2191 = vmatprep.subr.bf16.mxu0 0
        %2192 = vmatpush2.bf16.msra.mxu0 0
        %2193 = vmatprep.subr.bf16.mxu0 0
        %2194 = vmatpush2.bf16.msra.mxu0 0
        %2195 = vmatprep.mubr.bf16.mxu0 0
        %2196 = vmatmul.mubr.bf16.gmra.mxu0 %v2157
        %v2197 = vpop.f32.mrf.mxu0
        %v2198 = vadd.f32 0.0, %v2197
        %v2199 = vpop.f32.mrf.mxu0
        %v2200 = vpop.f32.mrf.mxu0
        %v2201 = vpop.f32.mrf.mxu0
        %2202 = vdwg.mxu0
        %v2204 = vsel %vm1673, %v2149, 0
        %v2207 = vsel %vm2159, %v1658, 0
        %2209 = vmatprep.subr.bf16.mxu0 0
        %2210 = vmatpush1.bf16.msra.mxu0 0
        %2211 = vmatprep.subr.bf16.mxu0 0
        %2212 = vmatpush1.bf16.msra.mxu0 0
        %2213 = vmatprep.subr.bf16.mxu0 0
        %2214 = vmatpush1.bf16.msra.mxu0 0
        %2215 = vmatprep.subr.bf16.mxu0 0
        %2216 = vmatpush1.bf16.msra.mxu0 0
        %2217 = vmatprep.subr.bf16.mxu0 0
        %2218 = vmatpush1.bf16.msra.mxu0 0
        %2219 = vmatprep.subr.bf16.mxu0 0
        %2220 = vmatpush1.bf16.msra.mxu0 0
        %2221 = vmatprep.subr.bf16.mxu0 0
        %2222 = vmatpush1.bf16.msra.mxu0 0
        %2223 = vmatprep.subr.bf16.mxu0 0
        %2224 = vmatpush1.bf16.msra.mxu0 %v2207
        %2225 = vmatprep.subr.bf16.mxu0 0
        %2226 = vmatpush2.bf16.msra.mxu0 0
        %2227 = vmatprep.subr.bf16.mxu0 0
        %2228 = vmatpush2.bf16.msra.mxu0 0
        %2229 = vmatprep.subr.bf16.mxu0 0
        %2230 = vmatpush2.bf16.msra.mxu0 0
        %2231 = vmatprep.subr.bf16.mxu0 0
        %2232 = vmatpush2.bf16.msra.mxu0 0
        %2233 = vmatprep.subr.bf16.mxu0 0
        %2234 = vmatpush2.bf16.msra.mxu0 0
        %2235 = vmatprep.subr.bf16.mxu0 0
        %2236 = vmatpush2.bf16.msra.mxu0 0
        %2237 = vmatprep.subr.bf16.mxu0 0
        %2238 = vmatpush2.bf16.msra.mxu0 0
        %2239 = vmatprep.subr.bf16.mxu0 0
        %2240 = vmatpush2.bf16.msra.mxu0 0
        %2241 = vmatprep.mubr.bf16.mxu0 0
        %2242 = vmatmul.mubr.bf16.gmra.mxu0 %v2204
        %v2243 = vpop.f32.mrf.mxu0
        %v2244 = vadd.f32 0.0, %v2243
        %v2245 = vpop.f32.mrf.mxu0
        %v2246 = vpop.f32.mrf.mxu0
        %v2247 = vpop.f32.mrf.mxu0
        %2248 = vdwg.mxu0
        %v2250 = vsel %vm1673, %v2150, 0
        %v2253 = vsel %vm2159, %v1649, 0
        %2255 = vmatprep.subr.bf16.mxu0 0
        %2256 = vmatpush1.bf16.msra.mxu0 0
        %2257 = vmatprep.subr.bf16.mxu0 0
        %2258 = vmatpush1.bf16.msra.mxu0 0
        %2259 = vmatprep.subr.bf16.mxu0 0
        %2260 = vmatpush1.bf16.msra.mxu0 0
        %2261 = vmatprep.subr.bf16.mxu0 0
        %2262 = vmatpush1.bf16.msra.mxu0 0
        %2263 = vmatprep.subr.bf16.mxu0 0
        %2264 = vmatpush1.bf16.msra.mxu0 0
        %2265 = vmatprep.subr.bf16.mxu0 0
        %2266 = vmatpush1.bf16.msra.mxu0 0
        %2267 = vmatprep.subr.bf16.mxu0 0
        %2268 = vmatpush1.bf16.msra.mxu0 0
        %2269 = vmatprep.subr.bf16.mxu0 0
        %2270 = vmatpush1.bf16.msra.mxu0 %v2253
        %2271 = vmatprep.subr.bf16.mxu0 0
        %2272 = vmatpush2.bf16.msra.mxu0 0
        %2273 = vmatprep.subr.bf16.mxu0 0
        %2274 = vmatpush2.bf16.msra.mxu0 0
        %2275 = vmatprep.subr.bf16.mxu0 0
        %2276 = vmatpush2.bf16.msra.mxu0 0
        %2277 = vmatprep.subr.bf16.mxu0 0
        %2278 = vmatpush2.bf16.msra.mxu0 0
        %2279 = vmatprep.subr.bf16.mxu0 0
        %2280 = vmatpush2.bf16.msra.mxu0 0
        %2281 = vmatprep.subr.bf16.mxu0 0
        %2282 = vmatpush2.bf16.msra.mxu0 0
        %2283 = vmatprep.subr.bf16.mxu0 0
        %2284 = vmatpush2.bf16.msra.mxu0 0
        %2285 = vmatprep.subr.bf16.mxu0 0
        %2286 = vmatpush2.bf16.msra.mxu0 0
        %2287 = vmatprep.mubr.bf16.mxu0 0
        %2288 = vmatmul.mubr.bf16.gmra.mxu0 %v2250
        %v2289 = vpop.f32.mrf.mxu0
        %v2290 = vadd.f32 0.0, %v2289
        %v2291 = vpop.f32.mrf.mxu0
        %v2292 = vpop.f32.mrf.mxu0
        %v2293 = vpop.f32.mrf.mxu0
        %2294 = vdwg.mxu0
        %v2296 = vsel %vm1673, %v2151, 0
        %v2299 = vsel %vm2159, %v1661, 0
        %2301 = vmatprep.subr.bf16.mxu0 0
        %2302 = vmatpush1.bf16.msra.mxu0 0
        %2303 = vmatprep.subr.bf16.mxu0 0
        %2304 = vmatpush1.bf16.msra.mxu0 0
        %2305 = vmatprep.subr.bf16.mxu0 0
        %2306 = vmatpush1.bf16.msra.mxu0 0
        %2307 = vmatprep.subr.bf16.mxu0 0
        %2308 = vmatpush1.bf16.msra.mxu0 0
        %2309 = vmatprep.subr.bf16.mxu0 0
        %2310 = vmatpush1.bf16.msra.mxu0 0
        %2311 = vmatprep.subr.bf16.mxu0 0
        %2312 = vmatpush1.bf16.msra.mxu0 0
        %2313 = vmatprep.subr.bf16.mxu0 0
        %2314 = vmatpush1.bf16.msra.mxu0 0
        %2315 = vmatprep.subr.bf16.mxu0 0
        %2316 = vmatpush1.bf16.msra.mxu0 %v2299
        %2317 = vmatprep.subr.bf16.mxu0 0
        %2318 = vmatpush2.bf16.msra.mxu0 0
        %2319 = vmatprep.subr.bf16.mxu0 0
        %2320 = vmatpush2.bf16.msra.mxu0 0
        %2321 = vmatprep.subr.bf16.mxu0 0
        %2322 = vmatpush2.bf16.msra.mxu0 0
        %2323 = vmatprep.subr.bf16.mxu0 0
        %2324 = vmatpush2.bf16.msra.mxu0 0
        %2325 = vmatprep.subr.bf16.mxu0 0
        %2326 = vmatpush2.bf16.msra.mxu0 0
        %2327 = vmatprep.subr.bf16.mxu0 0
        %2328 = vmatpush2.bf16.msra.mxu0 0
        %2329 = vmatprep.subr.bf16.mxu0 0
        %2330 = vmatpush2.bf16.msra.mxu0 0
        %2331 = vmatprep.subr.bf16.mxu0 0
        %2332 = vmatpush2.bf16.msra.mxu0 0
        %2333 = vmatprep.mubr.bf16.mxu0 0
        %2334 = vmatmul.mubr.bf16.gmra.mxu0 %v2296
        %v2335 = vpop.f32.mrf.mxu0
        %v2336 = vadd.f32 0.0, %v2335
        %v2337 = vpop.f32.mrf.mxu0
        %v2338 = vpop.f32.mrf.mxu0
        %v2339 = vpop.f32.mrf.mxu0
        %2340 = vdwg.mxu0
        %v2342 = vsel %vm1673, %v2152, 0
        %v2345 = vsel %vm2159, %v1652, 0
        %2347 = vmatprep.subr.bf16.mxu0 0
        %2348 = vmatpush1.bf16.msra.mxu0 0
        %2349 = vmatprep.subr.bf16.mxu0 0
        %2350 = vmatpush1.bf16.msra.mxu0 0
        %2351 = vmatprep.subr.bf16.mxu0 0
        %2352 = vmatpush1.bf16.msra.mxu0 0
        %2353 = vmatprep.subr.bf16.mxu0 0
        %2354 = vmatpush1.bf16.msra.mxu0 0
        %2355 = vmatprep.subr.bf16.mxu0 0
        %2356 = vmatpush1.bf16.msra.mxu0 0
        %2357 = vmatprep.subr.bf16.mxu0 0
        %2358 = vmatpush1.bf16.msra.mxu0 0
        %2359 = vmatprep.subr.bf16.mxu0 0
        %2360 = vmatpush1.bf16.msra.mxu0 0
        %2361 = vmatprep.subr.bf16.mxu0 0
        %2362 = vmatpush1.bf16.msra.mxu0 %v2345
        %2363 = vmatprep.subr.bf16.mxu0 0
        %2364 = vmatpush2.bf16.msra.mxu0 0
        %2365 = vmatprep.subr.bf16.mxu0 0
        %2366 = vmatpush2.bf16.msra.mxu0 0
        %2367 = vmatprep.subr.bf16.mxu0 0
        %2368 = vmatpush2.bf16.msra.mxu0 0
        %2369 = vmatprep.subr.bf16.mxu0 0
        %2370 = vmatpush2.bf16.msra.mxu0 0
        %2371 = vmatprep.subr.bf16.mxu0 0
        %2372 = vmatpush2.bf16.msra.mxu0 0
        %2373 = vmatprep.subr.bf16.mxu0 0
        %2374 = vmatpush2.bf16.msra.mxu0 0
        %2375 = vmatprep.subr.bf16.mxu0 0
        %2376 = vmatpush2.bf16.msra.mxu0 0
        %2377 = vmatprep.subr.bf16.mxu0 0
        %2378 = vmatpush2.bf16.msra.mxu0 0
        %2379 = vmatprep.mubr.bf16.mxu0 0
        %2380 = vmatmul.mubr.bf16.gmra.mxu0 %v2342
        %v2381 = vpop.f32.mrf.mxu0
        %v2382 = vadd.f32 0.0, %v2381
        %v2383 = vpop.f32.mrf.mxu0
        %v2384 = vpop.f32.mrf.mxu0
        %v2385 = vpop.f32.mrf.mxu0
        %2386 = vdwg.mxu0
        %v2388 = vsel %vm1673, %v2153, 0
        %v2391 = vsel %vm2159, %v1664, 0
        %2393 = vmatprep.subr.bf16.mxu0 0
        %2394 = vmatpush1.bf16.msra.mxu0 0
        %2395 = vmatprep.subr.bf16.mxu0 0
        %2396 = vmatpush1.bf16.msra.mxu0 0
        %2397 = vmatprep.subr.bf16.mxu0 0
        %2398 = vmatpush1.bf16.msra.mxu0 0
        %2399 = vmatprep.subr.bf16.mxu0 0
        %2400 = vmatpush1.bf16.msra.mxu0 0
        %2401 = vmatprep.subr.bf16.mxu0 0
        %2402 = vmatpush1.bf16.msra.mxu0 0
        %2403 = vmatprep.subr.bf16.mxu0 0
        %2404 = vmatpush1.bf16.msra.mxu0 0
        %2405 = vmatprep.subr.bf16.mxu0 0
        %2406 = vmatpush1.bf16.msra.mxu0 0
        %2407 = vmatprep.subr.bf16.mxu0 0
        %2408 = vmatpush1.bf16.msra.mxu0 %v2391
        %2409 = vmatprep.subr.bf16.mxu0 0
        %2410 = vmatpush2.bf16.msra.mxu0 0
        %2411 = vmatprep.subr.bf16.mxu0 0
        %2412 = vmatpush2.bf16.msra.mxu0 0
        %2413 = vmatprep.subr.bf16.mxu0 0
        %2414 = vmatpush2.bf16.msra.mxu0 0
        %2415 = vmatprep.subr.bf16.mxu0 0
        %2416 = vmatpush2.bf16.msra.mxu0 0
        %2417 = vmatprep.subr.bf16.mxu0 0
        %2418 = vmatpush2.bf16.msra.mxu0 0
        %2419 = vmatprep.subr.bf16.mxu0 0
        %2420 = vmatpush2.bf16.msra.mxu0 0
        %2421 = vmatprep.subr.bf16.mxu0 0
        %2422 = vmatpush2.bf16.msra.mxu0 0
        %2423 = vmatprep.subr.bf16.mxu0 0
        %2424 = vmatpush2.bf16.msra.mxu0 0
        %2425 = vmatprep.mubr.bf16.mxu0 0
        %2426 = vmatmul.mubr.bf16.gmra.mxu0 %v2388
        %v2427 = vpop.f32.mrf.mxu0
        %v2428 = vadd.f32 0.0, %v2427
        %v2429 = vpop.f32.mrf.mxu0
        %v2430 = vpop.f32.mrf.mxu0
        %v2431 = vpop.f32.mrf.mxu0
        %2432 = vdwg.mxu0
        %v2434 = vsel %vm1673, %v2154, 0
        %v2437 = vsel %vm2159, %v1655, 0
        %2439 = vmatprep.subr.bf16.mxu0 0
        %2440 = vmatpush1.bf16.msra.mxu0 0
        %2441 = vmatprep.subr.bf16.mxu0 0
        %2442 = vmatpush1.bf16.msra.mxu0 0
        %2443 = vmatprep.subr.bf16.mxu0 0
        %2444 = vmatpush1.bf16.msra.mxu0 0
        %2445 = vmatprep.subr.bf16.mxu0 0
        %2446 = vmatpush1.bf16.msra.mxu0 0
        %2447 = vmatprep.subr.bf16.mxu0 0
        %2448 = vmatpush1.bf16.msra.mxu0 0
        %2449 = vmatprep.subr.bf16.mxu0 0
        %2450 = vmatpush1.bf16.msra.mxu0 0
        %2451 = vmatprep.subr.bf16.mxu0 0
        %2452 = vmatpush1.bf16.msra.mxu0 0
        %2453 = vmatprep.subr.bf16.mxu0 0
        %2454 = vmatpush1.bf16.msra.mxu0 %v2437
        %2455 = vmatprep.subr.bf16.mxu0 0
        %2456 = vmatpush2.bf16.msra.mxu0 0
        %2457 = vmatprep.subr.bf16.mxu0 0
        %2458 = vmatpush2.bf16.msra.mxu0 0
        %2459 = vmatprep.subr.bf16.mxu0 0
        %2460 = vmatpush2.bf16.msra.mxu0 0
        %2461 = vmatprep.subr.bf16.mxu0 0
        %2462 = vmatpush2.bf16.msra.mxu0 0
        %2463 = vmatprep.subr.bf16.mxu0 0
        %2464 = vmatpush2.bf16.msra.mxu0 0
        %2465 = vmatprep.subr.bf16.mxu0 0
        %2466 = vmatpush2.bf16.msra.mxu0 0
        %2467 = vmatprep.subr.bf16.mxu0 0
        %2468 = vmatpush2.bf16.msra.mxu0 0
        %2469 = vmatprep.subr.bf16.mxu0 0
        %2470 = vmatpush2.bf16.msra.mxu0 0
        %2471 = vmatprep.mubr.bf16.mxu0 0
        %2472 = vmatmul.mubr.bf16.gmra.mxu0 %v2434
        %v2473 = vpop.f32.mrf.mxu0
        %v2474 = vadd.f32 0.0, %v2473
        %v2475 = vpop.f32.mrf.mxu0
        %v2476 = vpop.f32.mrf.mxu0
        %v2477 = vpop.f32.mrf.mxu0
        %2478 = vdwg.mxu0
        %v2480 = vsel %vm1673, %v2155, 0
        %v2483 = vsel %vm2159, %v1667, 0
        %2485 = vmatprep.subr.bf16.mxu0 0
        %2486 = vmatpush1.bf16.msra.mxu0 0
        %2487 = vmatprep.subr.bf16.mxu0 0
        %2488 = vmatpush1.bf16.msra.mxu0 0
        %2489 = vmatprep.subr.bf16.mxu0 0
        %2490 = vmatpush1.bf16.msra.mxu0 0
        %2491 = vmatprep.subr.bf16.mxu0 0
        %2492 = vmatpush1.bf16.msra.mxu0 0
        %2493 = vmatprep.subr.bf16.mxu0 0
        %2494 = vmatpush1.bf16.msra.mxu0 0
        %2495 = vmatprep.subr.bf16.mxu0 0
        %2496 = vmatpush1.bf16.msra.mxu0 0
        %2497 = vmatprep.subr.bf16.mxu0 0
        %2498 = vmatpush1.bf16.msra.mxu0 0
        %2499 = vmatprep.subr.bf16.mxu0 0
        %2500 = vmatpush1.bf16.msra.mxu0 %v2483
        %2501 = vmatprep.subr.bf16.mxu0 0
        %2502 = vmatpush2.bf16.msra.mxu0 0
        %2503 = vmatprep.subr.bf16.mxu0 0
        %2504 = vmatpush2.bf16.msra.mxu0 0
        %2505 = vmatprep.subr.bf16.mxu0 0
        %2506 = vmatpush2.bf16.msra.mxu0 0
        %2507 = vmatprep.subr.bf16.mxu0 0
        %2508 = vmatpush2.bf16.msra.mxu0 0
        %2509 = vmatprep.subr.bf16.mxu0 0
        %2510 = vmatpush2.bf16.msra.mxu0 0
        %2511 = vmatprep.subr.bf16.mxu0 0
        %2512 = vmatpush2.bf16.msra.mxu0 0
        %2513 = vmatprep.subr.bf16.mxu0 0
        %2514 = vmatpush2.bf16.msra.mxu0 0
        %2515 = vmatprep.subr.bf16.mxu0 0
        %2516 = vmatpush2.bf16.msra.mxu0 0
        %2517 = vmatprep.mubr.bf16.mxu0 0
        %2518 = vmatmul.mubr.bf16.gmra.mxu0 %v2480
        %v2519 = vpop.f32.mrf.mxu0
        %v2520 = vadd.f32 0.0, %v2519
        %v2521 = vpop.f32.mrf.mxu0
        %v2522 = vpop.f32.mrf.mxu0
        %v2523 = vpop.f32.mrf.mxu0
        %2524 = vdwg.mxu0
        %v2525 = vcombine.low %v2198, %v2382
        %v2526 = vcombine.high %v2198, %v2382
        %v2528 = vunpack.c.l.s4 1983009808
        %v2529 = vunpack.c.0.s8 %v2528
        %v2530 = vlaneseq
        %v2531 = vshrl.u32 %v2530, 7
        %v2532 = vsub.s32 %v2529, %v2531
        %v2533 = vrot.slane %v2525, %v2532
        %v2535 = vunpack.c.l.s4 1983009808
        %v2536 = vunpack.c.0.s8 %v2535
        %v2537 = vlaneseq
        %v2538 = vshrl.u32 %v2537, 7
        %v2539 = vsub.s32 %v2536, %v2538
        %v2540 = vrot.slane %v2526, %v2539
        %v2541 = vcombine.low %v2290, %v2474
        %v2542 = vcombine.high %v2290, %v2474
        %v2544 = vunpack.c.l.s4 1983009808
        %v2545 = vunpack.c.0.s8 %v2544
        %v2546 = vlaneseq
        %v2547 = vshrl.u32 %v2546, 7
        %v2548 = vsub.s32 %v2545, %v2547
        %v2549 = vrot.slane %v2541, %v2548
        %v2551 = vunpack.c.l.s4 1983009808
        %v2552 = vunpack.c.0.s8 %v2551
        %v2553 = vlaneseq
        %v2554 = vshrl.u32 %v2553, 7
        %v2555 = vsub.s32 %v2552, %v2554
        %v2556 = vrot.slane %v2542, %v2555
        %v2557 = vcombine.low %v2533, %v2549
        %v2558 = vcombine.high %v2533, %v2549
        %v2560 = vunpack.c.l.s4 1934713408
        %v2561 = vunpack.c.0.s8 %v2560
        %v2562 = vlaneseq
        %v2563 = vshrl.u32 %v2562, 7
        %v2564 = vsub.s32 %v2561, %v2563
        %v2565 = vrot.slane %v2557, %v2564
        %v2567 = vunpack.c.l.s4 1934713408
        %v2568 = vunpack.c.0.s8 %v2567
        %v2569 = vlaneseq
        %v2570 = vshrl.u32 %v2569, 7
        %v2571 = vsub.s32 %v2568, %v2570
        %v2572 = vrot.slane %v2558, %v2571
        %v2573 = vcombine.low %v2540, %v2556
        %v2574 = vcombine.high %v2540, %v2556
        %v2576 = vunpack.c.l.s4 1934713408
        %v2577 = vunpack.c.0.s8 %v2576
        %v2578 = vlaneseq
        %v2579 = vshrl.u32 %v2578, 7
        %v2580 = vsub.s32 %v2577, %v2579
        %v2581 = vrot.slane %v2573, %v2580
        %v2583 = vunpack.c.l.s4 1934713408
        %v2584 = vunpack.c.0.s8 %v2583
        %v2585 = vlaneseq
        %v2586 = vshrl.u32 %v2585, 7
        %v2587 = vsub.s32 %v2584, %v2586
        %v2588 = vrot.slane %v2574, %v2587
        %v2589 = vcombine.high %v2565, 0.0
        %v2590 = vcombine.high %v2572, 0.0
        %v2591 = vcombine.high %v2581, 0.0
        %v2592 = vcombine.high %v2588, 0.0
        %v2593 = vcombine.low %v2244, %v2428
        %v2594 = vcombine.high %v2244, %v2428
        %v2596 = vunpack.c.l.s4 1983009808
        %v2597 = vunpack.c.0.s8 %v2596
        %v2598 = vlaneseq
        %v2599 = vshrl.u32 %v2598, 7
        %v2600 = vsub.s32 %v2597, %v2599
        %v2601 = vrot.slane %v2593, %v2600
        %v2603 = vunpack.c.l.s4 1983009808
        %v2604 = vunpack.c.0.s8 %v2603
        %v2605 = vlaneseq
        %v2606 = vshrl.u32 %v2605, 7
        %v2607 = vsub.s32 %v2604, %v2606
        %v2608 = vrot.slane %v2594, %v2607
        %v2609 = vcombine.low %v2336, %v2520
        %v2610 = vcombine.high %v2336, %v2520
        %v2612 = vunpack.c.l.s4 1983009808
        %v2613 = vunpack.c.0.s8 %v2612
        %v2614 = vlaneseq
        %v2615 = vshrl.u32 %v2614, 7
        %v2616 = vsub.s32 %v2613, %v2615
        %v2617 = vrot.slane %v2609, %v2616
        %v2619 = vunpack.c.l.s4 1983009808
        %v2620 = vunpack.c.0.s8 %v2619
        %v2621 = vlaneseq
        %v2622 = vshrl.u32 %v2621, 7
        %v2623 = vsub.s32 %v2620, %v2622
        %v2624 = vrot.slane %v2610, %v2623
        %v2625 = vcombine.low %v2601, %v2617
        %v2626 = vcombine.high %v2601, %v2617
        %v2628 = vunpack.c.l.s4 1934713408
        %v2629 = vunpack.c.0.s8 %v2628
        %v2630 = vlaneseq
        %v2631 = vshrl.u32 %v2630, 7
        %v2632 = vsub.s32 %v2629, %v2631
        %v2633 = vrot.slane %v2625, %v2632
        %v2635 = vunpack.c.l.s4 1934713408
        %v2636 = vunpack.c.0.s8 %v2635
        %v2637 = vlaneseq
        %v2638 = vshrl.u32 %v2637, 7
        %v2639 = vsub.s32 %v2636, %v2638
        %v2640 = vrot.slane %v2626, %v2639
        %v2641 = vcombine.low %v2608, %v2624
        %v2642 = vcombine.high %v2608, %v2624
        %v2644 = vunpack.c.l.s4 1934713408
        %v2645 = vunpack.c.0.s8 %v2644
        %v2646 = vlaneseq
        %v2647 = vshrl.u32 %v2646, 7
        %v2648 = vsub.s32 %v2645, %v2647
        %v2649 = vrot.slane %v2641, %v2648
        %v2651 = vunpack.c.l.s4 1934713408
        %v2652 = vunpack.c.0.s8 %v2651
        %v2653 = vlaneseq
        %v2654 = vshrl.u32 %v2653, 7
        %v2655 = vsub.s32 %v2652, %v2654
        %v2656 = vrot.slane %v2642, %v2655
        %v2657 = vcombine.high %v2633, 0.0
        %v2658 = vcombine.high %v2640, 0.0
        %v2659 = vcombine.high %v2649, 0.0
        %v2660 = vcombine.high %v2656, 0.0
        %v2661 = vcombine.low %v2565, %v2572
        %v2663 = vunpack.c.l.s4 1983009808
        %v2664 = vunpack.c.0.s8 %v2663
        %v2665 = vlaneseq
        %v2666 = vshrl.u32 %v2665, 7
        %v2667 = vsub.s32 %v2664, %v2666
        %v2668 = vrot.slane %v2661, %v2667
        %v2669 = vcombine.low %v2589, %v2590
        %v2671 = vunpack.c.l.s4 1983009808
        %v2672 = vunpack.c.0.s8 %v2671
        %v2673 = vlaneseq
        %v2674 = vshrl.u32 %v2673, 7
        %v2675 = vsub.s32 %v2672, %v2674
        %v2676 = vrot.slane %v2669, %v2675
        %v2677 = vcombine.low %v2581, %v2588
        %v2679 = vunpack.c.l.s4 1983009808
        %v2680 = vunpack.c.0.s8 %v2679
        %v2681 = vlaneseq
        %v2682 = vshrl.u32 %v2681, 7
        %v2683 = vsub.s32 %v2680, %v2682
        %v2684 = vrot.slane %v2677, %v2683
        %v2685 = vcombine.low %v2591, %v2592
        %v2687 = vunpack.c.l.s4 1983009808
        %v2688 = vunpack.c.0.s8 %v2687
        %v2689 = vlaneseq
        %v2690 = vshrl.u32 %v2689, 7
        %v2691 = vsub.s32 %v2688, %v2690
        %v2692 = vrot.slane %v2685, %v2691
        %v2693 = vcombine.low %v2668, %v2676
        %v2694 = vcombine.high %v2668, %v2676
        %v2696 = vunpack.c.l.s4 1934713408
        %v2697 = vunpack.c.0.s8 %v2696
        %v2698 = vlaneseq
        %v2699 = vshrl.u32 %v2698, 7
        %v2700 = vsub.s32 %v2697, %v2699
        %v2701 = vrot.slane %v2693, %v2700
        %v2703 = vunpack.c.l.s4 1934713408
        %v2704 = vunpack.c.0.s8 %v2703
        %v2705 = vlaneseq
        %v2706 = vshrl.u32 %v2705, 7
        %v2707 = vsub.s32 %v2704, %v2706
        %v2708 = vrot.slane %v2694, %v2707
        %v2709 = vcombine.low %v2684, %v2692
        %v2710 = vcombine.high %v2684, %v2692
        %v2712 = vunpack.c.l.s4 1934713408
        %v2713 = vunpack.c.0.s8 %v2712
        %v2714 = vlaneseq
        %v2715 = vshrl.u32 %v2714, 7
        %v2716 = vsub.s32 %v2713, %v2715
        %v2717 = vrot.slane %v2709, %v2716
        %v2719 = vunpack.c.l.s4 1934713408
        %v2720 = vunpack.c.0.s8 %v2719
        %v2721 = vlaneseq
        %v2722 = vshrl.u32 %v2721, 7
        %v2723 = vsub.s32 %v2720, %v2722
        %v2724 = vrot.slane %v2710, %v2723
        %v2725 = vcombine.low %v2701, %v2717
        %v2726 = vcombine.high %v2701, %v2717
        %v2727 = vcombine.low %v2708, %v2724
        %v2728 = vcombine.high %v2708, %v2724
        %v2729 = vcombine.low %v2633, %v2640
        %v2731 = vunpack.c.l.s4 1983009808
        %v2732 = vunpack.c.0.s8 %v2731
        %v2733 = vlaneseq
        %v2734 = vshrl.u32 %v2733, 7
        %v2735 = vsub.s32 %v2732, %v2734
        %v2736 = vrot.slane %v2729, %v2735
        %v2737 = vcombine.low %v2657, %v2658
        %v2739 = vunpack.c.l.s4 1983009808
        %v2740 = vunpack.c.0.s8 %v2739
        %v2741 = vlaneseq
        %v2742 = vshrl.u32 %v2741, 7
        %v2743 = vsub.s32 %v2740, %v2742
        %v2744 = vrot.slane %v2737, %v2743
        %v2745 = vcombine.low %v2649, %v2656
        %v2747 = vunpack.c.l.s4 1983009808
        %v2748 = vunpack.c.0.s8 %v2747
        %v2749 = vlaneseq
        %v2750 = vshrl.u32 %v2749, 7
        %v2751 = vsub.s32 %v2748, %v2750
        %v2752 = vrot.slane %v2745, %v2751
        %v2753 = vcombine.low %v2659, %v2660
        %v2755 = vunpack.c.l.s4 1983009808
        %v2756 = vunpack.c.0.s8 %v2755
        %v2757 = vlaneseq
        %v2758 = vshrl.u32 %v2757, 7
        %v2759 = vsub.s32 %v2756, %v2758
        %v2760 = vrot.slane %v2753, %v2759
        %v2761 = vcombine.low %v2736, %v2744
        %v2762 = vcombine.high %v2736, %v2744
        %v2764 = vunpack.c.l.s4 1934713408
        %v2765 = vunpack.c.0.s8 %v2764
        %v2766 = vlaneseq
        %v2767 = vshrl.u32 %v2766, 7
        %v2768 = vsub.s32 %v2765, %v2767
        %v2769 = vrot.slane %v2761, %v2768
        %v2771 = vunpack.c.l.s4 1934713408
        %v2772 = vunpack.c.0.s8 %v2771
        %v2773 = vlaneseq
        %v2774 = vshrl.u32 %v2773, 7
        %v2775 = vsub.s32 %v2772, %v2774
        %v2776 = vrot.slane %v2762, %v2775
        %v2777 = vcombine.low %v2752, %v2760
        %v2778 = vcombine.high %v2752, %v2760
        %v2780 = vunpack.c.l.s4 1934713408
        %v2781 = vunpack.c.0.s8 %v2780
        %v2782 = vlaneseq
        %v2783 = vshrl.u32 %v2782, 7
        %v2784 = vsub.s32 %v2781, %v2783
        %v2785 = vrot.slane %v2777, %v2784
        %v2787 = vunpack.c.l.s4 1934713408
        %v2788 = vunpack.c.0.s8 %v2787
        %v2789 = vlaneseq
        %v2790 = vshrl.u32 %v2789, 7
        %v2791 = vsub.s32 %v2788, %v2790
        %v2792 = vrot.slane %v2778, %v2791
        %v2793 = vcombine.low %v2769, %v2785
        %v2794 = vcombine.high %v2769, %v2785
        %v2795 = vcombine.low %v2776, %v2792
        %v2796 = vcombine.high %v2776, %v2792
        %2799 = vrot.lane.b32.xlu0 %v2726, 8
        %v2800 = vpop.permute.xlu0 %2799
        %2801 = vrot.lane.b32.xlu0 %v2794, 8
        %v2802 = vpop.permute.xlu0 %2801
        %2807 = vrot.lane.b32.xlu0 %v2727, 16
        %v2808 = vpop.permute.xlu0 %2807
        %2809 = vrot.lane.b32.xlu0 %v2795, 16
        %v2810 = vpop.permute.xlu0 %2809
        %2815 = vrot.lane.b32.xlu0 %v2728, 24
        %v2816 = vpop.permute.xlu0 %2815
        %2817 = vrot.lane.b32.xlu0 %v2796, 24
        %v2818 = vpop.permute.xlu0 %2817
        %v2821 = vsel %vm1673, %v2725, %v2800
        %v2822 = vsel %vm1673, %v2793, %v2802
        %vm2823 = vcmask 130048
        %v2824 = vsel %vm2823, %v2821, %v2808
        %v2825 = vsel %vm2823, %v2822, %v2810
        %vm2826 = vcmask 195584
        %v2827 = vsel %vm2826, %v2824, %v2816
        %v2828 = vsel %vm2826, %v2825, %v2818
        %v2829 = vpack.c.bf16 %v2828, %v2827
        %v2830 = vld [vmem:[%s665] sm:$0xf]
        %v2831 = vld [vmem:[%s665 + $0x4] sm:$0xf]
        %v2832 = vld [vmem:[%s665 + $0x8] sm:$0xf]
        %v2833 = vld [vmem:[%s665 + $0xc] sm:$0xf]
        %v2834 = vld [vmem:[%s668] sm:$0x1]
        %v2836 = vlaneseq
        %v2837 = vshrl.u32 %v2836, 7
        %v2838 = vsub.s32 0, %v2837
        %v2839 = vrot.slane %v2834, %v2838
        %v2845 = vunpack.c.l.b16 %v2830
        %v2846 = vunpack.c.l.b16 %v2831
        %v2847 = vunpack.c.l.b16 %v2832
        %v2848 = vunpack.c.l.b16 %v2833
        %v2849 = vpack.c.b16 %v2846, %v2845
        %v2850 = vpack.c.b16 %v2848, %v2847
        %v2854 = vsel %vm707, %v2829, 0
        %2856 = vmatprep.subr.bf16.mxu0 0
        %2857 = vmatpush1.bf16.msra.mxu0 0
        %2858 = vmatprep.subr.bf16.mxu0 0
        %2859 = vmatpush1.bf16.msra.mxu0 0
        %2860 = vmatprep.subr.bf16.mxu0 0
        %2861 = vmatpush1.bf16.msra.mxu0 0
        %2862 = vmatprep.subr.bf16.mxu0 0
        %2863 = vmatpush1.bf16.msra.mxu0 0
        %2864 = vmatprep.subr.bf16.mxu0 0
        %2865 = vmatpush1.bf16.msra.mxu0 0
        %2866 = vmatprep.subr.bf16.mxu0 0
        %2867 = vmatpush1.bf16.msra.mxu0 0
        %2868 = vmatprep.subr.bf16.mxu0 0
        %2869 = vmatpush1.bf16.msra.mxu0 %v2850
        %2870 = vmatprep.subr.bf16.mxu0 0
        %2871 = vmatpush1.bf16.msra.mxu0 %v2849
        %2872 = vmatprep.subr.bf16.mxu0 0
        %2873 = vmatpush2.bf16.msra.mxu0 0
        %2874 = vmatprep.subr.bf16.mxu0 0
        %2875 = vmatpush2.bf16.msra.mxu0 0
        %2876 = vmatprep.subr.bf16.mxu0 0
        %2877 = vmatpush2.bf16.msra.mxu0 0
        %2878 = vmatprep.subr.bf16.mxu0 0
        %2879 = vmatpush2.bf16.msra.mxu0 0
        %2880 = vmatprep.subr.bf16.mxu0 0
        %2881 = vmatpush2.bf16.msra.mxu0 0
        %2882 = vmatprep.subr.bf16.mxu0 0
        %2883 = vmatpush2.bf16.msra.mxu0 0
        %2884 = vmatprep.subr.bf16.mxu0 0
        %2885 = vmatpush2.bf16.msra.mxu0 0
        %2886 = vmatprep.subr.bf16.mxu0 0
        %2887 = vmatpush2.bf16.msra.mxu0 0
        %2888 = vmatprep.mubr.bf16.mxu0 0
        %2889 = vmatmul.mubr.bf16.gmra.mxu0 %v2854
        %v2890 = vpop.f32.mrf.mxu0
        %v2891 = vadd.f32 %v2839, %v2890
        %v2892 = vpop.f32.mrf.mxu0
        %v2893 = vpop.f32.mrf.mxu0
        %v2894 = vadd.f32 %v2839, %v2893
        %v2895 = vpop.f32.mrf.mxu0
        %2896 = vdwg.mxu0
        %v2897 = vadd.f32 %v703, %v2891
        %v2898 = vadd.f32 %v704, %v2894
        %v2899 = vld [vmem:[%s671] sm:$0x1]
        %v2900 = vld [vmem:[%s674] sm:$0x1]
        %v2901 = vsel %vm707, %v2897, 0.0
        %2902 = vadd.xlane.f32.xlu0 %v2901
        %v2903 = vpop.xlane.xlu0 %2902
        %v2904 = vsel %vm707, %v2898, 0.0
        %2905 = vadd.xlane.f32.xlu0 %v2904
        %v2906 = vpop.xlane.xlu0 %2905
        %v2907 = vmul.f32 %v2903, %v714
        %v2908 = vmul.f32 %v2906, %v714
        %v2909 = vsub.f32 %v2897, %v2907
        %v2910 = vsub.f32 %v2898, %v2908
        %v2911 = vmul.f32 %v2909, %v2909
        %v2912 = vmul.f32 %v2910, %v2910
        %v2913 = vsel %vm707, %v2911, 0.0
        %2914 = vadd.xlane.f32.xlu0 %v2913
        %v2915 = vpop.xlane.xlu0 %2914
        %v2916 = vsel %vm707, %v2912, 0.0
        %2917 = vadd.xlane.f32.xlu0 %v2916
        %v2918 = vpop.xlane.xlu0 %2917
        %v2919 = vmul.f32 %v2915, %v714
        %v2920 = vmul.f32 %v2918, %v714
        %v2921 = vadd.f32 %v2919, 1e-05
        %v2922 = vadd.f32 %v2920, 1e-05
        %v2923 = vrsqrt.pop %v2921
        %v2924 = vrsqrt.pop %v2922
        %v2925 = vmul.f32 %v2909, %v2923
        %v2926 = vmul.f32 %v2910, %v2924
        %v2928 = vlaneseq
        %v2929 = vshrl.u32 %v2928, 7
        %v2930 = vsub.s32 0, %v2929
        %v2931 = vrot.slane %v2899, %v2930
        %v2933 = vmul.f32 %v2925, %v2931
        %v2934 = vmul.f32 %v2926, %v2931
        %v2936 = vlaneseq
        %v2937 = vshrl.u32 %v2936, 7
        %v2938 = vsub.s32 0, %v2937
        %v2939 = vrot.slane %v2900, %v2938
        %v2941 = vadd.f32 %v2933, %v2939
        %v2942 = vadd.f32 %v2934, %v2939
        %v2943 = vpack.c.bf16 %v2942, %v2941
        %v2944 = vld [vmem:[%s679] sm:$0xf]
        %v2945 = vld [vmem:[%s679 + $0x4] sm:$0xf]
        %v2946 = vld [vmem:[%s679 + $0x8] sm:$0xf]
        %v2947 = vld [vmem:[%s679 + $0xc] sm:$0xf]
        %v2948 = vld [vmem:[%s682] sm:$0x1]
        %v2950 = vlaneseq
        %v2951 = vshrl.u32 %v2950, 7
        %v2952 = vsub.s32 0, %v2951
        %v2953 = vrot.slane %v2948, %v2952
        %v2959 = vunpack.c.l.b16 %v2944
        %v2960 = vunpack.c.l.b16 %v2945
        %v2961 = vunpack.c.l.b16 %v2946
        %v2962 = vunpack.c.l.b16 %v2947
        %v2963 = vpack.c.b16 %v2960, %v2959
        %v2964 = vpack.c.b16 %v2962, %v2961
        %v2968 = vsel %vm707, %v2943, 0
        %2970 = vmatprep.subr.bf16.mxu0 0
        %2971 = vmatpush1.bf16.msra.mxu0 0
        %2972 = vmatprep.subr.bf16.mxu0 0
        %2973 = vmatpush1.bf16.msra.mxu0 0
        %2974 = vmatprep.subr.bf16.mxu0 0
        %2975 = vmatpush1.bf16.msra.mxu0 0
        %2976 = vmatprep.subr.bf16.mxu0 0
        %2977 = vmatpush1.bf16.msra.mxu0 0
        %2978 = vmatprep.subr.bf16.mxu0 0
        %2979 = vmatpush1.bf16.msra.mxu0 0
        %2980 = vmatprep.subr.bf16.mxu0 0
        %2981 = vmatpush1.bf16.msra.mxu0 0
        %2982 = vmatprep.subr.bf16.mxu0 0
        %2983 = vmatpush1.bf16.msra.mxu0 %v2964
        %2984 = vmatprep.subr.bf16.mxu0 0
        %2985 = vmatpush1.bf16.msra.mxu0 %v2963
        %2986 = vmatprep.subr.bf16.mxu0 0
        %2987 = vmatpush2.bf16.msra.mxu0 0
        %2988 = vmatprep.subr.bf16.mxu0 0
        %2989 = vmatpush2.bf16.msra.mxu0 0
        %2990 = vmatprep.subr.bf16.mxu0 0
        %2991 = vmatpush2.bf16.msra.mxu0 0
        %2992 = vmatprep.subr.bf16.mxu0 0
        %2993 = vmatpush2.bf16.msra.mxu0 0
        %2994 = vmatprep.subr.bf16.mxu0 0
        %2995 = vmatpush2.bf16.msra.mxu0 0
        %2996 = vmatprep.subr.bf16.mxu0 0
        %2997 = vmatpush2.bf16.msra.mxu0 0
        %2998 = vmatprep.subr.bf16.mxu0 0
        %2999 = vmatpush2.bf16.msra.mxu0 0
        %3000 = vmatprep.subr.bf16.mxu0 0
        %3001 = vmatpush2.bf16.msra.mxu0 0
        %3002 = vmatprep.mubr.bf16.mxu0 0
        %3003 = vmatmul.mubr.bf16.gmra.mxu0 %v2968
        %v3004 = vpop.f32.mrf.mxu0
        %v3005 = vadd.f32 %v2953, %v3004
        %v3006 = vpop.f32.mrf.mxu0
        %v3007 = vpop.f32.mrf.mxu0
        %v3008 = vadd.f32 %v2953, %v3007
        %v3009 = vpop.f32.mrf.mxu0
        %3010 = vdwg.mxu0
        %v3011 = vmax.f32 %v3005, 0.0
        %v3012 = vmax.f32 %v3008, 0.0
        %v3013 = vpack.c.bf16 %v3012, %v3011
        %v3014 = vld [vmem:[%s687] sm:$0xf]
        %v3015 = vld [vmem:[%s687 + $0x4] sm:$0xf]
        %v3016 = vld [vmem:[%s687 + $0x8] sm:$0xf]
        %v3017 = vld [vmem:[%s687 + $0xc] sm:$0xf]
        %v3018 = vld [vmem:[%s687 + $0x10] sm:$0xf]
        %v3019 = vld [vmem:[%s687 + $0x14] sm:$0xf]
        %v3020 = vld [vmem:[%s687 + $0x18] sm:$0xf]
        %v3021 = vld [vmem:[%s687 + $0x1c] sm:$0xf]
        %v3022 = vld [vmem:[%s687 + $0x20] sm:$0xf]
        %v3023 = vld [vmem:[%s687 + $0x24] sm:$0xf]
        %v3024 = vld [vmem:[%s687 + $0x28] sm:$0xf]
        %v3025 = vld [vmem:[%s687 + $0x2c] sm:$0xf]
        %v3026 = vld [vmem:[%s687 + $0x30] sm:$0xf]
        %v3027 = vld [vmem:[%s687 + $0x34] sm:$0xf]
        %v3028 = vld [vmem:[%s687 + $0x38] sm:$0xf]
        %v3029 = vld [vmem:[%s687 + $0x3c] sm:$0xf]
        %v3030 = vld [vmem:[%s690] sm:$0x1]
        %v3032 = vlaneseq
        %v3033 = vshrl.u32 %v3032, 7
        %v3034 = vsub.s32 0, %v3033
        %v3035 = vrot.slane %v3030, %v3034
        %v3053 = vunpack.c.l.b16 %v3014
        %v3054 = vunpack.c.l.b16 %v3015
        %v3055 = vunpack.c.l.b16 %v3016
        %v3056 = vunpack.c.l.b16 %v3017
        %v3057 = vunpack.c.l.b16 %v3018
        %v3058 = vunpack.c.l.b16 %v3019
        %v3059 = vunpack.c.l.b16 %v3020
        %v3060 = vunpack.c.l.b16 %v3021
        %v3061 = vunpack.c.l.b16 %v3022
        %v3062 = vunpack.c.l.b16 %v3023
        %v3063 = vunpack.c.l.b16 %v3024
        %v3064 = vunpack.c.l.b16 %v3025
        %v3065 = vunpack.c.l.b16 %v3026
        %v3066 = vunpack.c.l.b16 %v3027
        %v3067 = vunpack.c.l.b16 %v3028
        %v3068 = vunpack.c.l.b16 %v3029
        %v3069 = vpack.c.b16 %v3054, %v3053
        %v3070 = vpack.c.b16 %v3056, %v3055
        %v3071 = vpack.c.b16 %v3058, %v3057
        %v3072 = vpack.c.b16 %v3060, %v3059
        %v3073 = vpack.c.b16 %v3062, %v3061
        %v3074 = vpack.c.b16 %v3064, %v3063
        %v3075 = vpack.c.b16 %v3066, %v3065
        %v3076 = vpack.c.b16 %v3068, %v3067
        %3085 = vmatprep.subr.bf16.mxu0 0
        %3086 = vmatpush1.bf16.msra.mxu0 %v3076
        %3087 = vmatprep.subr.bf16.mxu0 0
        %3088 = vmatpush1.bf16.msra.mxu0 %v3075
        %3089 = vmatprep.subr.bf16.mxu0 0
        %3090 = vmatpush1.bf16.msra.mxu0 %v3074
        %3091 = vmatprep.subr.bf16.mxu0 0
        %3092 = vmatpush1.bf16.msra.mxu0 %v3073
        %3093 = vmatprep.subr.bf16.mxu0 0
        %3094 = vmatpush1.bf16.msra.mxu0 %v3072
        %3095 = vmatprep.subr.bf16.mxu0 0
        %3096 = vmatpush1.bf16.msra.mxu0 %v3071
        %3097 = vmatprep.subr.bf16.mxu0 0
        %3098 = vmatpush1.bf16.msra.mxu0 %v3070
        %3099 = vmatprep.subr.bf16.mxu0 0
        %3100 = vmatpush1.bf16.msra.mxu0 %v3069
        %3101 = vmatprep.subr.bf16.mxu0 0
        %3102 = vmatpush2.bf16.msra.mxu0 0
        %3103 = vmatprep.subr.bf16.mxu0 0
        %3104 = vmatpush2.bf16.msra.mxu0 0
        %3105 = vmatprep.subr.bf16.mxu0 0
        %3106 = vmatpush2.bf16.msra.mxu0 0
        %3107 = vmatprep.subr.bf16.mxu0 0
        %3108 = vmatpush2.bf16.msra.mxu0 0
        %3109 = vmatprep.subr.bf16.mxu0 0
        %3110 = vmatpush2.bf16.msra.mxu0 0
        %3111 = vmatprep.subr.bf16.mxu0 0
        %3112 = vmatpush2.bf16.msra.mxu0 0
        %3113 = vmatprep.subr.bf16.mxu0 0
        %3114 = vmatpush2.bf16.msra.mxu0 0
        %3115 = vmatprep.subr.bf16.mxu0 0
        %3116 = vmatpush2.bf16.msra.mxu0 0
        %3117 = vmatprep.mubr.bf16.mxu0 0
        %3118 = vmatmul.mubr.bf16.gmra.mxu0 %v3013
        %v3119 = vpop.f32.mrf.mxu0
        %v3120 = vadd.f32 %v3035, %v3119
        %v3121 = vpop.f32.mrf.mxu0
        %v3122 = vpop.f32.mrf.mxu0
        %v3123 = vadd.f32 %v3035, %v3122
        %v3124 = vpop.f32.mrf.mxu0
        %3125 = vdwg.mxu0
        %v3126 = vadd.f32 %v2897, %v3120
        %v3127 = vadd.f32 %v2898, %v3123
        %3128 = vst.msk [vmem:[#allocation2] sm:$0xff] %vm707, %v3126
        %3129 = vst.msk [vmem:[#allocation2 + $0x8] sm:$0xff] %vm707, %v3127
        %p3130 = scmp.eq.s32.totalorder %s36, 1
        // Predicated region
        $region81: #{tpu_custom_call.1} parent=75 // pred_check
          %p3131 = pneg %p3130
        $region82: #{tpu_custom_call.1} parent=75 // pred_check_branch
          %3133 = sbr.rel (%p3131) target = $region84
        $region83: #{tpu_custom_call.1} parent=75 // pred_region
          %v3134 = vld [vmem:[%s12] sm:$0x1]
          %v3135 = vld [vmem:[%s13] sm:$0x1]
          %v3136 = vsel %vm707, %v3126, 0.0
          %3137 = vadd.xlane.f32.xlu0 %v3136
          %v3138 = vpop.xlane.xlu0 %3137
          %v3139 = vsel %vm707, %v3127, 0.0
          %3140 = vadd.xlane.f32.xlu0 %v3139
          %v3141 = vpop.xlane.xlu0 %3140
          %v3142 = vmul.f32 %v3138, %v714
          %v3143 = vmul.f32 %v3141, %v714
          %v3144 = vsub.f32 %v3126, %v3142
          %v3145 = vsub.f32 %v3127, %v3143
          %v3146 = vmul.f32 %v3144, %v3144
          %v3147 = vmul.f32 %v3145, %v3145
          %v3148 = vsel %vm707, %v3146, 0.0
          %3149 = vadd.xlane.f32.xlu0 %v3148
          %v3150 = vpop.xlane.xlu0 %3149
          %v3151 = vsel %vm707, %v3147, 0.0
          %3152 = vadd.xlane.f32.xlu0 %v3151
          %v3153 = vpop.xlane.xlu0 %3152
          %v3154 = vmul.f32 %v3150, %v714
          %v3155 = vmul.f32 %v3153, %v714
          %v3156 = vadd.f32 %v3154, 1e-05
          %v3157 = vadd.f32 %v3155, 1e-05
          %v3158 = vrsqrt.pop %v3156
          %v3159 = vrsqrt.pop %v3157
          %v3160 = vmul.f32 %v3144, %v3158
          %v3161 = vmul.f32 %v3145, %v3159
          %v3163 = vlaneseq
          %v3164 = vshrl.u32 %v3163, 7
          %v3165 = vsub.s32 0, %v3164
          %v3166 = vrot.slane %v3134, %v3165
          %v3168 = vmul.f32 %v3160, %v3166
          %v3169 = vmul.f32 %v3161, %v3166
          %v3171 = vlaneseq
          %v3172 = vshrl.u32 %v3171, 7
          %v3173 = vsub.s32 0, %v3172
          %v3174 = vrot.slane %v3135, %v3173
          %v3176 = vadd.f32 %v3168, %v3174
          %v3177 = vadd.f32 %v3169, %v3174
          %3178 = vst.msk [vmem:[#allocation3] sm:$0xff] %vm707, %v3176
          %3179 = vst.msk [vmem:[#allocation3 + $0x8] sm:$0xff] %vm707, %v3177
        $region84: #{tpu_custom_call.1} parent=75 // pred_fallthru
          _
        %s3180 = sand.u32 %s433, 1
        %s3181 = scalar_lea.sflag [#allocation6], %s3180
        %s3182 = sand.u32 %s433, 1
        %s3183 = smul.addr %s3182, 64
        %s3184 = scalar_lea.vmem [#allocation5], %s3183
        // Predicated region
        $region85: #{tpu_custom_call.1} parent=75 // pred_check
          %p3185 = pneg %p415
        $region86: #{tpu_custom_call.1} parent=75 // pred_check_branch
          %3187 = sbr.rel (%p3185) target = $region88
        $region87: #{tpu_custom_call.1} parent=75 // pred_region
          %s3188 = smul.u32 2, %s35
          %s3190 = ssub.s32 256, 256
          %3191 = vsyncadd [#allocation4], %s3190
          %s3192 = smul.addr %s3188, 128
          %s3193 = scalar_lea.hbm %s14, %s3192
          %s3194 = sshll.u32 [#allocation3], 4
          %s3195 = int_to_ptr.vmem [resolvable:$true] %s3194
          %3200 = dma.vmem_to_hbm [thread:$0]  %s3195, 256, %s3193, [#allocation4], 128, 128, 8
        $region88: #{tpu_custom_call.1} parent=75 // pred_fallthru
          _
        // Predicated region
        $region89: #{tpu_custom_call.1} parent=75 // pred_check
          %p3201 = pneg %p443
        $region90: #{tpu_custom_call.1} parent=75 // pred_check_branch
          %3203 = sbr.rel (%p3201) target = $region92
        $region91: #{tpu_custom_call.1} parent=75 // pred_region
          %s3204 = smul.u32 2, %s35
          %s3206 = ssub.s32 1024, 1024
          %3207 = vsyncadd %s3181, %s3206
          %s3208 = smul.addr %s36, 8
          %s3209 = sadd.s32 %s3204, %s3208
          %s3210 = smul.addr %s3209, 128
          %s3211 = scalar_lea.hbm %s15, %s3210
          %s3212 = sshll.u32 %s3184, 4
          %s3213 = int_to_ptr.vmem [resolvable:$true] %s3212
          %3218 = dma.vmem_to_hbm [thread:$0]  %s3213, 1024, %s3211, %s3181, 128, 128, 8
        $region92: #{tpu_custom_call.1} parent=75 // pred_fallthru
          _
        // Predicated region
        $region93: #{tpu_custom_call.1} parent=75 // pred_check
          %p3219 = pneg %p415
        $region94: #{tpu_custom_call.1} parent=75 // pred_check_branch
          %3221 = sbr.rel (%p3219) target = $region96
        $region95: #{tpu_custom_call.1} parent=75 // pred_region
          %3222 = dma.done [#allocation4], 256
        $region96: #{tpu_custom_call.1} parent=75 // pred_fallthru
          _
      $region76: #{tpu_custom_call.1} parent=5 // pred_fallthru
        _
      %p3223 = scmp.le.s32.totalorder 2, %s26
      // Predicated region
      $region97: #{tpu_custom_call.1} parent=5 // pred_check
        %p3224 = pneg %p3223
      $region98: #{tpu_custom_call.1} parent=5 // pred_check_branch
        %3226 = sbr.rel (%p3224) target = $region100
      $region99: #{tpu_custom_call.1} parent=5 // pred_region
        %s3227 = ssub.s32 %s26, 2
        // Predicated region
        $region101: #{tpu_custom_call.1} parent=99 // pred_check
          %p3228 = pneg %p449
        $region102: #{tpu_custom_call.1} parent=99 // pred_check_branch
          %3230 = sbr.rel (%p3228) target = $region104
        $region103: #{tpu_custom_call.1} parent=99 // pred_region
          %s3231 = sand.u32 %s434, 1
          %s3232 = scalar_lea.sflag [#allocation6], %s3231
          %s3233 = sand.u32 %s434, 1
          %s3234 = smul.addr %s3233, 64
          %s3235 = scalar_lea.vmem [#allocation5], %s3234
          %3236 = dma.done %s3232, 1024
        $region104: #{tpu_custom_call.1} parent=99 // pred_fallthru
          _
      $region100: #{tpu_custom_call.1} parent=5 // pred_fallthru
        _
    $region6: #{tpu_custom_call.1} parent=1 // loop_footer
      %s30 = sadd.s32 1, %s26
    $region7: #{tpu_custom_call.1} parent=1 // loop_footer_branch
      %25 = sbr.rel target = $region3
    $region8: #{tpu_custom_call.1} parent=1 // loop_exit
      _
    %3237 = vsyncpa [#allocation4], 1
    %s3238 = scalar_lea.sflag [#allocation4], 1
    %3239 = vsyncpa %s3238, 1
    %3240 = vsyncpa [#allocation6], 1
    %s3241 = scalar_lea.sflag [#allocation6], 1
    %3242 = vsyncpa %s3241, 1

</llo_original>
